<compile_context>
chip_gen: v6e
topology: v6e:2x2x1
jax: 0.10.0
libtpu: 0.0.40
codegen_flags: <defaults>
</compile_context>

<pallas_src>
import functools

import jax
import jax.numpy as jnp
from jax import lax
from jax.experimental import pallas as pl
from jax.experimental.pallas import tpu as pltpu


def _shift_log_scale_kernel(
    x_ref,        # (c_in, TB, Mflat)  VMEM  zero-padded, margined, flat spatial
    bias_ref,     # (n_out, 1, Np)     VMEM  conv3(edge ch) + b3 (padded-flat coords)
    mask_ref,     # (1, Np)            VMEM  1.0 at interior positions, 0.0 on border
    w1_ref, b1_ref,                    # SMEM  conv1 with BN1 folded in
    w2_ref, b2_ref,                    # SMEM  conv2 with BN2 folded in
    w3_ref,                            # SMEM  conv3 (edge channel removed, *exp(3*logs))
    gscale_ref,                        # SMEM  (1,) global `scale`
    out_ref,      # (n_out, TB, Np)    VMEM  output in padded-flat coords
    pad3_ref,     # (width, TB, Mflat) VMEM  scratch: masked h2 with lane margins
    *, c_in, width, n_out, Np, Wp, margin):
    TB = x_ref.shape[1]
    Mflat = x_ref.shape[2]
    half = n_out // 2

    interior = mask_ref[...]                                   # (1, Np)

    # ---- stage 1: conv3x3 "same" in flat coords + folded BN1 + ReLU ---------
    # Taps are static lane-offset slices of the pre-padded, margined input.
    h1 = [None] * width
    for ci in range(c_in):
        for kh in range(3):
            for kw in range(3):
                off = (kh - 1) * Wp + (kw - 1)
                tap = x_ref[ci, :, margin + off: margin + off + Np]  # (TB, Np)
                for co in range(width):
                    w = w1_ref[((co * c_in + ci) * 3 + kh) * 3 + kw]
                    t = w * tap
                    h1[co] = t if h1[co] is None else h1[co] + t
    for co in range(width):
        h1[co] = jnp.maximum(h1[co] + b1_ref[co], 0.0)

    # ---- stage 2: conv1x1 + folded BN2 + ReLU, masked to interior -> scratch -
    # Only the thin lane margins are zeroed (interior is fully overwritten each
    # step; margins feed only discarded border outputs, zeroing keeps the raw
    # kernel output deterministic).
    pad3_ref[:, :, 0:margin] = jnp.zeros((width, TB, margin), jnp.float32)
    pad3_ref[:, :, margin + Np:Mflat] = jnp.zeros(
        (width, TB, Mflat - margin - Np), jnp.float32)
    for co in range(width):
        v = w2_ref[co * width] * h1[0]
        for ci in range(1, width):
            v = v + w2_ref[co * width + ci] * h1[ci]
        v = jnp.maximum(v + b2_ref[co], 0.0) * interior
        pad3_ref[co, :, margin: margin + Np] = v

    # ---- stage 3: conv3x3 "valid" + precomputed edge/bias map + tanh gate ----
    y = [None] * n_out
    for ci in range(width):
        for kh in range(3):
            for kw in range(3):
                off = (kh - 1) * Wp + (kw - 1)
                tap = pad3_ref[ci, :, margin + off: margin + off + Np]  # (TB, Np)
                for co in range(n_out):
                    w = w3_ref[((co * width + ci) * 3 + kh) * 3 + kw]
                    t = w * tap
                    y[co] = t if y[co] is None else y[co] + t

    gs = gscale_ref[0]
    for co in range(n_out):
        v = y[co] + bias_ref[co]                               # (TB,Np) + (1,Np)
        if co >= half:
            v = gs * jnp.tanh(v)
        out_ref[co, :, :] = v                                  # lane-dense store


def _pick_block_b(B):
    for cand in (16, 8):          # multiple of 8 (sublane tile), <=16 for vregs
        if B % cand == 0:
            return cand
    return B                      # small / awkward batch: one tile = whole batch


def shift_and_log_scale(x, params, *, width=4, block_b=None, bn_eps=1e-5):
    """Pallas forward of ShiftAndLogScale (default shift_only=False path).

    x: (B, num_in, H, W) float32.  params: PyTorch-layout parameter dict.
    Returns (shift, log_scale), each (B, num_out // 2, H, W).
    """
    B, c_in, H, W = x.shape
    w1, b1 = params["w1"], params["b1"]
    w2, b2 = params["w2"], params["b2"]
    w3, b3 = params["w3"], params["b3"]
    n_out = w3.shape[0]

    assert width == 4, "module hard-codes the edge channel at index 4 (width=4)"
    assert w1.shape == (width, c_in, 3, 3) and w2.shape == (width, width, 1, 1)
    assert w3.shape == (n_out, width + 1, 3, 3) and n_out % 2 == 0

    f32 = lambda a: jnp.asarray(a, jnp.float32)

    # TODO(synk): BatchNorm is folded to its eval-mode affine (running stats);
    # training-mode batch statistics are not computed inside the kernel.
    bn1s = f32(params["bn1_gamma"]) / jnp.sqrt(f32(params["bn1_var"]) + bn_eps)
    bn1b = f32(params["bn1_beta"]) - f32(params["bn1_mean"]) * bn1s
    bn2s = f32(params["bn2_gamma"]) / jnp.sqrt(f32(params["bn2_var"]) + bn_eps)
    bn2b = f32(params["bn2_beta"]) - f32(params["bn2_mean"]) * bn2s

    # Fold BN1/BN2 into conv1/conv2 and exp(3*logs) into conv3 (exact algebra).
    w1f = f32(w1) * bn1s[:, None, None, None]
    b1f = f32(b1) * bn1s + bn1b
    w2f = f32(w2) * bn2s[:, None, None, None]
    b2f = f32(b2) * bn2s + bn2b
    oscale = jnp.exp(3.0 * f32(params["logs"]).reshape(-1))            # (n_out,)
    w3f = f32(w3) * oscale[:, None, None, None]
    b3f = f32(b3) * oscale
    gscale = f32(params["scale"]).reshape(-1)

    Hp, Wp = H + 2, W + 2
    Np = Hp * Wp
    margin = Wp + 1            # max |tap offset| of a 3x3 kernel in flat coords
    Mflat = Np + 2 * margin
    half = n_out // 2

    # Edge-indicator channel contribution + conv3 bias as a constant bias map
    # (stored in padded-flat coordinates; only interior positions are kept).
    edge = jnp.zeros((Hp, Wp), jnp.float32)
    edge = edge.at[0, :].set(1.0).at[-1, :].set(1.0)
    edge = edge.at[:, 0].set(1.0).at[:, -1].set(1.0)
    eb = lax.conv_general_dilated(
        edge[None, None], w3f[:, width:width + 1], (1, 1), "VALID",
        dimension_numbers=("NCHW", "OIHW", "NCHW"))[0]                 # (n_out,H,W)
    eb = eb + b3f[:, None, None]
    bias_flat = jnp.zeros((n_out, Hp, Wp), jnp.float32)
    bias_flat = bias_flat.at[:, 1:H + 1, 1:W + 1].set(eb).reshape(n_out, 1, Np)

    # Interior mask: 1 inside the original HxW image, 0 on the 1-pixel border.
    interior = jnp.zeros((Hp, Wp), jnp.float32)
    interior = interior.at[1:H + 1, 1:W + 1].set(1.0).reshape(1, Np)

    # Input: channel-major, zero-padded, flattened spatial with lane margins
    # (one-off wrapper-side layout plumbing so the kernel never transposes).
    xpad = jnp.pad(f32(x), ((0, 0), (0, 0), (1, 1), (1, 1)))           # (B,C,Hp,Wp)
    xflat = jnp.transpose(xpad, (1, 0, 2, 3)).reshape(c_in, B, Np)
    xflat = jnp.pad(xflat, ((0, 0), (0, 0), (margin, margin)))         # (C,B,Mflat)

    if block_b is None:
        block_b = _pick_block_b(B)
    assert B % block_b == 0, "block_b must divide B"
    assert block_b % 8 == 0 or block_b == B, \
        "block_b must be a multiple of 8 (sublane tiling) or the whole batch"
    grid = (B // block_b,)
    # NOTE: on v7x pick block_b so B // block_b >= 2 (ideally even) to occupy
    # both TensorCores; impossible for the tiny demo batch (B=2 -> grid=1).

    smem = pl.BlockSpec(memory_space=pltpu.MemorySpace.SMEM)
    x_spec = pl.BlockSpec((c_in, block_b, Mflat), lambda b: (0, b, 0))
    bias_spec = pl.BlockSpec((n_out, 1, Np), lambda b: (0, 0, 0))      # grid-invariant
    mask_spec = pl.BlockSpec((1, Np), lambda b: (0, 0))                # grid-invariant
    out_spec = pl.BlockSpec((n_out, block_b, Np), lambda b: (0, b, 0))

    kernel = functools.partial(
        _shift_log_scale_kernel, c_in=c_in, width=width, n_out=n_out,
        Np=Np, Wp=Wp, margin=margin)

    y_flat = pl.pallas_call(
        kernel,
        out_shape=jax.ShapeDtypeStruct((n_out, B, Np), jnp.float32),
        grid=grid,
        in_specs=[x_spec, bias_spec, mask_spec] + [smem] * 6,
        out_specs=out_spec,
        scratch_shapes=[pltpu.VMEM((width, block_b, Mflat), jnp.float32)],
        compiler_params=pltpu.CompilerParams(
            dimension_semantics=("parallel",),
            vmem_limit_bytes=32 * 1024 * 1024,
        ),
    )(
        xflat, bias_flat, interior,
        w1f.reshape(-1), b1f,
        w2f.reshape(-1), b2f,
        w3f[:, :width].reshape(-1),
        gscale,
    )

    # Padded-flat coords -> (B, n_out, H, W); tanh gate already applied in-kernel.
    y = y_flat.reshape(n_out, B, Hp, Wp)[:, :, 1:H + 1, 1:W + 1]
    y = jnp.transpose(y, (1, 0, 2, 3))
    # TODO(synk): shift_only=True branch (return full y and zeros) not implemented.
    return y[:, :half], y[:, half:]


# ----------------------------- pure-JAX reference -----------------------------
def _conv_nchw(x, w, b, padding):
    y = lax.conv_general_dilated(
        x, w, window_strides=(1, 1), padding=padding,
        dimension_numbers=("NCHW", "OIHW", "NCHW"))
    return y + b[None, :, None, None]


def _reference(x, p, bn_eps=1e-5):
    s1 = p["bn1_gamma"] / jnp.sqrt(p["bn1_var"] + bn_eps)
    t1 = p["bn1_beta"] - p["bn1_mean"] * s1
    s2 = p["bn2_gamma"] / jnp.sqrt(p["bn2_var"] + bn_eps)
    t2 = p["bn2_beta"] - p["bn2_mean"] * s2

    h = _conv_nchw(x, p["w1"], p["b1"], [(1, 1), (1, 1)])
    h = jnp.maximum(h * s1[None, :, None, None] + t1[None, :, None, None], 0.0)
    h = _conv_nchw(h, p["w2"], p["b2"], [(0, 0), (0, 0)])
    h = jnp.maximum(h * s2[None, :, None, None] + t2[None, :, None, None], 0.0)

    hp = jnp.pad(h, ((0, 0), (0, 1), (1, 1), (1, 1)))
    hp = hp.at[:, 4, :1, :].set(1.0)
    hp = hp.at[:, 4, -1:, :].set(1.0)
    hp = hp.at[:, 4, :, :1].set(1.0)
    hp = hp.at[:, 4, :, -1:].set(1.0)

    y = _conv_nchw(hp, p["w3"], p["b3"], [(0, 0), (0, 0)])
    y = y * jnp.exp(3.0 * p["logs"])
    half = y.shape[1] // 2
    shift, ls_raw = y[:, :half], y[:, half:]
    return shift, p["scale"].reshape(()) * jnp.tanh(ls_raw)


if __name__ == "__main__":
    B, C_IN, H, W = 2, 2, 16, 16
    WIDTH, N_OUT = 4, 4

    key = jax.random.PRNGKey(0)
    ks = jax.random.split(key, 17)

    params = {
        "w1": 0.05 * jax.random.normal(ks[1], (WIDTH, C_IN, 3, 3), jnp.float32),
        "b1": 0.1 * jax.random.normal(ks[2], (WIDTH,), jnp.float32),
        "w2": 0.05 * jax.random.normal(ks[3], (WIDTH, WIDTH, 1, 1), jnp.float32),
        "b2": 0.1 * jax.random.normal(ks[4], (WIDTH,), jnp.float32),
        "w3": 0.05 * jax.random.normal(ks[5], (N_OUT, WIDTH + 1, 3, 3), jnp.float32),
        "b3": 0.1 * jax.random.normal(ks[6], (N_OUT,), jnp.float32),
        "logs": 0.1 * jax.random.normal(ks[7], (1, N_OUT, 1, 1), jnp.float32),
        "scale": jnp.full((1,), 0.5, jnp.float32),
        "bn1_gamma": 1.0 + 0.1 * jax.random.normal(ks[8], (WIDTH,), jnp.float32),
        "bn1_beta": 0.1 * jax.random.normal(ks[9], (WIDTH,), jnp.float32),
        "bn1_mean": 0.1 * jax.random.normal(ks[10], (WIDTH,), jnp.float32),
        "bn1_var": 1.0 + 0.2 * jax.random.uniform(ks[11], (WIDTH,), jnp.float32),
        "bn2_gamma": 1.0 + 0.1 * jax.random.normal(ks[12], (WIDTH,), jnp.float32),
        "bn2_beta": 0.1 * jax.random.normal(ks[13], (WIDTH,), jnp.float32),
        "bn2_mean": 0.1 * jax.random.normal(ks[14], (WIDTH,), jnp.float32),
        "bn2_var": 1.0 + 0.2 * jax.random.uniform(ks[15], (WIDTH,), jnp.float32),
    }
    x = jax.random.normal(ks[0], (B, C_IN, H, W), dtype=jnp.float32)

    shift, log_scale = shift_and_log_scale(x, params, width=WIDTH)
    shift, log_scale = jax.block_until_ready((shift, log_scale))

    ref_shift, ref_ls = _reference(x, params)
    assert shift.shape == (B, N_OUT // 2, H, W)
    assert log_scale.shape == (B, N_OUT // 2, H, W)
    assert jnp.allclose(shift, ref_shift, atol=2e-5, rtol=1e-4), \
        float(jnp.max(jnp.abs(shift - ref_shift)))
    assert jnp.allclose(log_scale, ref_ls, atol=2e-5, rtol=1e-4), \
        float(jnp.max(jnp.abs(log_scale - ref_ls)))
    print("KERNEL_OK")
</pallas_src>

<mosaic_0001>
module attributes {stable_mosaic.version = 11 : i64} {
  func.func @_shift_log_scale_kernel(%arg0: i32, %arg1: memref<2x2x362xf32, #tpu.memory_space<vmem>>, %arg2: memref<4x1x324xf32, #tpu.memory_space<vmem>>, %arg3: memref<1x324xf32, #tpu.memory_space<vmem>>, %arg4: memref<72xf32, #tpu.memory_space<smem>>, %arg5: memref<4xf32, #tpu.memory_space<smem>>, %arg6: memref<16xf32, #tpu.memory_space<smem>>, %arg7: memref<4xf32, #tpu.memory_space<smem>>, %arg8: memref<144xf32, #tpu.memory_space<smem>>, %arg9: memref<1xf32, #tpu.memory_space<smem>>, %arg10: memref<4x2x324xf32, #tpu.memory_space<vmem>>, %arg11: memref<4x2x362xf32, #tpu.memory_space<vmem>>) attributes {dimension_semantics = [#tpu.dimension_semantics<parallel>], iteration_bounds = array<i64: 1>, scalar_prefetch = 0 : i64, scratch_operands = 1 : i64, tpu.core_type = #tpu.core_type<tc>, window_params = [{transform_indices = @transform_0, window_bounds = array<i64: 2, 2, 362>}, {pipeline_mode = #tpu.pipeline_mode<synchronous>, transform_indices = @transform_1, window_bounds = array<i64: 4, 1, 324>}, {pipeline_mode = #tpu.pipeline_mode<synchronous>, transform_indices = @transform_2, window_bounds = array<i64: 1, 324>}, {transform_indices = @transform_3, window_bounds = array<i64: 72>}, {transform_indices = @transform_4, window_bounds = array<i64: 4>}, {transform_indices = @transform_5, window_bounds = array<i64: 16>}, {transform_indices = @transform_6, window_bounds = array<i64: 4>}, {transform_indices = @transform_7, window_bounds = array<i64: 144>}, {transform_indices = @transform_8, window_bounds = array<i64: 1>}, {transform_indices = @transform_9, window_bounds = array<i64: 4, 2, 324>}]} {
    %c0 = arith.constant 0 : index
    %c0_0 = arith.constant 0 : index
    %0 = vector.load %arg3[%c0, %c0_0] : memref<1x324xf32, #tpu.memory_space<vmem>>, vector<1x324xf32>
    %c0_1 = arith.constant 0 : index
    %c0_2 = arith.constant 0 : index
    %c0_3 = arith.constant 0 : index
    %1 = vector.load %arg1[%c0_1, %c0_2, %c0_3] : memref<2x2x362xf32, #tpu.memory_space<vmem>>, vector<1x2x324xf32>
    %2 = vector.shape_cast %1 : vector<1x2x324xf32> to vector<2x324xf32>
    %c0_4 = arith.constant 0 : index
    %3 = memref.load %arg4[%c0_4] : memref<72xf32, #tpu.memory_space<smem>>
    %4 = vector.broadcast %3 : f32 to vector<2x324xf32>
    %5 = arith.mulf %4, %2 : vector<2x324xf32>
    %c18 = arith.constant 18 : index
    %6 = memref.load %arg4[%c18] : memref<72xf32, #tpu.memory_space<smem>>
    %7 = vector.broadcast %6 : f32 to vector<2x324xf32>
    %8 = arith.mulf %7, %2 : vector<2x324xf32>
    %c36 = arith.constant 36 : index
    %9 = memref.load %arg4[%c36] : memref<72xf32, #tpu.memory_space<smem>>
    %10 = vector.broadcast %9 : f32 to vector<2x324xf32>
    %11 = arith.mulf %10, %2 : vector<2x324xf32>
    %c54 = arith.constant 54 : index
    %12 = memref.load %arg4[%c54] : memref<72xf32, #tpu.memory_space<smem>>
    %13 = vector.broadcast %12 : f32 to vector<2x324xf32>
    %14 = arith.mulf %13, %2 : vector<2x324xf32>
    %c0_5 = arith.constant 0 : index
    %c0_6 = arith.constant 0 : index
    %c1 = arith.constant 1 : index
    %15 = vector.load %arg1[%c0_5, %c0_6, %c1] : memref<2x2x362xf32, #tpu.memory_space<vmem>>, vector<1x2x324xf32>
    %16 = vector.shape_cast %15 : vector<1x2x324xf32> to vector<2x324xf32>
    %c1_7 = arith.constant 1 : index
    %17 = memref.load %arg4[%c1_7] : memref<72xf32, #tpu.memory_space<smem>>
    %18 = vector.broadcast %17 : f32 to vector<2x324xf32>
    %19 = arith.mulf %18, %16 : vector<2x324xf32>
    %20 = arith.addf %5, %19 : vector<2x324xf32>
    %c19 = arith.constant 19 : index
    %21 = memref.load %arg4[%c19] : memref<72xf32, #tpu.memory_space<smem>>
    %22 = vector.broadcast %21 : f32 to vector<2x324xf32>
    %23 = arith.mulf %22, %16 : vector<2x324xf32>
    %24 = arith.addf %8, %23 : vector<2x324xf32>
    %c37 = arith.constant 37 : index
    %25 = memref.load %arg4[%c37] : memref<72xf32, #tpu.memory_space<smem>>
    %26 = vector.broadcast %25 : f32 to vector<2x324xf32>
    %27 = arith.mulf %26, %16 : vector<2x324xf32>
    %28 = arith.addf %11, %27 : vector<2x324xf32>
    %c55 = arith.constant 55 : index
    %29 = memref.load %arg4[%c55] : memref<72xf32, #tpu.memory_space<smem>>
    %30 = vector.broadcast %29 : f32 to vector<2x324xf32>
    %31 = arith.mulf %30, %16 : vector<2x324xf32>
    %32 = arith.addf %14, %31 : vector<2x324xf32>
    %c0_8 = arith.constant 0 : index
    %c0_9 = arith.constant 0 : index
    %c2 = arith.constant 2 : index
    %33 = vector.load %arg1[%c0_8, %c0_9, %c2] : memref<2x2x362xf32, #tpu.memory_space<vmem>>, vector<1x2x324xf32>
    %34 = vector.shape_cast %33 : vector<1x2x324xf32> to vector<2x324xf32>
    %c2_10 = arith.constant 2 : index
    %35 = memref.load %arg4[%c2_10] : memref<72xf32, #tpu.memory_space<smem>>
    %36 = vector.broadcast %35 : f32 to vector<2x324xf32>
    %37 = arith.mulf %36, %34 : vector<2x324xf32>
    %38 = arith.addf %20, %37 : vector<2x324xf32>
    %c20 = arith.constant 20 : index
    %39 = memref.load %arg4[%c20] : memref<72xf32, #tpu.memory_space<smem>>
    %40 = vector.broadcast %39 : f32 to vector<2x324xf32>
    %41 = arith.mulf %40, %34 : vector<2x324xf32>
    %42 = arith.addf %24, %41 : vector<2x324xf32>
    %c38 = arith.constant 38 : index
    %43 = memref.load %arg4[%c38] : memref<72xf32, #tpu.memory_space<smem>>
    %44 = vector.broadcast %43 : f32 to vector<2x324xf32>
    %45 = arith.mulf %44, %34 : vector<2x324xf32>
    %46 = arith.addf %28, %45 : vector<2x324xf32>
    %c56 = arith.constant 56 : index
    %47 = memref.load %arg4[%c56] : memref<72xf32, #tpu.memory_space<smem>>
    %48 = vector.broadcast %47 : f32 to vector<2x324xf32>
    %49 = arith.mulf %48, %34 : vector<2x324xf32>
    %50 = arith.addf %32, %49 : vector<2x324xf32>
    %c0_11 = arith.constant 0 : index
    %c0_12 = arith.constant 0 : index
    %c18_13 = arith.constant 18 : index
    %51 = vector.load %arg1[%c0_11, %c0_12, %c18_13] : memref<2x2x362xf32, #tpu.memory_space<vmem>>, vector<1x2x324xf32>
    %52 = vector.shape_cast %51 : vector<1x2x324xf32> to vector<2x324xf32>
    %c3 = arith.constant 3 : index
    %53 = memref.load %arg4[%c3] : memref<72xf32, #tpu.memory_space<smem>>
    %54 = vector.broadcast %53 : f32 to vector<2x324xf32>
    %55 = arith.mulf %54, %52 : vector<2x324xf32>
    %56 = arith.addf %38, %55 : vector<2x324xf32>
    %c21 = arith.constant 21 : index
    %57 = memref.load %arg4[%c21] : memref<72xf32, #tpu.memory_space<smem>>
    %58 = vector.broadcast %57 : f32 to vector<2x324xf32>
    %59 = arith.mulf %58, %52 : vector<2x324xf32>
    %60 = arith.addf %42, %59 : vector<2x324xf32>
    %c39 = arith.constant 39 : index
    %61 = memref.load %arg4[%c39] : memref<72xf32, #tpu.memory_space<smem>>
    %62 = vector.broadcast %61 : f32 to vector<2x324xf32>
    %63 = arith.mulf %62, %52 : vector<2x324xf32>
    %64 = arith.addf %46, %63 : vector<2x324xf32>
    %c57 = arith.constant 57 : index
    %65 = memref.load %arg4[%c57] : memref<72xf32, #tpu.memory_space<smem>>
    %66 = vector.broadcast %65 : f32 to vector<2x324xf32>
    %67 = arith.mulf %66, %52 : vector<2x324xf32>
    %68 = arith.addf %50, %67 : vector<2x324xf32>
    %c0_14 = arith.constant 0 : index
    %c0_15 = arith.constant 0 : index
    %c19_16 = arith.constant 19 : index
    %69 = vector.load %arg1[%c0_14, %c0_15, %c19_16] : memref<2x2x362xf32, #tpu.memory_space<vmem>>, vector<1x2x324xf32>
    %70 = vector.shape_cast %69 : vector<1x2x324xf32> to vector<2x324xf32>
    %c4 = arith.constant 4 : index
    %71 = memref.load %arg4[%c4] : memref<72xf32, #tpu.memory_space<smem>>
    %72 = vector.broadcast %71 : f32 to vector<2x324xf32>
    %73 = arith.mulf %72, %70 : vector<2x324xf32>
    %74 = arith.addf %56, %73 : vector<2x324xf32>
    %c22 = arith.constant 22 : index
    %75 = memref.load %arg4[%c22] : memref<72xf32, #tpu.memory_space<smem>>
    %76 = vector.broadcast %75 : f32 to vector<2x324xf32>
    %77 = arith.mulf %76, %70 : vector<2x324xf32>
    %78 = arith.addf %60, %77 : vector<2x324xf32>
    %c40 = arith.constant 40 : index
    %79 = memref.load %arg4[%c40] : memref<72xf32, #tpu.memory_space<smem>>
    %80 = vector.broadcast %79 : f32 to vector<2x324xf32>
    %81 = arith.mulf %80, %70 : vector<2x324xf32>
    %82 = arith.addf %64, %81 : vector<2x324xf32>
    %c58 = arith.constant 58 : index
    %83 = memref.load %arg4[%c58] : memref<72xf32, #tpu.memory_space<smem>>
    %84 = vector.broadcast %83 : f32 to vector<2x324xf32>
    %85 = arith.mulf %84, %70 : vector<2x324xf32>
    %86 = arith.addf %68, %85 : vector<2x324xf32>
    %c0_17 = arith.constant 0 : index
    %c0_18 = arith.constant 0 : index
    %c20_19 = arith.constant 20 : index
    %87 = vector.load %arg1[%c0_17, %c0_18, %c20_19] : memref<2x2x362xf32, #tpu.memory_space<vmem>>, vector<1x2x324xf32>
    %88 = vector.shape_cast %87 : vector<1x2x324xf32> to vector<2x324xf32>
    %c5 = arith.constant 5 : index
    %89 = memref.load %arg4[%c5] : memref<72xf32, #tpu.memory_space<smem>>
    %90 = vector.broadcast %89 : f32 to vector<2x324xf32>
    %91 = arith.mulf %90, %88 : vector<2x324xf32>
    %92 = arith.addf %74, %91 : vector<2x324xf32>
    %c23 = arith.constant 23 : index
    %93 = memref.load %arg4[%c23] : memref<72xf32, #tpu.memory_space<smem>>
    %94 = vector.broadcast %93 : f32 to vector<2x324xf32>
    %95 = arith.mulf %94, %88 : vector<2x324xf32>
    %96 = arith.addf %78, %95 : vector<2x324xf32>
    %c41 = arith.constant 41 : index
    %97 = memref.load %arg4[%c41] : memref<72xf32, #tpu.memory_space<smem>>
    %98 = vector.broadcast %97 : f32 to vector<2x324xf32>
    %99 = arith.mulf %98, %88 : vector<2x324xf32>
    %100 = arith.addf %82, %99 : vector<2x324xf32>
    %c59 = arith.constant 59 : index
    %101 = memref.load %arg4[%c59] : memref<72xf32, #tpu.memory_space<smem>>
    %102 = vector.broadcast %101 : f32 to vector<2x324xf32>
    %103 = arith.mulf %102, %88 : vector<2x324xf32>
    %104 = arith.addf %86, %103 : vector<2x324xf32>
    %c0_20 = arith.constant 0 : index
    %c0_21 = arith.constant 0 : index
    %c36_22 = arith.constant 36 : index
    %105 = vector.load %arg1[%c0_20, %c0_21, %c36_22] : memref<2x2x362xf32, #tpu.memory_space<vmem>>, vector<1x2x324xf32>
    %106 = vector.shape_cast %105 : vector<1x2x324xf32> to vector<2x324xf32>
    %c6 = arith.constant 6 : index
    %107 = memref.load %arg4[%c6] : memref<72xf32, #tpu.memory_space<smem>>
    %108 = vector.broadcast %107 : f32 to vector<2x324xf32>
    %109 = arith.mulf %108, %106 : vector<2x324xf32>
    %110 = arith.addf %92, %109 : vector<2x324xf32>
    %c24 = arith.constant 24 : index
    %111 = memref.load %arg4[%c24] : memref<72xf32, #tpu.memory_space<smem>>
    %112 = vector.broadcast %111 : f32 to vector<2x324xf32>
    %113 = arith.mulf %112, %106 : vector<2x324xf32>
    %114 = arith.addf %96, %113 : vector<2x324xf32>
    %c42 = arith.constant 42 : index
    %115 = memref.load %arg4[%c42] : memref<72xf32, #tpu.memory_space<smem>>
    %116 = vector.broadcast %115 : f32 to vector<2x324xf32>
    %117 = arith.mulf %116, %106 : vector<2x324xf32>
    %118 = arith.addf %100, %117 : vector<2x324xf32>
    %c60 = arith.constant 60 : index
    %119 = memref.load %arg4[%c60] : memref<72xf32, #tpu.memory_space<smem>>
    %120 = vector.broadcast %119 : f32 to vector<2x324xf32>
    %121 = arith.mulf %120, %106 : vector<2x324xf32>
    %122 = arith.addf %104, %121 : vector<2x324xf32>
    %c0_23 = arith.constant 0 : index
    %c0_24 = arith.constant 0 : index
    %c37_25 = arith.constant 37 : index
    %123 = vector.load %arg1[%c0_23, %c0_24, %c37_25] : memref<2x2x362xf32, #tpu.memory_space<vmem>>, vector<1x2x324xf32>
    %124 = vector.shape_cast %123 : vector<1x2x324xf32> to vector<2x324xf32>
    %c7 = arith.constant 7 : index
    %125 = memref.load %arg4[%c7] : memref<72xf32, #tpu.memory_space<smem>>
    %126 = vector.broadcast %125 : f32 to vector<2x324xf32>
    %127 = arith.mulf %126, %124 : vector<2x324xf32>
    %128 = arith.addf %110, %127 : vector<2x324xf32>
    %c25 = arith.constant 25 : index
    %129 = memref.load %arg4[%c25] : memref<72xf32, #tpu.memory_space<smem>>
    %130 = vector.broadcast %129 : f32 to vector<2x324xf32>
    %131 = arith.mulf %130, %124 : vector<2x324xf32>
    %132 = arith.addf %114, %131 : vector<2x324xf32>
    %c43 = arith.constant 43 : index
    %133 = memref.load %arg4[%c43] : memref<72xf32, #tpu.memory_space<smem>>
    %134 = vector.broadcast %133 : f32 to vector<2x324xf32>
    %135 = arith.mulf %134, %124 : vector<2x324xf32>
    %136 = arith.addf %118, %135 : vector<2x324xf32>
    %c61 = arith.constant 61 : index
    %137 = memref.load %arg4[%c61] : memref<72xf32, #tpu.memory_space<smem>>
    %138 = vector.broadcast %137 : f32 to vector<2x324xf32>
    %139 = arith.mulf %138, %124 : vector<2x324xf32>
    %140 = arith.addf %122, %139 : vector<2x324xf32>
    %c0_26 = arith.constant 0 : index
    %c0_27 = arith.constant 0 : index
    %c38_28 = arith.constant 38 : index
    %141 = vector.load %arg1[%c0_26, %c0_27, %c38_28] : memref<2x2x362xf32, #tpu.memory_space<vmem>>, vector<1x2x324xf32>
    %142 = vector.shape_cast %141 : vector<1x2x324xf32> to vector<2x324xf32>
    %c8 = arith.constant 8 : index
    %143 = memref.load %arg4[%c8] : memref<72xf32, #tpu.memory_space<smem>>
    %144 = vector.broadcast %143 : f32 to vector<2x324xf32>
    %145 = arith.mulf %144, %142 : vector<2x324xf32>
    %146 = arith.addf %128, %145 : vector<2x324xf32>
    %c26 = arith.constant 26 : index
    %147 = memref.load %arg4[%c26] : memref<72xf32, #tpu.memory_space<smem>>
    %148 = vector.broadcast %147 : f32 to vector<2x324xf32>
    %149 = arith.mulf %148, %142 : vector<2x324xf32>
    %150 = arith.addf %132, %149 : vector<2x324xf32>
    %c44 = arith.constant 44 : index
    %151 = memref.load %arg4[%c44] : memref<72xf32, #tpu.memory_space<smem>>
    %152 = vector.broadcast %151 : f32 to vector<2x324xf32>
    %153 = arith.mulf %152, %142 : vector<2x324xf32>
    %154 = arith.addf %136, %153 : vector<2x324xf32>
    %c62 = arith.constant 62 : index
    %155 = memref.load %arg4[%c62] : memref<72xf32, #tpu.memory_space<smem>>
    %156 = vector.broadcast %155 : f32 to vector<2x324xf32>
    %157 = arith.mulf %156, %142 : vector<2x324xf32>
    %158 = arith.addf %140, %157 : vector<2x324xf32>
    %c1_29 = arith.constant 1 : index
    %c0_30 = arith.constant 0 : index
    %c0_31 = arith.constant 0 : index
    %159 = vector.load %arg1[%c1_29, %c0_30, %c0_31] : memref<2x2x362xf32, #tpu.memory_space<vmem>>, vector<1x2x324xf32>
    %160 = vector.shape_cast %159 : vector<1x2x324xf32> to vector<2x324xf32>
    %c9 = arith.constant 9 : index
    %161 = memref.load %arg4[%c9] : memref<72xf32, #tpu.memory_space<smem>>
    %162 = vector.broadcast %161 : f32 to vector<2x324xf32>
    %163 = arith.mulf %162, %160 : vector<2x324xf32>
    %164 = arith.addf %146, %163 : vector<2x324xf32>
    %c27 = arith.constant 27 : index
    %165 = memref.load %arg4[%c27] : memref<72xf32, #tpu.memory_space<smem>>
    %166 = vector.broadcast %165 : f32 to vector<2x324xf32>
    %167 = arith.mulf %166, %160 : vector<2x324xf32>
    %168 = arith.addf %150, %167 : vector<2x324xf32>
    %c45 = arith.constant 45 : index
    %169 = memref.load %arg4[%c45] : memref<72xf32, #tpu.memory_space<smem>>
    %170 = vector.broadcast %169 : f32 to vector<2x324xf32>
    %171 = arith.mulf %170, %160 : vector<2x324xf32>
    %172 = arith.addf %154, %171 : vector<2x324xf32>
    %c63 = arith.constant 63 : index
    %173 = memref.load %arg4[%c63] : memref<72xf32, #tpu.memory_space<smem>>
    %174 = vector.broadcast %173 : f32 to vector<2x324xf32>
    %175 = arith.mulf %174, %160 : vector<2x324xf32>
    %176 = arith.addf %158, %175 : vector<2x324xf32>
    %c1_32 = arith.constant 1 : index
    %c0_33 = arith.constant 0 : index
    %c1_34 = arith.constant 1 : index
    %177 = vector.load %arg1[%c1_32, %c0_33, %c1_34] : memref<2x2x362xf32, #tpu.memory_space<vmem>>, vector<1x2x324xf32>
    %178 = vector.shape_cast %177 : vector<1x2x324xf32> to vector<2x324xf32>
    %c10 = arith.constant 10 : index
    %179 = memref.load %arg4[%c10] : memref<72xf32, #tpu.memory_space<smem>>
    %180 = vector.broadcast %179 : f32 to vector<2x324xf32>
    %181 = arith.mulf %180, %178 : vector<2x324xf32>
    %182 = arith.addf %164, %181 : vector<2x324xf32>
    %c28 = arith.constant 28 : index
    %183 = memref.load %arg4[%c28] : memref<72xf32, #tpu.memory_space<smem>>
    %184 = vector.broadcast %183 : f32 to vector<2x324xf32>
    %185 = arith.mulf %184, %178 : vector<2x324xf32>
    %186 = arith.addf %168, %185 : vector<2x324xf32>
    %c46 = arith.constant 46 : index
    %187 = memref.load %arg4[%c46] : memref<72xf32, #tpu.memory_space<smem>>
    %188 = vector.broadcast %187 : f32 to vector<2x324xf32>
    %189 = arith.mulf %188, %178 : vector<2x324xf32>
    %190 = arith.addf %172, %189 : vector<2x324xf32>
    %c64 = arith.constant 64 : index
    %191 = memref.load %arg4[%c64] : memref<72xf32, #tpu.memory_space<smem>>
    %192 = vector.broadcast %191 : f32 to vector<2x324xf32>
    %193 = arith.mulf %192, %178 : vector<2x324xf32>
    %194 = arith.addf %176, %193 : vector<2x324xf32>
    %c1_35 = arith.constant 1 : index
    %c0_36 = arith.constant 0 : index
    %c2_37 = arith.constant 2 : index
    %195 = vector.load %arg1[%c1_35, %c0_36, %c2_37] : memref<2x2x362xf32, #tpu.memory_space<vmem>>, vector<1x2x324xf32>
    %196 = vector.shape_cast %195 : vector<1x2x324xf32> to vector<2x324xf32>
    %c11 = arith.constant 11 : index
    %197 = memref.load %arg4[%c11] : memref<72xf32, #tpu.memory_space<smem>>
    %198 = vector.broadcast %197 : f32 to vector<2x324xf32>
    %199 = arith.mulf %198, %196 : vector<2x324xf32>
    %200 = arith.addf %182, %199 : vector<2x324xf32>
    %c29 = arith.constant 29 : index
    %201 = memref.load %arg4[%c29] : memref<72xf32, #tpu.memory_space<smem>>
    %202 = vector.broadcast %201 : f32 to vector<2x324xf32>
    %203 = arith.mulf %202, %196 : vector<2x324xf32>
    %204 = arith.addf %186, %203 : vector<2x324xf32>
    %c47 = arith.constant 47 : index
    %205 = memref.load %arg4[%c47] : memref<72xf32, #tpu.memory_space<smem>>
    %206 = vector.broadcast %205 : f32 to vector<2x324xf32>
    %207 = arith.mulf %206, %196 : vector<2x324xf32>
    %208 = arith.addf %190, %207 : vector<2x324xf32>
    %c65 = arith.constant 65 : index
    %209 = memref.load %arg4[%c65] : memref<72xf32, #tpu.memory_space<smem>>
    %210 = vector.broadcast %209 : f32 to vector<2x324xf32>
    %211 = arith.mulf %210, %196 : vector<2x324xf32>
    %212 = arith.addf %194, %211 : vector<2x324xf32>
    %c1_38 = arith.constant 1 : index
    %c0_39 = arith.constant 0 : index
    %c18_40 = arith.constant 18 : index
    %213 = vector.load %arg1[%c1_38, %c0_39, %c18_40] : memref<2x2x362xf32, #tpu.memory_space<vmem>>, vector<1x2x324xf32>
    %214 = vector.shape_cast %213 : vector<1x2x324xf32> to vector<2x324xf32>
    %c12 = arith.constant 12 : index
    %215 = memref.load %arg4[%c12] : memref<72xf32, #tpu.memory_space<smem>>
    %216 = vector.broadcast %215 : f32 to vector<2x324xf32>
    %217 = arith.mulf %216, %214 : vector<2x324xf32>
    %218 = arith.addf %200, %217 : vector<2x324xf32>
    %c30 = arith.constant 30 : index
    %219 = memref.load %arg4[%c30] : memref<72xf32, #tpu.memory_space<smem>>
    %220 = vector.broadcast %219 : f32 to vector<2x324xf32>
    %221 = arith.mulf %220, %214 : vector<2x324xf32>
    %222 = arith.addf %204, %221 : vector<2x324xf32>
    %c48 = arith.constant 48 : index
    %223 = memref.load %arg4[%c48] : memref<72xf32, #tpu.memory_space<smem>>
    %224 = vector.broadcast %223 : f32 to vector<2x324xf32>
    %225 = arith.mulf %224, %214 : vector<2x324xf32>
    %226 = arith.addf %208, %225 : vector<2x324xf32>
    %c66 = arith.constant 66 : index
    %227 = memref.load %arg4[%c66] : memref<72xf32, #tpu.memory_space<smem>>
    %228 = vector.broadcast %227 : f32 to vector<2x324xf32>
    %229 = arith.mulf %228, %214 : vector<2x324xf32>
    %230 = arith.addf %212, %229 : vector<2x324xf32>
    %c1_41 = arith.constant 1 : index
    %c0_42 = arith.constant 0 : index
    %c19_43 = arith.constant 19 : index
    %231 = vector.load %arg1[%c1_41, %c0_42, %c19_43] : memref<2x2x362xf32, #tpu.memory_space<vmem>>, vector<1x2x324xf32>
    %232 = vector.shape_cast %231 : vector<1x2x324xf32> to vector<2x324xf32>
    %c13 = arith.constant 13 : index
    %233 = memref.load %arg4[%c13] : memref<72xf32, #tpu.memory_space<smem>>
    %234 = vector.broadcast %233 : f32 to vector<2x324xf32>
    %235 = arith.mulf %234, %232 : vector<2x324xf32>
    %236 = arith.addf %218, %235 : vector<2x324xf32>
    %c31 = arith.constant 31 : index
    %237 = memref.load %arg4[%c31] : memref<72xf32, #tpu.memory_space<smem>>
    %238 = vector.broadcast %237 : f32 to vector<2x324xf32>
    %239 = arith.mulf %238, %232 : vector<2x324xf32>
    %240 = arith.addf %222, %239 : vector<2x324xf32>
    %c49 = arith.constant 49 : index
    %241 = memref.load %arg4[%c49] : memref<72xf32, #tpu.memory_space<smem>>
    %242 = vector.broadcast %241 : f32 to vector<2x324xf32>
    %243 = arith.mulf %242, %232 : vector<2x324xf32>
    %244 = arith.addf %226, %243 : vector<2x324xf32>
    %c67 = arith.constant 67 : index
    %245 = memref.load %arg4[%c67] : memref<72xf32, #tpu.memory_space<smem>>
    %246 = vector.broadcast %245 : f32 to vector<2x324xf32>
    %247 = arith.mulf %246, %232 : vector<2x324xf32>
    %248 = arith.addf %230, %247 : vector<2x324xf32>
    %c1_44 = arith.constant 1 : index
    %c0_45 = arith.constant 0 : index
    %c20_46 = arith.constant 20 : index
    %249 = vector.load %arg1[%c1_44, %c0_45, %c20_46] : memref<2x2x362xf32, #tpu.memory_space<vmem>>, vector<1x2x324xf32>
    %250 = vector.shape_cast %249 : vector<1x2x324xf32> to vector<2x324xf32>
    %c14 = arith.constant 14 : index
    %251 = memref.load %arg4[%c14] : memref<72xf32, #tpu.memory_space<smem>>
    %252 = vector.broadcast %251 : f32 to vector<2x324xf32>
    %253 = arith.mulf %252, %250 : vector<2x324xf32>
    %254 = arith.addf %236, %253 : vector<2x324xf32>
    %c32 = arith.constant 32 : index
    %255 = memref.load %arg4[%c32] : memref<72xf32, #tpu.memory_space<smem>>
    %256 = vector.broadcast %255 : f32 to vector<2x324xf32>
    %257 = arith.mulf %256, %250 : vector<2x324xf32>
    %258 = arith.addf %240, %257 : vector<2x324xf32>
    %c50 = arith.constant 50 : index
    %259 = memref.load %arg4[%c50] : memref<72xf32, #tpu.memory_space<smem>>
    %260 = vector.broadcast %259 : f32 to vector<2x324xf32>
    %261 = arith.mulf %260, %250 : vector<2x324xf32>
    %262 = arith.addf %244, %261 : vector<2x324xf32>
    %c68 = arith.constant 68 : index
    %263 = memref.load %arg4[%c68] : memref<72xf32, #tpu.memory_space<smem>>
    %264 = vector.broadcast %263 : f32 to vector<2x324xf32>
    %265 = arith.mulf %264, %250 : vector<2x324xf32>
    %266 = arith.addf %248, %265 : vector<2x324xf32>
    %c1_47 = arith.constant 1 : index
    %c0_48 = arith.constant 0 : index
    %c36_49 = arith.constant 36 : index
    %267 = vector.load %arg1[%c1_47, %c0_48, %c36_49] : memref<2x2x362xf32, #tpu.memory_space<vmem>>, vector<1x2x324xf32>
    %268 = vector.shape_cast %267 : vector<1x2x324xf32> to vector<2x324xf32>
    %c15 = arith.constant 15 : index
    %269 = memref.load %arg4[%c15] : memref<72xf32, #tpu.memory_space<smem>>
    %270 = vector.broadcast %269 : f32 to vector<2x324xf32>
    %271 = arith.mulf %270, %268 : vector<2x324xf32>
    %272 = arith.addf %254, %271 : vector<2x324xf32>
    %c33 = arith.constant 33 : index
    %273 = memref.load %arg4[%c33] : memref<72xf32, #tpu.memory_space<smem>>
    %274 = vector.broadcast %273 : f32 to vector<2x324xf32>
    %275 = arith.mulf %274, %268 : vector<2x324xf32>
    %276 = arith.addf %258, %275 : vector<2x324xf32>
    %c51 = arith.constant 51 : index
    %277 = memref.load %arg4[%c51] : memref<72xf32, #tpu.memory_space<smem>>
    %278 = vector.broadcast %277 : f32 to vector<2x324xf32>
    %279 = arith.mulf %278, %268 : vector<2x324xf32>
    %280 = arith.addf %262, %279 : vector<2x324xf32>
    %c69 = arith.constant 69 : index
    %281 = memref.load %arg4[%c69] : memref<72xf32, #tpu.memory_space<smem>>
    %282 = vector.broadcast %281 : f32 to vector<2x324xf32>
    %283 = arith.mulf %282, %268 : vector<2x324xf32>
    %284 = arith.addf %266, %283 : vector<2x324xf32>
    %c1_50 = arith.constant 1 : index
    %c0_51 = arith.constant 0 : index
    %c37_52 = arith.constant 37 : index
    %285 = vector.load %arg1[%c1_50, %c0_51, %c37_52] : memref<2x2x362xf32, #tpu.memory_space<vmem>>, vector<1x2x324xf32>
    %286 = vector.shape_cast %285 : vector<1x2x324xf32> to vector<2x324xf32>
    %c16 = arith.constant 16 : index
    %287 = memref.load %arg4[%c16] : memref<72xf32, #tpu.memory_space<smem>>
    %288 = vector.broadcast %287 : f32 to vector<2x324xf32>
    %289 = arith.mulf %288, %286 : vector<2x324xf32>
    %290 = arith.addf %272, %289 : vector<2x324xf32>
    %c34 = arith.constant 34 : index
    %291 = memref.load %arg4[%c34] : memref<72xf32, #tpu.memory_space<smem>>
    %292 = vector.broadcast %291 : f32 to vector<2x324xf32>
    %293 = arith.mulf %292, %286 : vector<2x324xf32>
    %294 = arith.addf %276, %293 : vector<2x324xf32>
    %c52 = arith.constant 52 : index
    %295 = memref.load %arg4[%c52] : memref<72xf32, #tpu.memory_space<smem>>
    %296 = vector.broadcast %295 : f32 to vector<2x324xf32>
    %297 = arith.mulf %296, %286 : vector<2x324xf32>
    %298 = arith.addf %280, %297 : vector<2x324xf32>
    %c70 = arith.constant 70 : index
    %299 = memref.load %arg4[%c70] : memref<72xf32, #tpu.memory_space<smem>>
    %300 = vector.broadcast %299 : f32 to vector<2x324xf32>
    %301 = arith.mulf %300, %286 : vector<2x324xf32>
    %302 = arith.addf %284, %301 : vector<2x324xf32>
    %c1_53 = arith.constant 1 : index
    %c0_54 = arith.constant 0 : index
    %c38_55 = arith.constant 38 : index
    %303 = vector.load %arg1[%c1_53, %c0_54, %c38_55] : memref<2x2x362xf32, #tpu.memory_space<vmem>>, vector<1x2x324xf32>
    %304 = vector.shape_cast %303 : vector<1x2x324xf32> to vector<2x324xf32>
    %c17 = arith.constant 17 : index
    %305 = memref.load %arg4[%c17] : memref<72xf32, #tpu.memory_space<smem>>
    %306 = vector.broadcast %305 : f32 to vector<2x324xf32>
    %307 = arith.mulf %306, %304 : vector<2x324xf32>
    %308 = arith.addf %290, %307 : vector<2x324xf32>
    %c35 = arith.constant 35 : index
    %309 = memref.load %arg4[%c35] : memref<72xf32, #tpu.memory_space<smem>>
    %310 = vector.broadcast %309 : f32 to vector<2x324xf32>
    %311 = arith.mulf %310, %304 : vector<2x324xf32>
    %312 = arith.addf %294, %311 : vector<2x324xf32>
    %c53 = arith.constant 53 : index
    %313 = memref.load %arg4[%c53] : memref<72xf32, #tpu.memory_space<smem>>
    %314 = vector.broadcast %313 : f32 to vector<2x324xf32>
    %315 = arith.mulf %314, %304 : vector<2x324xf32>
    %316 = arith.addf %298, %315 : vector<2x324xf32>
    %c71 = arith.constant 71 : index
    %317 = memref.load %arg4[%c71] : memref<72xf32, #tpu.memory_space<smem>>
    %318 = vector.broadcast %317 : f32 to vector<2x324xf32>
    %319 = arith.mulf %318, %304 : vector<2x324xf32>
    %320 = arith.addf %302, %319 : vector<2x324xf32>
    %c0_56 = arith.constant 0 : index
    %321 = memref.load %arg5[%c0_56] : memref<4xf32, #tpu.memory_space<smem>>
    %322 = vector.broadcast %321 : f32 to vector<2x324xf32>
    %323 = arith.addf %308, %322 : vector<2x324xf32>
    %cst = arith.constant 0.000000e+00 : f32
    %324 = vector.broadcast %cst : f32 to vector<2x324xf32>
    %325 = arith.maximumf %323, %324 : vector<2x324xf32>
    %c1_57 = arith.constant 1 : index
    %326 = memref.load %arg5[%c1_57] : memref<4xf32, #tpu.memory_space<smem>>
    %327 = vector.broadcast %326 : f32 to vector<2x324xf32>
    %328 = arith.addf %312, %327 : vector<2x324xf32>
    %cst_58 = arith.constant 0.000000e+00 : f32
    %329 = vector.broadcast %cst_58 : f32 to vector<2x324xf32>
    %330 = arith.maximumf %328, %329 : vector<2x324xf32>
    %c2_59 = arith.constant 2 : index
    %331 = memref.load %arg5[%c2_59] : memref<4xf32, #tpu.memory_space<smem>>
    %332 = vector.broadcast %331 : f32 to vector<2x324xf32>
    %333 = arith.addf %316, %332 : vector<2x324xf32>
    %cst_60 = arith.constant 0.000000e+00 : f32
    %334 = vector.broadcast %cst_60 : f32 to vector<2x324xf32>
    %335 = arith.maximumf %333, %334 : vector<2x324xf32>
    %c3_61 = arith.constant 3 : index
    %336 = memref.load %arg5[%c3_61] : memref<4xf32, #tpu.memory_space<smem>>
    %337 = vector.broadcast %336 : f32 to vector<2x324xf32>
    %338 = arith.addf %320, %337 : vector<2x324xf32>
    %cst_62 = arith.constant 0.000000e+00 : f32
    %339 = vector.broadcast %cst_62 : f32 to vector<2x324xf32>
    %340 = arith.maximumf %338, %339 : vector<2x324xf32>
    %cst_63 = arith.constant 0.000000e+00 : f32
    %341 = vector.broadcast %cst_63 : f32 to vector<4x2x19xf32>
    %c0_64 = arith.constant 0 : index
    %c0_65 = arith.constant 0 : index
    %c0_66 = arith.constant 0 : index
    %342 = vector.load %arg11[%c0_64, %c0_65, %c0_66] : memref<4x2x362xf32, #tpu.memory_space<vmem>>, vector<4x2x19xf32>
    tpu.vector_store %arg11[%c0_64, %c0_65, %c0_66], %341 {strides = array<i32>} : memref<4x2x362xf32, #tpu.memory_space<vmem>>, vector<4x2x19xf32>,
    %cst_67 = arith.constant 0.000000e+00 : f32
    %343 = vector.broadcast %cst_67 : f32 to vector<4x2x19xf32>
    %c0_68 = arith.constant 0 : index
    %c0_69 = arith.constant 0 : index
    %c343 = arith.constant 343 : index
    %344 = vector.load %arg11[%c0_68, %c0_69, %c343] : memref<4x2x362xf32, #tpu.memory_space<vmem>>, vector<4x2x19xf32>
    tpu.vector_store %arg11[%c0_68, %c0_69, %c343], %343 {strides = array<i32>} : memref<4x2x362xf32, #tpu.memory_space<vmem>>, vector<4x2x19xf32>,
    %c0_70 = arith.constant 0 : index
    %345 = memref.load %arg6[%c0_70] : memref<16xf32, #tpu.memory_space<smem>>
    %346 = vector.broadcast %345 : f32 to vector<2x324xf32>
    %347 = arith.mulf %346, %325 : vector<2x324xf32>
    %c1_71 = arith.constant 1 : index
    %348 = memref.load %arg6[%c1_71] : memref<16xf32, #tpu.memory_space<smem>>
    %349 = vector.broadcast %348 : f32 to vector<2x324xf32>
    %350 = arith.mulf %349, %330 : vector<2x324xf32>
    %351 = arith.addf %347, %350 : vector<2x324xf32>
    %c2_72 = arith.constant 2 : index
    %352 = memref.load %arg6[%c2_72] : memref<16xf32, #tpu.memory_space<smem>>
    %353 = vector.broadcast %352 : f32 to vector<2x324xf32>
    %354 = arith.mulf %353, %335 : vector<2x324xf32>
    %355 = arith.addf %351, %354 : vector<2x324xf32>
    %c3_73 = arith.constant 3 : index
    %356 = memref.load %arg6[%c3_73] : memref<16xf32, #tpu.memory_space<smem>>
    %357 = vector.broadcast %356 : f32 to vector<2x324xf32>
    %358 = arith.mulf %357, %340 : vector<2x324xf32>
    %359 = arith.addf %355, %358 : vector<2x324xf32>
    %c0_74 = arith.constant 0 : index
    %360 = memref.load %arg7[%c0_74] : memref<4xf32, #tpu.memory_space<smem>>
    %361 = vector.broadcast %360 : f32 to vector<2x324xf32>
    %362 = arith.addf %359, %361 : vector<2x324xf32>
    %cst_75 = arith.constant 0.000000e+00 : f32
    %363 = vector.broadcast %cst_75 : f32 to vector<2x324xf32>
    %364 = arith.maximumf %362, %363 : vector<2x324xf32>
    %365 = vector.broadcast %0 : vector<1x324xf32> to vector<2x324xf32>
    %366 = arith.mulf %364, %365 : vector<2x324xf32>
    %c0_76 = arith.constant 0 : index
    %c0_77 = arith.constant 0 : index
    %c19_78 = arith.constant 19 : index
    %367 = vector.load %arg11[%c0_76, %c0_77, %c19_78] : memref<4x2x362xf32, #tpu.memory_space<vmem>>, vector<1x2x324xf32>
    %368 = vector.shape_cast %367 : vector<1x2x324xf32> to vector<2x324xf32>
    %369 = vector.shape_cast %366 : vector<2x324xf32> to vector<1x2x324xf32>
    tpu.vector_store %arg11[%c0_76, %c0_77, %c19_78], %369 {strides = array<i32>} : memref<4x2x362xf32, #tpu.memory_space<vmem>>, vector<1x2x324xf32>,
    %c4_79 = arith.constant 4 : index
    %370 = memref.load %arg6[%c4_79] : memref<16xf32, #tpu.memory_space<smem>>
    %371 = vector.broadcast %370 : f32 to vector<2x324xf32>
    %372 = arith.mulf %371, %325 : vector<2x324xf32>
    %c5_80 = arith.constant 5 : index
    %373 = memref.load %arg6[%c5_80] : memref<16xf32, #tpu.memory_space<smem>>
    %374 = vector.broadcast %373 : f32 to vector<2x324xf32>
    %375 = arith.mulf %374, %330 : vector<2x324xf32>
    %376 = arith.addf %372, %375 : vector<2x324xf32>
    %c6_81 = arith.constant 6 : index
    %377 = memref.load %arg6[%c6_81] : memref<16xf32, #tpu.memory_space<smem>>
    %378 = vector.broadcast %377 : f32 to vector<2x324xf32>
    %379 = arith.mulf %378, %335 : vector<2x324xf32>
    %380 = arith.addf %376, %379 : vector<2x324xf32>
    %c7_82 = arith.constant 7 : index
    %381 = memref.load %arg6[%c7_82] : memref<16xf32, #tpu.memory_space<smem>>
    %382 = vector.broadcast %381 : f32 to vector<2x324xf32>
    %383 = arith.mulf %382, %340 : vector<2x324xf32>
    %384 = arith.addf %380, %383 : vector<2x324xf32>
    %c1_83 = arith.constant 1 : index
    %385 = memref.load %arg7[%c1_83] : memref<4xf32, #tpu.memory_space<smem>>
    %386 = vector.broadcast %385 : f32 to vector<2x324xf32>
    %387 = arith.addf %384, %386 : vector<2x324xf32>
    %cst_84 = arith.constant 0.000000e+00 : f32
    %388 = vector.broadcast %cst_84 : f32 to vector<2x324xf32>
    %389 = arith.maximumf %387, %388 : vector<2x324xf32>
    %390 = vector.broadcast %0 : vector<1x324xf32> to vector<2x324xf32>
    %391 = arith.mulf %389, %390 : vector<2x324xf32>
    %c1_85 = arith.constant 1 : index
    %c0_86 = arith.constant 0 : index
    %c19_87 = arith.constant 19 : index
    %392 = vector.load %arg11[%c1_85, %c0_86, %c19_87] : memref<4x2x362xf32, #tpu.memory_space<vmem>>, vector<1x2x324xf32>
    %393 = vector.shape_cast %392 : vector<1x2x324xf32> to vector<2x324xf32>
    %394 = vector.shape_cast %391 : vector<2x324xf32> to vector<1x2x324xf32>
    tpu.vector_store %arg11[%c1_85, %c0_86, %c19_87], %394 {strides = array<i32>} : memref<4x2x362xf32, #tpu.memory_space<vmem>>, vector<1x2x324xf32>,
    %c8_88 = arith.constant 8 : index
    %395 = memref.load %arg6[%c8_88] : memref<16xf32, #tpu.memory_space<smem>>
    %396 = vector.broadcast %395 : f32 to vector<2x324xf32>
    %397 = arith.mulf %396, %325 : vector<2x324xf32>
    %c9_89 = arith.constant 9 : index
    %398 = memref.load %arg6[%c9_89] : memref<16xf32, #tpu.memory_space<smem>>
    %399 = vector.broadcast %398 : f32 to vector<2x324xf32>
    %400 = arith.mulf %399, %330 : vector<2x324xf32>
    %401 = arith.addf %397, %400 : vector<2x324xf32>
    %c10_90 = arith.constant 10 : index
    %402 = memref.load %arg6[%c10_90] : memref<16xf32, #tpu.memory_space<smem>>
    %403 = vector.broadcast %402 : f32 to vector<2x324xf32>
    %404 = arith.mulf %403, %335 : vector<2x324xf32>
    %405 = arith.addf %401, %404 : vector<2x324xf32>
    %c11_91 = arith.constant 11 : index
    %406 = memref.load %arg6[%c11_91] : memref<16xf32, #tpu.memory_space<smem>>
    %407 = vector.broadcast %406 : f32 to vector<2x324xf32>
    %408 = arith.mulf %407, %340 : vector<2x324xf32>
    %409 = arith.addf %405, %408 : vector<2x324xf32>
    %c2_92 = arith.constant 2 : index
    %410 = memref.load %arg7[%c2_92] : memref<4xf32, #tpu.memory_space<smem>>
    %411 = vector.broadcast %410 : f32 to vector<2x324xf32>
    %412 = arith.addf %409, %411 : vector<2x324xf32>
    %cst_93 = arith.constant 0.000000e+00 : f32
    %413 = vector.broadcast %cst_93 : f32 to vector<2x324xf32>
    %414 = arith.maximumf %412, %413 : vector<2x324xf32>
    %415 = vector.broadcast %0 : vector<1x324xf32> to vector<2x324xf32>
    %416 = arith.mulf %414, %415 : vector<2x324xf32>
    %c2_94 = arith.constant 2 : index
    %c0_95 = arith.constant 0 : index
    %c19_96 = arith.constant 19 : index
    %417 = vector.load %arg11[%c2_94, %c0_95, %c19_96] : memref<4x2x362xf32, #tpu.memory_space<vmem>>, vector<1x2x324xf32>
    %418 = vector.shape_cast %417 : vector<1x2x324xf32> to vector<2x324xf32>
    %419 = vector.shape_cast %416 : vector<2x324xf32> to vector<1x2x324xf32>
    tpu.vector_store %arg11[%c2_94, %c0_95, %c19_96], %419 {strides = array<i32>} : memref<4x2x362xf32, #tpu.memory_space<vmem>>, vector<1x2x324xf32>,
    %c12_97 = arith.constant 12 : index
    %420 = memref.load %arg6[%c12_97] : memref<16xf32, #tpu.memory_space<smem>>
    %421 = vector.broadcast %420 : f32 to vector<2x324xf32>
    %422 = arith.mulf %421, %325 : vector<2x324xf32>
    %c13_98 = arith.constant 13 : index
    %423 = memref.load %arg6[%c13_98] : memref<16xf32, #tpu.memory_space<smem>>
    %424 = vector.broadcast %423 : f32 to vector<2x324xf32>
    %425 = arith.mulf %424, %330 : vector<2x324xf32>
    %426 = arith.addf %422, %425 : vector<2x324xf32>
    %c14_99 = arith.constant 14 : index
    %427 = memref.load %arg6[%c14_99] : memref<16xf32, #tpu.memory_space<smem>>
    %428 = vector.broadcast %427 : f32 to vector<2x324xf32>
    %429 = arith.mulf %428, %335 : vector<2x324xf32>
    %430 = arith.addf %426, %429 : vector<2x324xf32>
    %c15_100 = arith.constant 15 : index
    %431 = memref.load %arg6[%c15_100] : memref<16xf32, #tpu.memory_space<smem>>
    %432 = vector.broadcast %431 : f32 to vector<2x324xf32>
    %433 = arith.mulf %432, %340 : vector<2x324xf32>
    %434 = arith.addf %430, %433 : vector<2x324xf32>
    %c3_101 = arith.constant 3 : index
    %435 = memref.load %arg7[%c3_101] : memref<4xf32, #tpu.memory_space<smem>>
    %436 = vector.broadcast %435 : f32 to vector<2x324xf32>
    %437 = arith.addf %434, %436 : vector<2x324xf32>
    %cst_102 = arith.constant 0.000000e+00 : f32
    %438 = vector.broadcast %cst_102 : f32 to vector<2x324xf32>
    %439 = arith.maximumf %437, %438 : vector<2x324xf32>
    %440 = vector.broadcast %0 : vector<1x324xf32> to vector<2x324xf32>
    %441 = arith.mulf %439, %440 : vector<2x324xf32>
    %c3_103 = arith.constant 3 : index
    %c0_104 = arith.constant 0 : index
    %c19_105 = arith.constant 19 : index
    %442 = vector.load %arg11[%c3_103, %c0_104, %c19_105] : memref<4x2x362xf32, #tpu.memory_space<vmem>>, vector<1x2x324xf32>
    %443 = vector.shape_cast %442 : vector<1x2x324xf32> to vector<2x324xf32>
    %444 = vector.shape_cast %441 : vector<2x324xf32> to vector<1x2x324xf32>
    tpu.vector_store %arg11[%c3_103, %c0_104, %c19_105], %444 {strides = array<i32>} : memref<4x2x362xf32, #tpu.memory_space<vmem>>, vector<1x2x324xf32>,
    %c0_106 = arith.constant 0 : index
    %c0_107 = arith.constant 0 : index
    %c0_108 = arith.constant 0 : index
    %445 = vector.load %arg11[%c0_106, %c0_107, %c0_108] : memref<4x2x362xf32, #tpu.memory_space<vmem>>, vector<1x2x324xf32>
    %446 = vector.shape_cast %445 : vector<1x2x324xf32> to vector<2x324xf32>
    %c0_109 = arith.constant 0 : index
    %447 = memref.load %arg8[%c0_109] : memref<144xf32, #tpu.memory_space<smem>>
    %448 = vector.broadcast %447 : f32 to vector<2x324xf32>
    %449 = arith.mulf %448, %446 : vector<2x324xf32>
    %c36_110 = arith.constant 36 : index
    %450 = memref.load %arg8[%c36_110] : memref<144xf32, #tpu.memory_space<smem>>
    %451 = vector.broadcast %450 : f32 to vector<2x324xf32>
    %452 = arith.mulf %451, %446 : vector<2x324xf32>
    %c72 = arith.constant 72 : index
    %453 = memref.load %arg8[%c72] : memref<144xf32, #tpu.memory_space<smem>>
    %454 = vector.broadcast %453 : f32 to vector<2x324xf32>
    %455 = arith.mulf %454, %446 : vector<2x324xf32>
    %c108 = arith.constant 108 : index
    %456 = memref.load %arg8[%c108] : memref<144xf32, #tpu.memory_space<smem>>
    %457 = vector.broadcast %456 : f32 to vector<2x324xf32>
    %458 = arith.mulf %457, %446 : vector<2x324xf32>
    %c0_111 = arith.constant 0 : index
    %c0_112 = arith.constant 0 : index
    %c1_113 = arith.constant 1 : index
    %459 = vector.load %arg11[%c0_111, %c0_112, %c1_113] : memref<4x2x362xf32, #tpu.memory_space<vmem>>, vector<1x2x324xf32>
    %460 = vector.shape_cast %459 : vector<1x2x324xf32> to vector<2x324xf32>
    %c1_114 = arith.constant 1 : index
    %461 = memref.load %arg8[%c1_114] : memref<144xf32, #tpu.memory_space<smem>>
    %462 = vector.broadcast %461 : f32 to vector<2x324xf32>
    %463 = arith.mulf %462, %460 : vector<2x324xf32>
    %464 = arith.addf %449, %463 : vector<2x324xf32>
    %c37_115 = arith.constant 37 : index
    %465 = memref.load %arg8[%c37_115] : memref<144xf32, #tpu.memory_space<smem>>
    %466 = vector.broadcast %465 : f32 to vector<2x324xf32>
    %467 = arith.mulf %466, %460 : vector<2x324xf32>
    %468 = arith.addf %452, %467 : vector<2x324xf32>
    %c73 = arith.constant 73 : index
    %469 = memref.load %arg8[%c73] : memref<144xf32, #tpu.memory_space<smem>>
    %470 = vector.broadcast %469 : f32 to vector<2x324xf32>
    %471 = arith.mulf %470, %460 : vector<2x324xf32>
    %472 = arith.addf %455, %471 : vector<2x324xf32>
    %c109 = arith.constant 109 : index
    %473 = memref.load %arg8[%c109] : memref<144xf32, #tpu.memory_space<smem>>
    %474 = vector.broadcast %473 : f32 to vector<2x324xf32>
    %475 = arith.mulf %474, %460 : vector<2x324xf32>
    %476 = arith.addf %458, %475 : vector<2x324xf32>
    %c0_116 = arith.constant 0 : index
    %c0_117 = arith.constant 0 : index
    %c2_118 = arith.constant 2 : index
    %477 = vector.load %arg11[%c0_116, %c0_117, %c2_118] : memref<4x2x362xf32, #tpu.memory_space<vmem>>, vector<1x2x324xf32>
    %478 = vector.shape_cast %477 : vector<1x2x324xf32> to vector<2x324xf32>
    %c2_119 = arith.constant 2 : index
    %479 = memref.load %arg8[%c2_119] : memref<144xf32, #tpu.memory_space<smem>>
    %480 = vector.broadcast %479 : f32 to vector<2x324xf32>
    %481 = arith.mulf %480, %478 : vector<2x324xf32>
    %482 = arith.addf %464, %481 : vector<2x324xf32>
    %c38_120 = arith.constant 38 : index
    %483 = memref.load %arg8[%c38_120] : memref<144xf32, #tpu.memory_space<smem>>
    %484 = vector.broadcast %483 : f32 to vector<2x324xf32>
    %485 = arith.mulf %484, %478 : vector<2x324xf32>
    %486 = arith.addf %468, %485 : vector<2x324xf32>
    %c74 = arith.constant 74 : index
    %487 = memref.load %arg8[%c74] : memref<144xf32, #tpu.memory_space<smem>>
    %488 = vector.broadcast %487 : f32 to vector<2x324xf32>
    %489 = arith.mulf %488, %478 : vector<2x324xf32>
    %490 = arith.addf %472, %489 : vector<2x324xf32>
    %c110 = arith.constant 110 : index
    %491 = memref.load %arg8[%c110] : memref<144xf32, #tpu.memory_space<smem>>
    %492 = vector.broadcast %491 : f32 to vector<2x324xf32>
    %493 = arith.mulf %492, %478 : vector<2x324xf32>
    %494 = arith.addf %476, %493 : vector<2x324xf32>
    %c0_121 = arith.constant 0 : index
    %c0_122 = arith.constant 0 : index
    %c18_123 = arith.constant 18 : index
    %495 = vector.load %arg11[%c0_121, %c0_122, %c18_123] : memref<4x2x362xf32, #tpu.memory_space<vmem>>, vector<1x2x324xf32>
    %496 = vector.shape_cast %495 : vector<1x2x324xf32> to vector<2x324xf32>
    %c3_124 = arith.constant 3 : index
    %497 = memref.load %arg8[%c3_124] : memref<144xf32, #tpu.memory_space<smem>>
    %498 = vector.broadcast %497 : f32 to vector<2x324xf32>
    %499 = arith.mulf %498, %496 : vector<2x324xf32>
    %500 = arith.addf %482, %499 : vector<2x324xf32>
    %c39_125 = arith.constant 39 : index
    %501 = memref.load %arg8[%c39_125] : memref<144xf32, #tpu.memory_space<smem>>
    %502 = vector.broadcast %501 : f32 to vector<2x324xf32>
    %503 = arith.mulf %502, %496 : vector<2x324xf32>
    %504 = arith.addf %486, %503 : vector<2x324xf32>
    %c75 = arith.constant 75 : index
    %505 = memref.load %arg8[%c75] : memref<144xf32, #tpu.memory_space<smem>>
    %506 = vector.broadcast %505 : f32 to vector<2x324xf32>
    %507 = arith.mulf %506, %496 : vector<2x324xf32>
    %508 = arith.addf %490, %507 : vector<2x324xf32>
    %c111 = arith.constant 111 : index
    %509 = memref.load %arg8[%c111] : memref<144xf32, #tpu.memory_space<smem>>
    %510 = vector.broadcast %509 : f32 to vector<2x324xf32>
    %511 = arith.mulf %510, %496 : vector<2x324xf32>
    %512 = arith.addf %494, %511 : vector<2x324xf32>
    %c0_126 = arith.constant 0 : index
    %c0_127 = arith.constant 0 : index
    %c19_128 = arith.constant 19 : index
    %513 = vector.load %arg11[%c0_126, %c0_127, %c19_128] : memref<4x2x362xf32, #tpu.memory_space<vmem>>, vector<1x2x324xf32>
    %514 = vector.shape_cast %513 : vector<1x2x324xf32> to vector<2x324xf32>
    %c4_129 = arith.constant 4 : index
    %515 = memref.load %arg8[%c4_129] : memref<144xf32, #tpu.memory_space<smem>>
    %516 = vector.broadcast %515 : f32 to vector<2x324xf32>
    %517 = arith.mulf %516, %514 : vector<2x324xf32>
    %518 = arith.addf %500, %517 : vector<2x324xf32>
    %c40_130 = arith.constant 40 : index
    %519 = memref.load %arg8[%c40_130] : memref<144xf32, #tpu.memory_space<smem>>
    %520 = vector.broadcast %519 : f32 to vector<2x324xf32>
    %521 = arith.mulf %520, %514 : vector<2x324xf32>
    %522 = arith.addf %504, %521 : vector<2x324xf32>
    %c76 = arith.constant 76 : index
    %523 = memref.load %arg8[%c76] : memref<144xf32, #tpu.memory_space<smem>>
    %524 = vector.broadcast %523 : f32 to vector<2x324xf32>
    %525 = arith.mulf %524, %514 : vector<2x324xf32>
    %526 = arith.addf %508, %525 : vector<2x324xf32>
    %c112 = arith.constant 112 : index
    %527 = memref.load %arg8[%c112] : memref<144xf32, #tpu.memory_space<smem>>
    %528 = vector.broadcast %527 : f32 to vector<2x324xf32>
    %529 = arith.mulf %528, %514 : vector<2x324xf32>
    %530 = arith.addf %512, %529 : vector<2x324xf32>
    %c0_131 = arith.constant 0 : index
    %c0_132 = arith.constant 0 : index
    %c20_133 = arith.constant 20 : index
    %531 = vector.load %arg11[%c0_131, %c0_132, %c20_133] : memref<4x2x362xf32, #tpu.memory_space<vmem>>, vector<1x2x324xf32>
    %532 = vector.shape_cast %531 : vector<1x2x324xf32> to vector<2x324xf32>
    %c5_134 = arith.constant 5 : index
    %533 = memref.load %arg8[%c5_134] : memref<144xf32, #tpu.memory_space<smem>>
    %534 = vector.broadcast %533 : f32 to vector<2x324xf32>
    %535 = arith.mulf %534, %532 : vector<2x324xf32>
    %536 = arith.addf %518, %535 : vector<2x324xf32>
    %c41_135 = arith.constant 41 : index
    %537 = memref.load %arg8[%c41_135] : memref<144xf32, #tpu.memory_space<smem>>
    %538 = vector.broadcast %537 : f32 to vector<2x324xf32>
    %539 = arith.mulf %538, %532 : vector<2x324xf32>
    %540 = arith.addf %522, %539 : vector<2x324xf32>
    %c77 = arith.constant 77 : index
    %541 = memref.load %arg8[%c77] : memref<144xf32, #tpu.memory_space<smem>>
    %542 = vector.broadcast %541 : f32 to vector<2x324xf32>
    %543 = arith.mulf %542, %532 : vector<2x324xf32>
    %544 = arith.addf %526, %543 : vector<2x324xf32>
    %c113 = arith.constant 113 : index
    %545 = memref.load %arg8[%c113] : memref<144xf32, #tpu.memory_space<smem>>
    %546 = vector.broadcast %545 : f32 to vector<2x324xf32>
    %547 = arith.mulf %546, %532 : vector<2x324xf32>
    %548 = arith.addf %530, %547 : vector<2x324xf32>
    %c0_136 = arith.constant 0 : index
    %c0_137 = arith.constant 0 : index
    %c36_138 = arith.constant 36 : index
    %549 = vector.load %arg11[%c0_136, %c0_137, %c36_138] : memref<4x2x362xf32, #tpu.memory_space<vmem>>, vector<1x2x324xf32>
    %550 = vector.shape_cast %549 : vector<1x2x324xf32> to vector<2x324xf32>
    %c6_139 = arith.constant 6 : index
    %551 = memref.load %arg8[%c6_139] : memref<144xf32, #tpu.memory_space<smem>>
    %552 = vector.broadcast %551 : f32 to vector<2x324xf32>
    %553 = arith.mulf %552, %550 : vector<2x324xf32>
    %554 = arith.addf %536, %553 : vector<2x324xf32>
    %c42_140 = arith.constant 42 : index
    %555 = memref.load %arg8[%c42_140] : memref<144xf32, #tpu.memory_space<smem>>
    %556 = vector.broadcast %555 : f32 to vector<2x324xf32>
    %557 = arith.mulf %556, %550 : vector<2x324xf32>
    %558 = arith.addf %540, %557 : vector<2x324xf32>
    %c78 = arith.constant 78 : index
    %559 = memref.load %arg8[%c78] : memref<144xf32, #tpu.memory_space<smem>>
    %560 = vector.broadcast %559 : f32 to vector<2x324xf32>
    %561 = arith.mulf %560, %550 : vector<2x324xf32>
    %562 = arith.addf %544, %561 : vector<2x324xf32>
    %c114 = arith.constant 114 : index
    %563 = memref.load %arg8[%c114] : memref<144xf32, #tpu.memory_space<smem>>
    %564 = vector.broadcast %563 : f32 to vector<2x324xf32>
    %565 = arith.mulf %564, %550 : vector<2x324xf32>
    %566 = arith.addf %548, %565 : vector<2x324xf32>
    %c0_141 = arith.constant 0 : index
    %c0_142 = arith.constant 0 : index
    %c37_143 = arith.constant 37 : index
    %567 = vector.load %arg11[%c0_141, %c0_142, %c37_143] : memref<4x2x362xf32, #tpu.memory_space<vmem>>, vector<1x2x324xf32>
    %568 = vector.shape_cast %567 : vector<1x2x324xf32> to vector<2x324xf32>
    %c7_144 = arith.constant 7 : index
    %569 = memref.load %arg8[%c7_144] : memref<144xf32, #tpu.memory_space<smem>>
    %570 = vector.broadcast %569 : f32 to vector<2x324xf32>
    %571 = arith.mulf %570, %568 : vector<2x324xf32>
    %572 = arith.addf %554, %571 : vector<2x324xf32>
    %c43_145 = arith.constant 43 : index
    %573 = memref.load %arg8[%c43_145] : memref<144xf32, #tpu.memory_space<smem>>
    %574 = vector.broadcast %573 : f32 to vector<2x324xf32>
    %575 = arith.mulf %574, %568 : vector<2x324xf32>
    %576 = arith.addf %558, %575 : vector<2x324xf32>
    %c79 = arith.constant 79 : index
    %577 = memref.load %arg8[%c79] : memref<144xf32, #tpu.memory_space<smem>>
    %578 = vector.broadcast %577 : f32 to vector<2x324xf32>
    %579 = arith.mulf %578, %568 : vector<2x324xf32>
    %580 = arith.addf %562, %579 : vector<2x324xf32>
    %c115 = arith.constant 115 : index
    %581 = memref.load %arg8[%c115] : memref<144xf32, #tpu.memory_space<smem>>
    %582 = vector.broadcast %581 : f32 to vector<2x324xf32>
    %583 = arith.mulf %582, %568 : vector<2x324xf32>
    %584 = arith.addf %566, %583 : vector<2x324xf32>
    %c0_146 = arith.constant 0 : index
    %c0_147 = arith.constant 0 : index
    %c38_148 = arith.constant 38 : index
    %585 = vector.load %arg11[%c0_146, %c0_147, %c38_148] : memref<4x2x362xf32, #tpu.memory_space<vmem>>, vector<1x2x324xf32>
    %586 = vector.shape_cast %585 : vector<1x2x324xf32> to vector<2x324xf32>
    %c8_149 = arith.constant 8 : index
    %587 = memref.load %arg8[%c8_149] : memref<144xf32, #tpu.memory_space<smem>>
    %588 = vector.broadcast %587 : f32 to vector<2x324xf32>
    %589 = arith.mulf %588, %586 : vector<2x324xf32>
    %590 = arith.addf %572, %589 : vector<2x324xf32>
    %c44_150 = arith.constant 44 : index
    %591 = memref.load %arg8[%c44_150] : memref<144xf32, #tpu.memory_space<smem>>
    %592 = vector.broadcast %591 : f32 to vector<2x324xf32>
    %593 = arith.mulf %592, %586 : vector<2x324xf32>
    %594 = arith.addf %576, %593 : vector<2x324xf32>
    %c80 = arith.constant 80 : index
    %595 = memref.load %arg8[%c80] : memref<144xf32, #tpu.memory_space<smem>>
    %596 = vector.broadcast %595 : f32 to vector<2x324xf32>
    %597 = arith.mulf %596, %586 : vector<2x324xf32>
    %598 = arith.addf %580, %597 : vector<2x324xf32>
    %c116 = arith.constant 116 : index
    %599 = memref.load %arg8[%c116] : memref<144xf32, #tpu.memory_space<smem>>
    %600 = vector.broadcast %599 : f32 to vector<2x324xf32>
    %601 = arith.mulf %600, %586 : vector<2x324xf32>
    %602 = arith.addf %584, %601 : vector<2x324xf32>
    %c1_151 = arith.constant 1 : index
    %c0_152 = arith.constant 0 : index
    %c0_153 = arith.constant 0 : index
    %603 = vector.load %arg11[%c1_151, %c0_152, %c0_153] : memref<4x2x362xf32, #tpu.memory_space<vmem>>, vector<1x2x324xf32>
    %604 = vector.shape_cast %603 : vector<1x2x324xf32> to vector<2x324xf32>
    %c9_154 = arith.constant 9 : index
    %605 = memref.load %arg8[%c9_154] : memref<144xf32, #tpu.memory_space<smem>>
    %606 = vector.broadcast %605 : f32 to vector<2x324xf32>
    %607 = arith.mulf %606, %604 : vector<2x324xf32>
    %608 = arith.addf %590, %607 : vector<2x324xf32>
    %c45_155 = arith.constant 45 : index
    %609 = memref.load %arg8[%c45_155] : memref<144xf32, #tpu.memory_space<smem>>
    %610 = vector.broadcast %609 : f32 to vector<2x324xf32>
    %611 = arith.mulf %610, %604 : vector<2x324xf32>
    %612 = arith.addf %594, %611 : vector<2x324xf32>
    %c81 = arith.constant 81 : index
    %613 = memref.load %arg8[%c81] : memref<144xf32, #tpu.memory_space<smem>>
    %614 = vector.broadcast %613 : f32 to vector<2x324xf32>
    %615 = arith.mulf %614, %604 : vector<2x324xf32>
    %616 = arith.addf %598, %615 : vector<2x324xf32>
    %c117 = arith.constant 117 : index
    %617 = memref.load %arg8[%c117] : memref<144xf32, #tpu.memory_space<smem>>
    %618 = vector.broadcast %617 : f32 to vector<2x324xf32>
    %619 = arith.mulf %618, %604 : vector<2x324xf32>
    %620 = arith.addf %602, %619 : vector<2x324xf32>
    %c1_156 = arith.constant 1 : index
    %c0_157 = arith.constant 0 : index
    %c1_158 = arith.constant 1 : index
    %621 = vector.load %arg11[%c1_156, %c0_157, %c1_158] : memref<4x2x362xf32, #tpu.memory_space<vmem>>, vector<1x2x324xf32>
    %622 = vector.shape_cast %621 : vector<1x2x324xf32> to vector<2x324xf32>
    %c10_159 = arith.constant 10 : index
    %623 = memref.load %arg8[%c10_159] : memref<144xf32, #tpu.memory_space<smem>>
    %624 = vector.broadcast %623 : f32 to vector<2x324xf32>
    %625 = arith.mulf %624, %622 : vector<2x324xf32>
    %626 = arith.addf %608, %625 : vector<2x324xf32>
    %c46_160 = arith.constant 46 : index
    %627 = memref.load %arg8[%c46_160] : memref<144xf32, #tpu.memory_space<smem>>
    %628 = vector.broadcast %627 : f32 to vector<2x324xf32>
    %629 = arith.mulf %628, %622 : vector<2x324xf32>
    %630 = arith.addf %612, %629 : vector<2x324xf32>
    %c82 = arith.constant 82 : index
    %631 = memref.load %arg8[%c82] : memref<144xf32, #tpu.memory_space<smem>>
    %632 = vector.broadcast %631 : f32 to vector<2x324xf32>
    %633 = arith.mulf %632, %622 : vector<2x324xf32>
    %634 = arith.addf %616, %633 : vector<2x324xf32>
    %c118 = arith.constant 118 : index
    %635 = memref.load %arg8[%c118] : memref<144xf32, #tpu.memory_space<smem>>
    %636 = vector.broadcast %635 : f32 to vector<2x324xf32>
    %637 = arith.mulf %636, %622 : vector<2x324xf32>
    %638 = arith.addf %620, %637 : vector<2x324xf32>
    %c1_161 = arith.constant 1 : index
    %c0_162 = arith.constant 0 : index
    %c2_163 = arith.constant 2 : index
    %639 = vector.load %arg11[%c1_161, %c0_162, %c2_163] : memref<4x2x362xf32, #tpu.memory_space<vmem>>, vector<1x2x324xf32>
    %640 = vector.shape_cast %639 : vector<1x2x324xf32> to vector<2x324xf32>
    %c11_164 = arith.constant 11 : index
    %641 = memref.load %arg8[%c11_164] : memref<144xf32, #tpu.memory_space<smem>>
    %642 = vector.broadcast %641 : f32 to vector<2x324xf32>
    %643 = arith.mulf %642, %640 : vector<2x324xf32>
    %644 = arith.addf %626, %643 : vector<2x324xf32>
    %c47_165 = arith.constant 47 : index
    %645 = memref.load %arg8[%c47_165] : memref<144xf32, #tpu.memory_space<smem>>
    %646 = vector.broadcast %645 : f32 to vector<2x324xf32>
    %647 = arith.mulf %646, %640 : vector<2x324xf32>
    %648 = arith.addf %630, %647 : vector<2x324xf32>
    %c83 = arith.constant 83 : index
    %649 = memref.load %arg8[%c83] : memref<144xf32, #tpu.memory_space<smem>>
    %650 = vector.broadcast %649 : f32 to vector<2x324xf32>
    %651 = arith.mulf %650, %640 : vector<2x324xf32>
    %652 = arith.addf %634, %651 : vector<2x324xf32>
    %c119 = arith.constant 119 : index
    %653 = memref.load %arg8[%c119] : memref<144xf32, #tpu.memory_space<smem>>
    %654 = vector.broadcast %653 : f32 to vector<2x324xf32>
    %655 = arith.mulf %654, %640 : vector<2x324xf32>
    %656 = arith.addf %638, %655 : vector<2x324xf32>
    %c1_166 = arith.constant 1 : index
    %c0_167 = arith.constant 0 : index
    %c18_168 = arith.constant 18 : index
    %657 = vector.load %arg11[%c1_166, %c0_167, %c18_168] : memref<4x2x362xf32, #tpu.memory_space<vmem>>, vector<1x2x324xf32>
    %658 = vector.shape_cast %657 : vector<1x2x324xf32> to vector<2x324xf32>
    %c12_169 = arith.constant 12 : index
    %659 = memref.load %arg8[%c12_169] : memref<144xf32, #tpu.memory_space<smem>>
    %660 = vector.broadcast %659 : f32 to vector<2x324xf32>
    %661 = arith.mulf %660, %658 : vector<2x324xf32>
    %662 = arith.addf %644, %661 : vector<2x324xf32>
    %c48_170 = arith.constant 48 : index
    %663 = memref.load %arg8[%c48_170] : memref<144xf32, #tpu.memory_space<smem>>
    %664 = vector.broadcast %663 : f32 to vector<2x324xf32>
    %665 = arith.mulf %664, %658 : vector<2x324xf32>
    %666 = arith.addf %648, %665 : vector<2x324xf32>
    %c84 = arith.constant 84 : index
    %667 = memref.load %arg8[%c84] : memref<144xf32, #tpu.memory_space<smem>>
    %668 = vector.broadcast %667 : f32 to vector<2x324xf32>
    %669 = arith.mulf %668, %658 : vector<2x324xf32>
    %670 = arith.addf %652, %669 : vector<2x324xf32>
    %c120 = arith.constant 120 : index
    %671 = memref.load %arg8[%c120] : memref<144xf32, #tpu.memory_space<smem>>
    %672 = vector.broadcast %671 : f32 to vector<2x324xf32>
    %673 = arith.mulf %672, %658 : vector<2x324xf32>
    %674 = arith.addf %656, %673 : vector<2x324xf32>
    %c1_171 = arith.constant 1 : index
    %c0_172 = arith.constant 0 : index
    %c19_173 = arith.constant 19 : index
    %675 = vector.load %arg11[%c1_171, %c0_172, %c19_173] : memref<4x2x362xf32, #tpu.memory_space<vmem>>, vector<1x2x324xf32>
    %676 = vector.shape_cast %675 : vector<1x2x324xf32> to vector<2x324xf32>
    %c13_174 = arith.constant 13 : index
    %677 = memref.load %arg8[%c13_174] : memref<144xf32, #tpu.memory_space<smem>>
    %678 = vector.broadcast %677 : f32 to vector<2x324xf32>
    %679 = arith.mulf %678, %676 : vector<2x324xf32>
    %680 = arith.addf %662, %679 : vector<2x324xf32>
    %c49_175 = arith.constant 49 : index
    %681 = memref.load %arg8[%c49_175] : memref<144xf32, #tpu.memory_space<smem>>
    %682 = vector.broadcast %681 : f32 to vector<2x324xf32>
    %683 = arith.mulf %682, %676 : vector<2x324xf32>
    %684 = arith.addf %666, %683 : vector<2x324xf32>
    %c85 = arith.constant 85 : index
    %685 = memref.load %arg8[%c85] : memref<144xf32, #tpu.memory_space<smem>>
    %686 = vector.broadcast %685 : f32 to vector<2x324xf32>
    %687 = arith.mulf %686, %676 : vector<2x324xf32>
    %688 = arith.addf %670, %687 : vector<2x324xf32>
    %c121 = arith.constant 121 : index
    %689 = memref.load %arg8[%c121] : memref<144xf32, #tpu.memory_space<smem>>
    %690 = vector.broadcast %689 : f32 to vector<2x324xf32>
    %691 = arith.mulf %690, %676 : vector<2x324xf32>
    %692 = arith.addf %674, %691 : vector<2x324xf32>
    %c1_176 = arith.constant 1 : index
    %c0_177 = arith.constant 0 : index
    %c20_178 = arith.constant 20 : index
    %693 = vector.load %arg11[%c1_176, %c0_177, %c20_178] : memref<4x2x362xf32, #tpu.memory_space<vmem>>, vector<1x2x324xf32>
    %694 = vector.shape_cast %693 : vector<1x2x324xf32> to vector<2x324xf32>
    %c14_179 = arith.constant 14 : index
    %695 = memref.load %arg8[%c14_179] : memref<144xf32, #tpu.memory_space<smem>>
    %696 = vector.broadcast %695 : f32 to vector<2x324xf32>
    %697 = arith.mulf %696, %694 : vector<2x324xf32>
    %698 = arith.addf %680, %697 : vector<2x324xf32>
    %c50_180 = arith.constant 50 : index
    %699 = memref.load %arg8[%c50_180] : memref<144xf32, #tpu.memory_space<smem>>
    %700 = vector.broadcast %699 : f32 to vector<2x324xf32>
    %701 = arith.mulf %700, %694 : vector<2x324xf32>
    %702 = arith.addf %684, %701 : vector<2x324xf32>
    %c86 = arith.constant 86 : index
    %703 = memref.load %arg8[%c86] : memref<144xf32, #tpu.memory_space<smem>>
    %704 = vector.broadcast %703 : f32 to vector<2x324xf32>
    %705 = arith.mulf %704, %694 : vector<2x324xf32>
    %706 = arith.addf %688, %705 : vector<2x324xf32>
    %c122 = arith.constant 122 : index
    %707 = memref.load %arg8[%c122] : memref<144xf32, #tpu.memory_space<smem>>
    %708 = vector.broadcast %707 : f32 to vector<2x324xf32>
    %709 = arith.mulf %708, %694 : vector<2x324xf32>
    %710 = arith.addf %692, %709 : vector<2x324xf32>
    %c1_181 = arith.constant 1 : index
    %c0_182 = arith.constant 0 : index
    %c36_183 = arith.constant 36 : index
    %711 = vector.load %arg11[%c1_181, %c0_182, %c36_183] : memref<4x2x362xf32, #tpu.memory_space<vmem>>, vector<1x2x324xf32>
    %712 = vector.shape_cast %711 : vector<1x2x324xf32> to vector<2x324xf32>
    %c15_184 = arith.constant 15 : index
    %713 = memref.load %arg8[%c15_184] : memref<144xf32, #tpu.memory_space<smem>>
    %714 = vector.broadcast %713 : f32 to vector<2x324xf32>
    %715 = arith.mulf %714, %712 : vector<2x324xf32>
    %716 = arith.addf %698, %715 : vector<2x324xf32>
    %c51_185 = arith.constant 51 : index
    %717 = memref.load %arg8[%c51_185] : memref<144xf32, #tpu.memory_space<smem>>
    %718 = vector.broadcast %717 : f32 to vector<2x324xf32>
    %719 = arith.mulf %718, %712 : vector<2x324xf32>
    %720 = arith.addf %702, %719 : vector<2x324xf32>
    %c87 = arith.constant 87 : index
    %721 = memref.load %arg8[%c87] : memref<144xf32, #tpu.memory_space<smem>>
    %722 = vector.broadcast %721 : f32 to vector<2x324xf32>
    %723 = arith.mulf %722, %712 : vector<2x324xf32>
    %724 = arith.addf %706, %723 : vector<2x324xf32>
    %c123 = arith.constant 123 : index
    %725 = memref.load %arg8[%c123] : memref<144xf32, #tpu.memory_space<smem>>
    %726 = vector.broadcast %725 : f32 to vector<2x324xf32>
    %727 = arith.mulf %726, %712 : vector<2x324xf32>
    %728 = arith.addf %710, %727 : vector<2x324xf32>
    %c1_186 = arith.constant 1 : index
    %c0_187 = arith.constant 0 : index
    %c37_188 = arith.constant 37 : index
    %729 = vector.load %arg11[%c1_186, %c0_187, %c37_188] : memref<4x2x362xf32, #tpu.memory_space<vmem>>, vector<1x2x324xf32>
    %730 = vector.shape_cast %729 : vector<1x2x324xf32> to vector<2x324xf32>
    %c16_189 = arith.constant 16 : index
    %731 = memref.load %arg8[%c16_189] : memref<144xf32, #tpu.memory_space<smem>>
    %732 = vector.broadcast %731 : f32 to vector<2x324xf32>
    %733 = arith.mulf %732, %730 : vector<2x324xf32>
    %734 = arith.addf %716, %733 : vector<2x324xf32>
    %c52_190 = arith.constant 52 : index
    %735 = memref.load %arg8[%c52_190] : memref<144xf32, #tpu.memory_space<smem>>
    %736 = vector.broadcast %735 : f32 to vector<2x324xf32>
    %737 = arith.mulf %736, %730 : vector<2x324xf32>
    %738 = arith.addf %720, %737 : vector<2x324xf32>
    %c88 = arith.constant 88 : index
    %739 = memref.load %arg8[%c88] : memref<144xf32, #tpu.memory_space<smem>>
    %740 = vector.broadcast %739 : f32 to vector<2x324xf32>
    %741 = arith.mulf %740, %730 : vector<2x324xf32>
    %742 = arith.addf %724, %741 : vector<2x324xf32>
    %c124 = arith.constant 124 : index
    %743 = memref.load %arg8[%c124] : memref<144xf32, #tpu.memory_space<smem>>
    %744 = vector.broadcast %743 : f32 to vector<2x324xf32>
    %745 = arith.mulf %744, %730 : vector<2x324xf32>
    %746 = arith.addf %728, %745 : vector<2x324xf32>
    %c1_191 = arith.constant 1 : index
    %c0_192 = arith.constant 0 : index
    %c38_193 = arith.constant 38 : index
    %747 = vector.load %arg11[%c1_191, %c0_192, %c38_193] : memref<4x2x362xf32, #tpu.memory_space<vmem>>, vector<1x2x324xf32>
    %748 = vector.shape_cast %747 : vector<1x2x324xf32> to vector<2x324xf32>
    %c17_194 = arith.constant 17 : index
    %749 = memref.load %arg8[%c17_194] : memref<144xf32, #tpu.memory_space<smem>>
    %750 = vector.broadcast %749 : f32 to vector<2x324xf32>
    %751 = arith.mulf %750, %748 : vector<2x324xf32>
    %752 = arith.addf %734, %751 : vector<2x324xf32>
    %c53_195 = arith.constant 53 : index
    %753 = memref.load %arg8[%c53_195] : memref<144xf32, #tpu.memory_space<smem>>
    %754 = vector.broadcast %753 : f32 to vector<2x324xf32>
    %755 = arith.mulf %754, %748 : vector<2x324xf32>
    %756 = arith.addf %738, %755 : vector<2x324xf32>
    %c89 = arith.constant 89 : index
    %757 = memref.load %arg8[%c89] : memref<144xf32, #tpu.memory_space<smem>>
    %758 = vector.broadcast %757 : f32 to vector<2x324xf32>
    %759 = arith.mulf %758, %748 : vector<2x324xf32>
    %760 = arith.addf %742, %759 : vector<2x324xf32>
    %c125 = arith.constant 125 : index
    %761 = memref.load %arg8[%c125] : memref<144xf32, #tpu.memory_space<smem>>
    %762 = vector.broadcast %761 : f32 to vector<2x324xf32>
    %763 = arith.mulf %762, %748 : vector<2x324xf32>
    %764 = arith.addf %746, %763 : vector<2x324xf32>
    %c2_196 = arith.constant 2 : index
    %c0_197 = arith.constant 0 : index
    %c0_198 = arith.constant 0 : index
    %765 = vector.load %arg11[%c2_196, %c0_197, %c0_198] : memref<4x2x362xf32, #tpu.memory_space<vmem>>, vector<1x2x324xf32>
    %766 = vector.shape_cast %765 : vector<1x2x324xf32> to vector<2x324xf32>
    %c18_199 = arith.constant 18 : index
    %767 = memref.load %arg8[%c18_199] : memref<144xf32, #tpu.memory_space<smem>>
    %768 = vector.broadcast %767 : f32 to vector<2x324xf32>
    %769 = arith.mulf %768, %766 : vector<2x324xf32>
    %770 = arith.addf %752, %769 : vector<2x324xf32>
    %c54_200 = arith.constant 54 : index
    %771 = memref.load %arg8[%c54_200] : memref<144xf32, #tpu.memory_space<smem>>
    %772 = vector.broadcast %771 : f32 to vector<2x324xf32>
    %773 = arith.mulf %772, %766 : vector<2x324xf32>
    %774 = arith.addf %756, %773 : vector<2x324xf32>
    %c90 = arith.constant 90 : index
    %775 = memref.load %arg8[%c90] : memref<144xf32, #tpu.memory_space<smem>>
    %776 = vector.broadcast %775 : f32 to vector<2x324xf32>
    %777 = arith.mulf %776, %766 : vector<2x324xf32>
    %778 = arith.addf %760, %777 : vector<2x324xf32>
    %c126 = arith.constant 126 : index
    %779 = memref.load %arg8[%c126] : memref<144xf32, #tpu.memory_space<smem>>
    %780 = vector.broadcast %779 : f32 to vector<2x324xf32>
    %781 = arith.mulf %780, %766 : vector<2x324xf32>
    %782 = arith.addf %764, %781 : vector<2x324xf32>
    %c2_201 = arith.constant 2 : index
    %c0_202 = arith.constant 0 : index
    %c1_203 = arith.constant 1 : index
    %783 = vector.load %arg11[%c2_201, %c0_202, %c1_203] : memref<4x2x362xf32, #tpu.memory_space<vmem>>, vector<1x2x324xf32>
    %784 = vector.shape_cast %783 : vector<1x2x324xf32> to vector<2x324xf32>
    %c19_204 = arith.constant 19 : index
    %785 = memref.load %arg8[%c19_204] : memref<144xf32, #tpu.memory_space<smem>>
    %786 = vector.broadcast %785 : f32 to vector<2x324xf32>
    %787 = arith.mulf %786, %784 : vector<2x324xf32>
    %788 = arith.addf %770, %787 : vector<2x324xf32>
    %c55_205 = arith.constant 55 : index
    %789 = memref.load %arg8[%c55_205] : memref<144xf32, #tpu.memory_space<smem>>
    %790 = vector.broadcast %789 : f32 to vector<2x324xf32>
    %791 = arith.mulf %790, %784 : vector<2x324xf32>
    %792 = arith.addf %774, %791 : vector<2x324xf32>
    %c91 = arith.constant 91 : index
    %793 = memref.load %arg8[%c91] : memref<144xf32, #tpu.memory_space<smem>>
    %794 = vector.broadcast %793 : f32 to vector<2x324xf32>
    %795 = arith.mulf %794, %784 : vector<2x324xf32>
    %796 = arith.addf %778, %795 : vector<2x324xf32>
    %c127 = arith.constant 127 : index
    %797 = memref.load %arg8[%c127] : memref<144xf32, #tpu.memory_space<smem>>
    %798 = vector.broadcast %797 : f32 to vector<2x324xf32>
    %799 = arith.mulf %798, %784 : vector<2x324xf32>
    %800 = arith.addf %782, %799 : vector<2x324xf32>
    %c2_206 = arith.constant 2 : index
    %c0_207 = arith.constant 0 : index
    %c2_208 = arith.constant 2 : index
    %801 = vector.load %arg11[%c2_206, %c0_207, %c2_208] : memref<4x2x362xf32, #tpu.memory_space<vmem>>, vector<1x2x324xf32>
    %802 = vector.shape_cast %801 : vector<1x2x324xf32> to vector<2x324xf32>
    %c20_209 = arith.constant 20 : index
    %803 = memref.load %arg8[%c20_209] : memref<144xf32, #tpu.memory_space<smem>>
    %804 = vector.broadcast %803 : f32 to vector<2x324xf32>
    %805 = arith.mulf %804, %802 : vector<2x324xf32>
    %806 = arith.addf %788, %805 : vector<2x324xf32>
    %c56_210 = arith.constant 56 : index
    %807 = memref.load %arg8[%c56_210] : memref<144xf32, #tpu.memory_space<smem>>
    %808 = vector.broadcast %807 : f32 to vector<2x324xf32>
    %809 = arith.mulf %808, %802 : vector<2x324xf32>
    %810 = arith.addf %792, %809 : vector<2x324xf32>
    %c92 = arith.constant 92 : index
    %811 = memref.load %arg8[%c92] : memref<144xf32, #tpu.memory_space<smem>>
    %812 = vector.broadcast %811 : f32 to vector<2x324xf32>
    %813 = arith.mulf %812, %802 : vector<2x324xf32>
    %814 = arith.addf %796, %813 : vector<2x324xf32>
    %c128 = arith.constant 128 : index
    %815 = memref.load %arg8[%c128] : memref<144xf32, #tpu.memory_space<smem>>
    %816 = vector.broadcast %815 : f32 to vector<2x324xf32>
    %817 = arith.mulf %816, %802 : vector<2x324xf32>
    %818 = arith.addf %800, %817 : vector<2x324xf32>
    %c2_211 = arith.constant 2 : index
    %c0_212 = arith.constant 0 : index
    %c18_213 = arith.constant 18 : index
    %819 = vector.load %arg11[%c2_211, %c0_212, %c18_213] : memref<4x2x362xf32, #tpu.memory_space<vmem>>, vector<1x2x324xf32>
    %820 = vector.shape_cast %819 : vector<1x2x324xf32> to vector<2x324xf32>
    %c21_214 = arith.constant 21 : index
    %821 = memref.load %arg8[%c21_214] : memref<144xf32, #tpu.memory_space<smem>>
    %822 = vector.broadcast %821 : f32 to vector<2x324xf32>
    %823 = arith.mulf %822, %820 : vector<2x324xf32>
    %824 = arith.addf %806, %823 : vector<2x324xf32>
    %c57_215 = arith.constant 57 : index
    %825 = memref.load %arg8[%c57_215] : memref<144xf32, #tpu.memory_space<smem>>
    %826 = vector.broadcast %825 : f32 to vector<2x324xf32>
    %827 = arith.mulf %826, %820 : vector<2x324xf32>
    %828 = arith.addf %810, %827 : vector<2x324xf32>
    %c93 = arith.constant 93 : index
    %829 = memref.load %arg8[%c93] : memref<144xf32, #tpu.memory_space<smem>>
    %830 = vector.broadcast %829 : f32 to vector<2x324xf32>
    %831 = arith.mulf %830, %820 : vector<2x324xf32>
    %832 = arith.addf %814, %831 : vector<2x324xf32>
    %c129 = arith.constant 129 : index
    %833 = memref.load %arg8[%c129] : memref<144xf32, #tpu.memory_space<smem>>
    %834 = vector.broadcast %833 : f32 to vector<2x324xf32>
    %835 = arith.mulf %834, %820 : vector<2x324xf32>
    %836 = arith.addf %818, %835 : vector<2x324xf32>
    %c2_216 = arith.constant 2 : index
    %c0_217 = arith.constant 0 : index
    %c19_218 = arith.constant 19 : index
    %837 = vector.load %arg11[%c2_216, %c0_217, %c19_218] : memref<4x2x362xf32, #tpu.memory_space<vmem>>, vector<1x2x324xf32>
    %838 = vector.shape_cast %837 : vector<1x2x324xf32> to vector<2x324xf32>
    %c22_219 = arith.constant 22 : index
    %839 = memref.load %arg8[%c22_219] : memref<144xf32, #tpu.memory_space<smem>>
    %840 = vector.broadcast %839 : f32 to vector<2x324xf32>
    %841 = arith.mulf %840, %838 : vector<2x324xf32>
    %842 = arith.addf %824, %841 : vector<2x324xf32>
    %c58_220 = arith.constant 58 : index
    %843 = memref.load %arg8[%c58_220] : memref<144xf32, #tpu.memory_space<smem>>
    %844 = vector.broadcast %843 : f32 to vector<2x324xf32>
    %845 = arith.mulf %844, %838 : vector<2x324xf32>
    %846 = arith.addf %828, %845 : vector<2x324xf32>
    %c94 = arith.constant 94 : index
    %847 = memref.load %arg8[%c94] : memref<144xf32, #tpu.memory_space<smem>>
    %848 = vector.broadcast %847 : f32 to vector<2x324xf32>
    %849 = arith.mulf %848, %838 : vector<2x324xf32>
    %850 = arith.addf %832, %849 : vector<2x324xf32>
    %c130 = arith.constant 130 : index
    %851 = memref.load %arg8[%c130] : memref<144xf32, #tpu.memory_space<smem>>
    %852 = vector.broadcast %851 : f32 to vector<2x324xf32>
    %853 = arith.mulf %852, %838 : vector<2x324xf32>
    %854 = arith.addf %836, %853 : vector<2x324xf32>
    %c2_221 = arith.constant 2 : index
    %c0_222 = arith.constant 0 : index
    %c20_223 = arith.constant 20 : index
    %855 = vector.load %arg11[%c2_221, %c0_222, %c20_223] : memref<4x2x362xf32, #tpu.memory_space<vmem>>, vector<1x2x324xf32>
    %856 = vector.shape_cast %855 : vector<1x2x324xf32> to vector<2x324xf32>
    %c23_224 = arith.constant 23 : index
    %857 = memref.load %arg8[%c23_224] : memref<144xf32, #tpu.memory_space<smem>>
    %858 = vector.broadcast %857 : f32 to vector<2x324xf32>
    %859 = arith.mulf %858, %856 : vector<2x324xf32>
    %860 = arith.addf %842, %859 : vector<2x324xf32>
    %c59_225 = arith.constant 59 : index
    %861 = memref.load %arg8[%c59_225] : memref<144xf32, #tpu.memory_space<smem>>
    %862 = vector.broadcast %861 : f32 to vector<2x324xf32>
    %863 = arith.mulf %862, %856 : vector<2x324xf32>
    %864 = arith.addf %846, %863 : vector<2x324xf32>
    %c95 = arith.constant 95 : index
    %865 = memref.load %arg8[%c95] : memref<144xf32, #tpu.memory_space<smem>>
    %866 = vector.broadcast %865 : f32 to vector<2x324xf32>
    %867 = arith.mulf %866, %856 : vector<2x324xf32>
    %868 = arith.addf %850, %867 : vector<2x324xf32>
    %c131 = arith.constant 131 : index
    %869 = memref.load %arg8[%c131] : memref<144xf32, #tpu.memory_space<smem>>
    %870 = vector.broadcast %869 : f32 to vector<2x324xf32>
    %871 = arith.mulf %870, %856 : vector<2x324xf32>
    %872 = arith.addf %854, %871 : vector<2x324xf32>
    %c2_226 = arith.constant 2 : index
    %c0_227 = arith.constant 0 : index
    %c36_228 = arith.constant 36 : index
    %873 = vector.load %arg11[%c2_226, %c0_227, %c36_228] : memref<4x2x362xf32, #tpu.memory_space<vmem>>, vector<1x2x324xf32>
    %874 = vector.shape_cast %873 : vector<1x2x324xf32> to vector<2x324xf32>
    %c24_229 = arith.constant 24 : index
    %875 = memref.load %arg8[%c24_229] : memref<144xf32, #tpu.memory_space<smem>>
    %876 = vector.broadcast %875 : f32 to vector<2x324xf32>
    %877 = arith.mulf %876, %874 : vector<2x324xf32>
    %878 = arith.addf %860, %877 : vector<2x324xf32>
    %c60_230 = arith.constant 60 : index
    %879 = memref.load %arg8[%c60_230] : memref<144xf32, #tpu.memory_space<smem>>
    %880 = vector.broadcast %879 : f32 to vector<2x324xf32>
    %881 = arith.mulf %880, %874 : vector<2x324xf32>
    %882 = arith.addf %864, %881 : vector<2x324xf32>
    %c96 = arith.constant 96 : index
    %883 = memref.load %arg8[%c96] : memref<144xf32, #tpu.memory_space<smem>>
    %884 = vector.broadcast %883 : f32 to vector<2x324xf32>
    %885 = arith.mulf %884, %874 : vector<2x324xf32>
    %886 = arith.addf %868, %885 : vector<2x324xf32>
    %c132 = arith.constant 132 : index
    %887 = memref.load %arg8[%c132] : memref<144xf32, #tpu.memory_space<smem>>
    %888 = vector.broadcast %887 : f32 to vector<2x324xf32>
    %889 = arith.mulf %888, %874 : vector<2x324xf32>
    %890 = arith.addf %872, %889 : vector<2x324xf32>
    %c2_231 = arith.constant 2 : index
    %c0_232 = arith.constant 0 : index
    %c37_233 = arith.constant 37 : index
    %891 = vector.load %arg11[%c2_231, %c0_232, %c37_233] : memref<4x2x362xf32, #tpu.memory_space<vmem>>, vector<1x2x324xf32>
    %892 = vector.shape_cast %891 : vector<1x2x324xf32> to vector<2x324xf32>
    %c25_234 = arith.constant 25 : index
    %893 = memref.load %arg8[%c25_234] : memref<144xf32, #tpu.memory_space<smem>>
    %894 = vector.broadcast %893 : f32 to vector<2x324xf32>
    %895 = arith.mulf %894, %892 : vector<2x324xf32>
    %896 = arith.addf %878, %895 : vector<2x324xf32>
    %c61_235 = arith.constant 61 : index
    %897 = memref.load %arg8[%c61_235] : memref<144xf32, #tpu.memory_space<smem>>
    %898 = vector.broadcast %897 : f32 to vector<2x324xf32>
    %899 = arith.mulf %898, %892 : vector<2x324xf32>
    %900 = arith.addf %882, %899 : vector<2x324xf32>
    %c97 = arith.constant 97 : index
    %901 = memref.load %arg8[%c97] : memref<144xf32, #tpu.memory_space<smem>>
    %902 = vector.broadcast %901 : f32 to vector<2x324xf32>
    %903 = arith.mulf %902, %892 : vector<2x324xf32>
    %904 = arith.addf %886, %903 : vector<2x324xf32>
    %c133 = arith.constant 133 : index
    %905 = memref.load %arg8[%c133] : memref<144xf32, #tpu.memory_space<smem>>
    %906 = vector.broadcast %905 : f32 to vector<2x324xf32>
    %907 = arith.mulf %906, %892 : vector<2x324xf32>
    %908 = arith.addf %890, %907 : vector<2x324xf32>
    %c2_236 = arith.constant 2 : index
    %c0_237 = arith.constant 0 : index
    %c38_238 = arith.constant 38 : index
    %909 = vector.load %arg11[%c2_236, %c0_237, %c38_238] : memref<4x2x362xf32, #tpu.memory_space<vmem>>, vector<1x2x324xf32>
    %910 = vector.shape_cast %909 : vector<1x2x324xf32> to vector<2x324xf32>
    %c26_239 = arith.constant 26 : index
    %911 = memref.load %arg8[%c26_239] : memref<144xf32, #tpu.memory_space<smem>>
    %912 = vector.broadcast %911 : f32 to vector<2x324xf32>
    %913 = arith.mulf %912, %910 : vector<2x324xf32>
    %914 = arith.addf %896, %913 : vector<2x324xf32>
    %c62_240 = arith.constant 62 : index
    %915 = memref.load %arg8[%c62_240] : memref<144xf32, #tpu.memory_space<smem>>
    %916 = vector.broadcast %915 : f32 to vector<2x324xf32>
    %917 = arith.mulf %916, %910 : vector<2x324xf32>
    %918 = arith.addf %900, %917 : vector<2x324xf32>
    %c98 = arith.constant 98 : index
    %919 = memref.load %arg8[%c98] : memref<144xf32, #tpu.memory_space<smem>>
    %920 = vector.broadcast %919 : f32 to vector<2x324xf32>
    %921 = arith.mulf %920, %910 : vector<2x324xf32>
    %922 = arith.addf %904, %921 : vector<2x324xf32>
    %c134 = arith.constant 134 : index
    %923 = memref.load %arg8[%c134] : memref<144xf32, #tpu.memory_space<smem>>
    %924 = vector.broadcast %923 : f32 to vector<2x324xf32>
    %925 = arith.mulf %924, %910 : vector<2x324xf32>
    %926 = arith.addf %908, %925 : vector<2x324xf32>
    %c3_241 = arith.constant 3 : index
    %c0_242 = arith.constant 0 : index
    %c0_243 = arith.constant 0 : index
    %927 = vector.load %arg11[%c3_241, %c0_242, %c0_243] : memref<4x2x362xf32, #tpu.memory_space<vmem>>, vector<1x2x324xf32>
    %928 = vector.shape_cast %927 : vector<1x2x324xf32> to vector<2x324xf32>
    %c27_244 = arith.constant 27 : index
    %929 = memref.load %arg8[%c27_244] : memref<144xf32, #tpu.memory_space<smem>>
    %930 = vector.broadcast %929 : f32 to vector<2x324xf32>
    %931 = arith.mulf %930, %928 : vector<2x324xf32>
    %932 = arith.addf %914, %931 : vector<2x324xf32>
    %c63_245 = arith.constant 63 : index
    %933 = memref.load %arg8[%c63_245] : memref<144xf32, #tpu.memory_space<smem>>
    %934 = vector.broadcast %933 : f32 to vector<2x324xf32>
    %935 = arith.mulf %934, %928 : vector<2x324xf32>
    %936 = arith.addf %918, %935 : vector<2x324xf32>
    %c99 = arith.constant 99 : index
    %937 = memref.load %arg8[%c99] : memref<144xf32, #tpu.memory_space<smem>>
    %938 = vector.broadcast %937 : f32 to vector<2x324xf32>
    %939 = arith.mulf %938, %928 : vector<2x324xf32>
    %940 = arith.addf %922, %939 : vector<2x324xf32>
    %c135 = arith.constant 135 : index
    %941 = memref.load %arg8[%c135] : memref<144xf32, #tpu.memory_space<smem>>
    %942 = vector.broadcast %941 : f32 to vector<2x324xf32>
    %943 = arith.mulf %942, %928 : vector<2x324xf32>
    %944 = arith.addf %926, %943 : vector<2x324xf32>
    %c3_246 = arith.constant 3 : index
    %c0_247 = arith.constant 0 : index
    %c1_248 = arith.constant 1 : index
    %945 = vector.load %arg11[%c3_246, %c0_247, %c1_248] : memref<4x2x362xf32, #tpu.memory_space<vmem>>, vector<1x2x324xf32>
    %946 = vector.shape_cast %945 : vector<1x2x324xf32> to vector<2x324xf32>
    %c28_249 = arith.constant 28 : index
    %947 = memref.load %arg8[%c28_249] : memref<144xf32, #tpu.memory_space<smem>>
    %948 = vector.broadcast %947 : f32 to vector<2x324xf32>
    %949 = arith.mulf %948, %946 : vector<2x324xf32>
    %950 = arith.addf %932, %949 : vector<2x324xf32>
    %c64_250 = arith.constant 64 : index
    %951 = memref.load %arg8[%c64_250] : memref<144xf32, #tpu.memory_space<smem>>
    %952 = vector.broadcast %951 : f32 to vector<2x324xf32>
    %953 = arith.mulf %952, %946 : vector<2x324xf32>
    %954 = arith.addf %936, %953 : vector<2x324xf32>
    %c100 = arith.constant 100 : index
    %955 = memref.load %arg8[%c100] : memref<144xf32, #tpu.memory_space<smem>>
    %956 = vector.broadcast %955 : f32 to vector<2x324xf32>
    %957 = arith.mulf %956, %946 : vector<2x324xf32>
    %958 = arith.addf %940, %957 : vector<2x324xf32>
    %c136 = arith.constant 136 : index
    %959 = memref.load %arg8[%c136] : memref<144xf32, #tpu.memory_space<smem>>
    %960 = vector.broadcast %959 : f32 to vector<2x324xf32>
    %961 = arith.mulf %960, %946 : vector<2x324xf32>
    %962 = arith.addf %944, %961 : vector<2x324xf32>
    %c3_251 = arith.constant 3 : index
    %c0_252 = arith.constant 0 : index
    %c2_253 = arith.constant 2 : index
    %963 = vector.load %arg11[%c3_251, %c0_252, %c2_253] : memref<4x2x362xf32, #tpu.memory_space<vmem>>, vector<1x2x324xf32>
    %964 = vector.shape_cast %963 : vector<1x2x324xf32> to vector<2x324xf32>
    %c29_254 = arith.constant 29 : index
    %965 = memref.load %arg8[%c29_254] : memref<144xf32, #tpu.memory_space<smem>>
    %966 = vector.broadcast %965 : f32 to vector<2x324xf32>
    %967 = arith.mulf %966, %964 : vector<2x324xf32>
    %968 = arith.addf %950, %967 : vector<2x324xf32>
    %c65_255 = arith.constant 65 : index
    %969 = memref.load %arg8[%c65_255] : memref<144xf32, #tpu.memory_space<smem>>
    %970 = vector.broadcast %969 : f32 to vector<2x324xf32>
    %971 = arith.mulf %970, %964 : vector<2x324xf32>
    %972 = arith.addf %954, %971 : vector<2x324xf32>
    %c101 = arith.constant 101 : index
    %973 = memref.load %arg8[%c101] : memref<144xf32, #tpu.memory_space<smem>>
    %974 = vector.broadcast %973 : f32 to vector<2x324xf32>
    %975 = arith.mulf %974, %964 : vector<2x324xf32>
    %976 = arith.addf %958, %975 : vector<2x324xf32>
    %c137 = arith.constant 137 : index
    %977 = memref.load %arg8[%c137] : memref<144xf32, #tpu.memory_space<smem>>
    %978 = vector.broadcast %977 : f32 to vector<2x324xf32>
    %979 = arith.mulf %978, %964 : vector<2x324xf32>
    %980 = arith.addf %962, %979 : vector<2x324xf32>
    %c3_256 = arith.constant 3 : index
    %c0_257 = arith.constant 0 : index
    %c18_258 = arith.constant 18 : index
    %981 = vector.load %arg11[%c3_256, %c0_257, %c18_258] : memref<4x2x362xf32, #tpu.memory_space<vmem>>, vector<1x2x324xf32>
    %982 = vector.shape_cast %981 : vector<1x2x324xf32> to vector<2x324xf32>
    %c30_259 = arith.constant 30 : index
    %983 = memref.load %arg8[%c30_259] : memref<144xf32, #tpu.memory_space<smem>>
    %984 = vector.broadcast %983 : f32 to vector<2x324xf32>
    %985 = arith.mulf %984, %982 : vector<2x324xf32>
    %986 = arith.addf %968, %985 : vector<2x324xf32>
    %c66_260 = arith.constant 66 : index
    %987 = memref.load %arg8[%c66_260] : memref<144xf32, #tpu.memory_space<smem>>
    %988 = vector.broadcast %987 : f32 to vector<2x324xf32>
    %989 = arith.mulf %988, %982 : vector<2x324xf32>
    %990 = arith.addf %972, %989 : vector<2x324xf32>
    %c102 = arith.constant 102 : index
    %991 = memref.load %arg8[%c102] : memref<144xf32, #tpu.memory_space<smem>>
    %992 = vector.broadcast %991 : f32 to vector<2x324xf32>
    %993 = arith.mulf %992, %982 : vector<2x324xf32>
    %994 = arith.addf %976, %993 : vector<2x324xf32>
    %c138 = arith.constant 138 : index
    %995 = memref.load %arg8[%c138] : memref<144xf32, #tpu.memory_space<smem>>
    %996 = vector.broadcast %995 : f32 to vector<2x324xf32>
    %997 = arith.mulf %996, %982 : vector<2x324xf32>
    %998 = arith.addf %980, %997 : vector<2x324xf32>
    %c3_261 = arith.constant 3 : index
    %c0_262 = arith.constant 0 : index
    %c19_263 = arith.constant 19 : index
    %999 = vector.load %arg11[%c3_261, %c0_262, %c19_263] : memref<4x2x362xf32, #tpu.memory_space<vmem>>, vector<1x2x324xf32>
    %1000 = vector.shape_cast %999 : vector<1x2x324xf32> to vector<2x324xf32>
    %c31_264 = arith.constant 31 : index
    %1001 = memref.load %arg8[%c31_264] : memref<144xf32, #tpu.memory_space<smem>>
    %1002 = vector.broadcast %1001 : f32 to vector<2x324xf32>
    %1003 = arith.mulf %1002, %1000 : vector<2x324xf32>
    %1004 = arith.addf %986, %1003 : vector<2x324xf32>
    %c67_265 = arith.constant 67 : index
    %1005 = memref.load %arg8[%c67_265] : memref<144xf32, #tpu.memory_space<smem>>
    %1006 = vector.broadcast %1005 : f32 to vector<2x324xf32>
    %1007 = arith.mulf %1006, %1000 : vector<2x324xf32>
    %1008 = arith.addf %990, %1007 : vector<2x324xf32>
    %c103 = arith.constant 103 : index
    %1009 = memref.load %arg8[%c103] : memref<144xf32, #tpu.memory_space<smem>>
    %1010 = vector.broadcast %1009 : f32 to vector<2x324xf32>
    %1011 = arith.mulf %1010, %1000 : vector<2x324xf32>
    %1012 = arith.addf %994, %1011 : vector<2x324xf32>
    %c139 = arith.constant 139 : index
    %1013 = memref.load %arg8[%c139] : memref<144xf32, #tpu.memory_space<smem>>
    %1014 = vector.broadcast %1013 : f32 to vector<2x324xf32>
    %1015 = arith.mulf %1014, %1000 : vector<2x324xf32>
    %1016 = arith.addf %998, %1015 : vector<2x324xf32>
    %c3_266 = arith.constant 3 : index
    %c0_267 = arith.constant 0 : index
    %c20_268 = arith.constant 20 : index
    %1017 = vector.load %arg11[%c3_266, %c0_267, %c20_268] : memref<4x2x362xf32, #tpu.memory_space<vmem>>, vector<1x2x324xf32>
    %1018 = vector.shape_cast %1017 : vector<1x2x324xf32> to vector<2x324xf32>
    %c32_269 = arith.constant 32 : index
    %1019 = memref.load %arg8[%c32_269] : memref<144xf32, #tpu.memory_space<smem>>
    %1020 = vector.broadcast %1019 : f32 to vector<2x324xf32>
    %1021 = arith.mulf %1020, %1018 : vector<2x324xf32>
    %1022 = arith.addf %1004, %1021 : vector<2x324xf32>
    %c68_270 = arith.constant 68 : index
    %1023 = memref.load %arg8[%c68_270] : memref<144xf32, #tpu.memory_space<smem>>
    %1024 = vector.broadcast %1023 : f32 to vector<2x324xf32>
    %1025 = arith.mulf %1024, %1018 : vector<2x324xf32>
    %1026 = arith.addf %1008, %1025 : vector<2x324xf32>
    %c104 = arith.constant 104 : index
    %1027 = memref.load %arg8[%c104] : memref<144xf32, #tpu.memory_space<smem>>
    %1028 = vector.broadcast %1027 : f32 to vector<2x324xf32>
    %1029 = arith.mulf %1028, %1018 : vector<2x324xf32>
    %1030 = arith.addf %1012, %1029 : vector<2x324xf32>
    %c140 = arith.constant 140 : index
    %1031 = memref.load %arg8[%c140] : memref<144xf32, #tpu.memory_space<smem>>
    %1032 = vector.broadcast %1031 : f32 to vector<2x324xf32>
    %1033 = arith.mulf %1032, %1018 : vector<2x324xf32>
    %1034 = arith.addf %1016, %1033 : vector<2x324xf32>
    %c3_271 = arith.constant 3 : index
    %c0_272 = arith.constant 0 : index
    %c36_273 = arith.constant 36 : index
    %1035 = vector.load %arg11[%c3_271, %c0_272, %c36_273] : memref<4x2x362xf32, #tpu.memory_space<vmem>>, vector<1x2x324xf32>
    %1036 = vector.shape_cast %1035 : vector<1x2x324xf32> to vector<2x324xf32>
    %c33_274 = arith.constant 33 : index
    %1037 = memref.load %arg8[%c33_274] : memref<144xf32, #tpu.memory_space<smem>>
    %1038 = vector.broadcast %1037 : f32 to vector<2x324xf32>
    %1039 = arith.mulf %1038, %1036 : vector<2x324xf32>
    %1040 = arith.addf %1022, %1039 : vector<2x324xf32>
    %c69_275 = arith.constant 69 : index
    %1041 = memref.load %arg8[%c69_275] : memref<144xf32, #tpu.memory_space<smem>>
    %1042 = vector.broadcast %1041 : f32 to vector<2x324xf32>
    %1043 = arith.mulf %1042, %1036 : vector<2x324xf32>
    %1044 = arith.addf %1026, %1043 : vector<2x324xf32>
    %c105 = arith.constant 105 : index
    %1045 = memref.load %arg8[%c105] : memref<144xf32, #tpu.memory_space<smem>>
    %1046 = vector.broadcast %1045 : f32 to vector<2x324xf32>
    %1047 = arith.mulf %1046, %1036 : vector<2x324xf32>
    %1048 = arith.addf %1030, %1047 : vector<2x324xf32>
    %c141 = arith.constant 141 : index
    %1049 = memref.load %arg8[%c141] : memref<144xf32, #tpu.memory_space<smem>>
    %1050 = vector.broadcast %1049 : f32 to vector<2x324xf32>
    %1051 = arith.mulf %1050, %1036 : vector<2x324xf32>
    %1052 = arith.addf %1034, %1051 : vector<2x324xf32>
    %c3_276 = arith.constant 3 : index
    %c0_277 = arith.constant 0 : index
    %c37_278 = arith.constant 37 : index
    %1053 = vector.load %arg11[%c3_276, %c0_277, %c37_278] : memref<4x2x362xf32, #tpu.memory_space<vmem>>, vector<1x2x324xf32>
    %1054 = vector.shape_cast %1053 : vector<1x2x324xf32> to vector<2x324xf32>
    %c34_279 = arith.constant 34 : index
    %1055 = memref.load %arg8[%c34_279] : memref<144xf32, #tpu.memory_space<smem>>
    %1056 = vector.broadcast %1055 : f32 to vector<2x324xf32>
    %1057 = arith.mulf %1056, %1054 : vector<2x324xf32>
    %1058 = arith.addf %1040, %1057 : vector<2x324xf32>
    %c70_280 = arith.constant 70 : index
    %1059 = memref.load %arg8[%c70_280] : memref<144xf32, #tpu.memory_space<smem>>
    %1060 = vector.broadcast %1059 : f32 to vector<2x324xf32>
    %1061 = arith.mulf %1060, %1054 : vector<2x324xf32>
    %1062 = arith.addf %1044, %1061 : vector<2x324xf32>
    %c106 = arith.constant 106 : index
    %1063 = memref.load %arg8[%c106] : memref<144xf32, #tpu.memory_space<smem>>
    %1064 = vector.broadcast %1063 : f32 to vector<2x324xf32>
    %1065 = arith.mulf %1064, %1054 : vector<2x324xf32>
    %1066 = arith.addf %1048, %1065 : vector<2x324xf32>
    %c142 = arith.constant 142 : index
    %1067 = memref.load %arg8[%c142] : memref<144xf32, #tpu.memory_space<smem>>
    %1068 = vector.broadcast %1067 : f32 to vector<2x324xf32>
    %1069 = arith.mulf %1068, %1054 : vector<2x324xf32>
    %1070 = arith.addf %1052, %1069 : vector<2x324xf32>
    %c3_281 = arith.constant 3 : index
    %c0_282 = arith.constant 0 : index
    %c38_283 = arith.constant 38 : index
    %1071 = vector.load %arg11[%c3_281, %c0_282, %c38_283] : memref<4x2x362xf32, #tpu.memory_space<vmem>>, vector<1x2x324xf32>
    %1072 = vector.shape_cast %1071 : vector<1x2x324xf32> to vector<2x324xf32>
    %c35_284 = arith.constant 35 : index
    %1073 = memref.load %arg8[%c35_284] : memref<144xf32, #tpu.memory_space<smem>>
    %1074 = vector.broadcast %1073 : f32 to vector<2x324xf32>
    %1075 = arith.mulf %1074, %1072 : vector<2x324xf32>
    %1076 = arith.addf %1058, %1075 : vector<2x324xf32>
    %c71_285 = arith.constant 71 : index
    %1077 = memref.load %arg8[%c71_285] : memref<144xf32, #tpu.memory_space<smem>>
    %1078 = vector.broadcast %1077 : f32 to vector<2x324xf32>
    %1079 = arith.mulf %1078, %1072 : vector<2x324xf32>
    %1080 = arith.addf %1062, %1079 : vector<2x324xf32>
    %c107 = arith.constant 107 : index
    %1081 = memref.load %arg8[%c107] : memref<144xf32, #tpu.memory_space<smem>>
    %1082 = vector.broadcast %1081 : f32 to vector<2x324xf32>
    %1083 = arith.mulf %1082, %1072 : vector<2x324xf32>
    %1084 = arith.addf %1066, %1083 : vector<2x324xf32>
    %c143 = arith.constant 143 : index
    %1085 = memref.load %arg8[%c143] : memref<144xf32, #tpu.memory_space<smem>>
    %1086 = vector.broadcast %1085 : f32 to vector<2x324xf32>
    %1087 = arith.mulf %1086, %1072 : vector<2x324xf32>
    %1088 = arith.addf %1070, %1087 : vector<2x324xf32>
    %c0_286 = arith.constant 0 : index
    %1089 = memref.load %arg9[%c0_286] : memref<1xf32, #tpu.memory_space<smem>>
    %c0_287 = arith.constant 0 : index
    %c0_288 = arith.constant 0 : index
    %c0_289 = arith.constant 0 : index
    %1090 = vector.load %arg2[%c0_287, %c0_288, %c0_289] : memref<4x1x324xf32, #tpu.memory_space<vmem>>, vector<1x1x324xf32>
    %1091 = vector.shape_cast %1090 : vector<1x1x324xf32> to vector<1x324xf32>
    %1092 = vector.broadcast %1091 : vector<1x324xf32> to vector<2x324xf32>
    %1093 = arith.addf %1076, %1092 : vector<2x324xf32>
    %c0_290 = arith.constant 0 : index
    %c0_291 = arith.constant 0 : index
    %c0_292 = arith.constant 0 : index
    %1094 = vector.load %arg10[%c0_290, %c0_291, %c0_292] : memref<4x2x324xf32, #tpu.memory_space<vmem>>, vector<1x2x324xf32>
    %1095 = vector.shape_cast %1094 : vector<1x2x324xf32> to vector<2x324xf32>
    %1096 = vector.shape_cast %1093 : vector<2x324xf32> to vector<1x2x324xf32>
    tpu.vector_store %arg10[%c0_290, %c0_291, %c0_292], %1096 {strides = array<i32>} : memref<4x2x324xf32, #tpu.memory_space<vmem>>, vector<1x2x324xf32>,
    %c1_293 = arith.constant 1 : index
    %c0_294 = arith.constant 0 : index
    %c0_295 = arith.constant 0 : index
    %1097 = vector.load %arg2[%c1_293, %c0_294, %c0_295] : memref<4x1x324xf32, #tpu.memory_space<vmem>>, vector<1x1x324xf32>
    %1098 = vector.shape_cast %1097 : vector<1x1x324xf32> to vector<1x324xf32>
    %1099 = vector.broadcast %1098 : vector<1x324xf32> to vector<2x324xf32>
    %1100 = arith.addf %1080, %1099 : vector<2x324xf32>
    %c1_296 = arith.constant 1 : index
    %c0_297 = arith.constant 0 : index
    %c0_298 = arith.constant 0 : index
    %1101 = vector.load %arg10[%c1_296, %c0_297, %c0_298] : memref<4x2x324xf32, #tpu.memory_space<vmem>>, vector<1x2x324xf32>
    %1102 = vector.shape_cast %1101 : vector<1x2x324xf32> to vector<2x324xf32>
    %1103 = vector.shape_cast %1100 : vector<2x324xf32> to vector<1x2x324xf32>
    tpu.vector_store %arg10[%c1_296, %c0_297, %c0_298], %1103 {strides = array<i32>} : memref<4x2x324xf32, #tpu.memory_space<vmem>>, vector<1x2x324xf32>,
    %c2_299 = arith.constant 2 : index
    %c0_300 = arith.constant 0 : index
    %c0_301 = arith.constant 0 : index
    %1104 = vector.load %arg2[%c2_299, %c0_300, %c0_301] : memref<4x1x324xf32, #tpu.memory_space<vmem>>, vector<1x1x324xf32>
    %1105 = vector.shape_cast %1104 : vector<1x1x324xf32> to vector<1x324xf32>
    %1106 = vector.broadcast %1105 : vector<1x324xf32> to vector<2x324xf32>
    %1107 = arith.addf %1084, %1106 : vector<2x324xf32>
    %1108 = math.tanh %1107 : vector<2x324xf32>
    %1109 = vector.broadcast %1089 : f32 to vector<2x324xf32>
    %1110 = arith.mulf %1109, %1108 : vector<2x324xf32>
    %c2_302 = arith.constant 2 : index
    %c0_303 = arith.constant 0 : index
    %c0_304 = arith.constant 0 : index
    %1111 = vector.load %arg10[%c2_302, %c0_303, %c0_304] : memref<4x2x324xf32, #tpu.memory_space<vmem>>, vector<1x2x324xf32>
    %1112 = vector.shape_cast %1111 : vector<1x2x324xf32> to vector<2x324xf32>
    %1113 = vector.shape_cast %1110 : vector<2x324xf32> to vector<1x2x324xf32>
    tpu.vector_store %arg10[%c2_302, %c0_303, %c0_304], %1113 {strides = array<i32>} : memref<4x2x324xf32, #tpu.memory_space<vmem>>, vector<1x2x324xf32>,
    %c3_305 = arith.constant 3 : index
    %c0_306 = arith.constant 0 : index
    %c0_307 = arith.constant 0 : index
    %1114 = vector.load %arg2[%c3_305, %c0_306, %c0_307] : memref<4x1x324xf32, #tpu.memory_space<vmem>>, vector<1x1x324xf32>
    %1115 = vector.shape_cast %1114 : vector<1x1x324xf32> to vector<1x324xf32>
    %1116 = vector.broadcast %1115 : vector<1x324xf32> to vector<2x324xf32>
    %1117 = arith.addf %1088, %1116 : vector<2x324xf32>
    %1118 = math.tanh %1117 : vector<2x324xf32>
    %1119 = vector.broadcast %1089 : f32 to vector<2x324xf32>
    %1120 = arith.mulf %1119, %1118 : vector<2x324xf32>
    %c3_308 = arith.constant 3 : index
    %c0_309 = arith.constant 0 : index
    %c0_310 = arith.constant 0 : index
    %1121 = vector.load %arg10[%c3_308, %c0_309, %c0_310] : memref<4x2x324xf32, #tpu.memory_space<vmem>>, vector<1x2x324xf32>
    %1122 = vector.shape_cast %1121 : vector<1x2x324xf32> to vector<2x324xf32>
    %1123 = vector.shape_cast %1120 : vector<2x324xf32> to vector<1x2x324xf32>
    tpu.vector_store %arg10[%c3_308, %c0_309, %c0_310], %1123 {strides = array<i32>} : memref<4x2x324xf32, #tpu.memory_space<vmem>>, vector<1x2x324xf32>,
    return
  }
  func.func @transform_0(%arg0: i32) -> (i32, i32, i32) {
    %c0_i32 = arith.constant 0 : i32
    %c0_i32_0 = arith.constant 0 : i32
    %c0_i32_1 = arith.constant 0 : i32
    return %c0_i32, %arg0, %c0_i32_0 : i32, i32, i32
  }
  func.func @transform_1(%arg0: i32) -> (i32, i32, i32) {
    %c0_i32 = arith.constant 0 : i32
    %c0_i32_0 = arith.constant 0 : i32
    %c0_i32_1 = arith.constant 0 : i32
    %c0_i32_2 = arith.constant 0 : i32
    return %c0_i32, %c0_i32_0, %c0_i32_1 : i32, i32, i32
  }
  func.func @transform_2(%arg0: i32) -> (i32, i32) {
    %c0_i32 = arith.constant 0 : i32
    %c0_i32_0 = arith.constant 0 : i32
    %c0_i32_1 = arith.constant 0 : i32
    return %c0_i32, %c0_i32_0 : i32, i32
  }
  func.func @transform_3(%arg0: i32) -> i32 {
    %c0_i32 = arith.constant 0 : i32
    %c0_i32_0 = arith.constant 0 : i32
    return %c0_i32 : i32
  }
  func.func @transform_4(%arg0: i32) -> i32 {
    %c0_i32 = arith.constant 0 : i32
    %c0_i32_0 = arith.constant 0 : i32
    return %c0_i32 : i32
  }
  func.func @transform_5(%arg0: i32) -> i32 {
    %c0_i32 = arith.constant 0 : i32
    %c0_i32_0 = arith.constant 0 : i32
    return %c0_i32 : i32
  }
  func.func @transform_6(%arg0: i32) -> i32 {
    %c0_i32 = arith.constant 0 : i32
    %c0_i32_0 = arith.constant 0 : i32
    return %c0_i32 : i32
  }
  func.func @transform_7(%arg0: i32) -> i32 {
    %c0_i32 = arith.constant 0 : i32
    %c0_i32_0 = arith.constant 0 : i32
    return %c0_i32 : i32
  }
  func.func @transform_8(%arg0: i32) -> i32 {
    %c0_i32 = arith.constant 0 : i32
    %c0_i32_0 = arith.constant 0 : i32
    return %c0_i32 : i32
  }
  func.func @transform_9(%arg0: i32) -> (i32, i32, i32) {
    %c0_i32 = arith.constant 0 : i32
    %c0_i32_0 = arith.constant 0 : i32
    %c0_i32_1 = arith.constant 0 : i32
    return %c0_i32, %arg0, %c0_i32_0 : i32, i32, i32
  }
}

</mosaic_0001>

<llo_original>
// kernel: tpu_custom_call.1
$region0: #{tpu_custom_call.1}
  #allocation0 [shape = 'u32[]', space=smem, size = 0x4, offset = 0x4, fixed_abs, tag = 'smem constant byte address 0x4 - core index']
  #allocation1 [shape = 'u32[144,128]{1,0:T(1,128)}', space=vmem, size = 0x12000, scoped, tag = 'internal scratch']
  #allocation2 [shape = 'f32[4,2,362]{2,1,0:T(2,128)}', space=vmem, size = 0x3000, scoped, tag = 'scratch operand']
  #allocation3 [shape = 'f32[1]{0:T(128)S(6)}', space=smem, size = 0x200, scoped, tag = 'scoped memory for tpu_custom_call.1']
  %s0 = inlined_call_operand.hbm [shape: f32[2,2,362], index: 0, kind: input, shape index: {}]
  %s1 = inlined_call_operand.hbm [shape: f32[4,1,324], index: 1, kind: input, shape index: {}]
  %s2 = inlined_call_operand.vmem [shape: f32[1,324], index: 2, kind: input, shape index: {}]
  %s3 = inlined_call_operand.vmem [shape: f32[72], index: 3, kind: input, shape index: {}]
  %s4 = inlined_call_operand.vmem [shape: f32[4], index: 4, kind: input, shape index: {}]
  %s5 = inlined_call_operand.vmem [shape: f32[16], index: 5, kind: input, shape index: {}]
  %s6 = inlined_call_operand.vmem [shape: f32[4], index: 6, kind: input, shape index: {}]
  %s7 = inlined_call_operand.vmem [shape: f32[144], index: 7, kind: input, shape index: {}]
  %s8 = inlined_call_operand.<no memory space> [shape: f32[1], index: 8, kind: input, shape index: {}]
  %s9 = inlined_call_operand.hbm [shape: f32[4,2,324], index: 9, kind: output, shape index: {}]
  %s10 = sld [smem:[#allocation0]]
  $region74: #{tpu_custom_call.1} parent=0
    _
  %s12 = ssub.s32 1, %s10
  %s13 = scalar_select 0, %s12, %s10
  %14 = sst [smem:[#allocation3]] %s8
  $region1: #{tpu_custom_call.1} parent=0
    #allocation4 [shape = 'u8[6144]{0}', space=vmem, size = 0x1800, scoped, tag = 'input window, operand 0, single buffered']
    #allocation5 [shape = 's32[1]{0}', space=sflag, size = 0x4, scoped, tag = 'scoped memory for tpu_custom_call.1']
    #allocation6 [shape = 's32[1]{0}', space=sflag, size = 0x4, scoped, tag = 'scoped memory for tpu_custom_call.1']
    #allocation7 [shape = 's32[1]{0}', space=sflag, size = 0x4, scoped, tag = 'scoped memory for tpu_custom_call.1']
    #allocation8 [shape = 'u8[6144]{0}', space=vmem, size = 0x1800, scoped, tag = 'input window, operand 1, single buffered']
    #allocation9 [shape = 's32[1]{0}', space=sflag, size = 0x4, scoped, tag = 'scoped memory for tpu_custom_call.1']
    #allocation10 [shape = 'u8[512]{0}', space=smem, size = 0x200, scoped, tag = 'input window, operand 3, single buffered']
    #allocation11 [shape = 'u8[512]{0}', space=smem, size = 0x200, scoped, tag = 'input window, operand 4, single buffered']
    #allocation12 [shape = 's32[1]{0}', space=sflag, size = 0x4, scoped, tag = 'scoped memory for tpu_custom_call.1']
    #allocation13 [shape = 'u8[512]{0}', space=smem, size = 0x200, scoped, tag = 'input window, operand 5, single buffered']
    #allocation14 [shape = 'u8[512]{0}', space=smem, size = 0x200, scoped, tag = 'input window, operand 6, single buffered']
    #allocation15 [shape = 's32[1]{0}', space=sflag, size = 0x4, scoped, tag = 'scoped memory for tpu_custom_call.1']
    #allocation16 [shape = 'u8[1024]{0}', space=smem, size = 0x400, scoped, tag = 'input window, operand 7, single buffered']
    #allocation17 [shape = 'u8[12288]{0}', space=vmem, size = 0x3000, scoped, tag = 'output window, operand 0, single buffered']
    %15 = vsyncpa [#allocation5], 0
    %16 = vsyncpa [#allocation9], 0
    %17 = vsyncpa [#allocation7], 0
    %18 = vsyncpa [#allocation12], 0
    %19 = vsyncpa [#allocation15], 0
    %20 = vsyncpa [#allocation6], 0
    // Predicated region
    $region2: #{tpu_custom_call.1} parent=1 // pred_check
      _
    $region3: #{tpu_custom_call.1} parent=1 // pred_check_branch
      %22 = sbr.rel (0) target = $region5
    $region4: #{tpu_custom_call.1} parent=1 // pred_region
      %s24 = ssub.s32 192, 192
      %25 = vsyncadd [#allocation5], %s24
      %s26 = sshll.u32 [#allocation4], 4
      %s27 = int_to_ptr.vmem [resolvable:$true] %s26
      %32 = dma.hbm_to_vmem [thread:$0]  %s0, 192, %s27, [#allocation5], 96, 96, 6
    $region5: #{tpu_custom_call.1} parent=1 // pred_fallthru
      _
    // Predicated region
    $region6: #{tpu_custom_call.1} parent=1 // pred_check
      _
    $region7: #{tpu_custom_call.1} parent=1 // pred_check_branch
      %34 = sbr.rel (0) target = $region9
    $region8: #{tpu_custom_call.1} parent=1 // pred_region
      %s36 = ssub.s32 192, 192
      %37 = vsyncadd [#allocation9], %s36
      %s38 = sshll.u32 [#allocation8], 4
      %s39 = int_to_ptr.vmem [resolvable:$true] %s38
      %44 = dma.hbm_to_vmem [thread:$0]  %s1, 192, %s39, [#allocation9], 48, 48, 3
    $region9: #{tpu_custom_call.1} parent=1 // pred_fallthru
      _
    // Predicated region
    $region10: #{tpu_custom_call.1} parent=1 // pred_check
      _
    $region11: #{tpu_custom_call.1} parent=1 // pred_check_branch
      %46 = sbr.rel (0) target = $region13
    $region12: #{tpu_custom_call.1} parent=1 // pred_region
      _
    $region13: #{tpu_custom_call.1} parent=1 // pred_fallthru
      _
    // Predicated region
    $region14: #{tpu_custom_call.1} parent=1 // pred_check
      _
    $region15: #{tpu_custom_call.1} parent=1 // pred_check_branch
      %48 = sbr.rel (0) target = $region17
    $region16: #{tpu_custom_call.1} parent=1 // pred_region
      %s50 = ssub.s32 16, 16
      %51 = vsyncadd [#allocation7], %s50
      %s53 = sshll.u32 %s3, 4
      %s54 = int_to_ptr.vmem [resolvable:$true] %s53
      %56 = dma.vmem_to_smem %s54, 16, [#allocation10], [#allocation7]
    $region17: #{tpu_custom_call.1} parent=1 // pred_fallthru
      _
    // Predicated region
    $region18: #{tpu_custom_call.1} parent=1 // pred_check
      _
    $region19: #{tpu_custom_call.1} parent=1 // pred_check_branch
      %58 = sbr.rel (0) target = $region21
    $region20: #{tpu_custom_call.1} parent=1 // pred_region
      %s60 = ssub.s32 16, 16
      %61 = vsyncadd [#allocation12], %s60
      %s63 = sshll.u32 %s4, 4
      %s64 = int_to_ptr.vmem [resolvable:$true] %s63
      %66 = dma.vmem_to_smem %s64, 16, [#allocation11], [#allocation12]
    $region21: #{tpu_custom_call.1} parent=1 // pred_fallthru
      _
    // Predicated region
    $region22: #{tpu_custom_call.1} parent=1 // pred_check
      _
    $region23: #{tpu_custom_call.1} parent=1 // pred_check_branch
      %68 = sbr.rel (0) target = $region25
    $region24: #{tpu_custom_call.1} parent=1 // pred_region
      %s70 = ssub.s32 16, 16
      %71 = vsyncadd [#allocation12], %s70
      %s73 = sshll.u32 %s5, 4
      %s74 = int_to_ptr.vmem [resolvable:$true] %s73
      %76 = dma.vmem_to_smem %s74, 16, [#allocation13], [#allocation12]
    $region25: #{tpu_custom_call.1} parent=1 // pred_fallthru
      _
    // Predicated region
    $region26: #{tpu_custom_call.1} parent=1 // pred_check
      _
    $region27: #{tpu_custom_call.1} parent=1 // pred_check_branch
      %78 = sbr.rel (0) target = $region29
    $region28: #{tpu_custom_call.1} parent=1 // pred_region
      %s80 = ssub.s32 16, 16
      %81 = vsyncadd [#allocation15], %s80
      %s83 = sshll.u32 %s6, 4
      %s84 = int_to_ptr.vmem [resolvable:$true] %s83
      %86 = dma.vmem_to_smem %s84, 16, [#allocation14], [#allocation15]
    $region29: #{tpu_custom_call.1} parent=1 // pred_fallthru
      _
    // Predicated region
    $region30: #{tpu_custom_call.1} parent=1 // pred_check
      _
    $region31: #{tpu_custom_call.1} parent=1 // pred_check_branch
      %88 = sbr.rel (0) target = $region33
    $region32: #{tpu_custom_call.1} parent=1 // pred_region
      %s90 = ssub.s32 32, 32
      %91 = vsyncadd [#allocation15], %s90
      %s93 = sshll.u32 %s7, 4
      %s94 = int_to_ptr.vmem [resolvable:$true] %s93
      %96 = dma.vmem_to_smem %s94, 32, [#allocation16], [#allocation15]
    $region33: #{tpu_custom_call.1} parent=1 // pred_fallthru
      _
    // Predicated region
    $region34: #{tpu_custom_call.1} parent=1 // pred_check
      _
    $region35: #{tpu_custom_call.1} parent=1 // pred_check_branch
      %98 = sbr.rel (0) target = $region37
    $region36: #{tpu_custom_call.1} parent=1 // pred_region
      _
    $region37: #{tpu_custom_call.1} parent=1 // pred_fallthru
      _
    // Predicated region
    $region38: #{tpu_custom_call.1} parent=1 // pred_check
      _
    $region39: #{tpu_custom_call.1} parent=1 // pred_check_branch
      %100 = sbr.rel (0) target = $region41
    $region40: #{tpu_custom_call.1} parent=1 // pred_region
      %101 = dma.done [#allocation5], 192
    $region41: #{tpu_custom_call.1} parent=1 // pred_fallthru
      _
    // Predicated region
    $region42: #{tpu_custom_call.1} parent=1 // pred_check
      _
    $region43: #{tpu_custom_call.1} parent=1 // pred_check_branch
      %103 = sbr.rel (0) target = $region45
    $region44: #{tpu_custom_call.1} parent=1 // pred_region
      %104 = dma.done [#allocation9], 192
    $region45: #{tpu_custom_call.1} parent=1 // pred_fallthru
      _
    // Predicated region
    $region46: #{tpu_custom_call.1} parent=1 // pred_check
      _
    $region47: #{tpu_custom_call.1} parent=1 // pred_check_branch
      %106 = sbr.rel (0) target = $region49
    $region48: #{tpu_custom_call.1} parent=1 // pred_region
      %107 = dma.done [#allocation7], 16
    $region49: #{tpu_custom_call.1} parent=1 // pred_fallthru
      _
    // Predicated region
    $region50: #{tpu_custom_call.1} parent=1 // pred_check
      _
    $region51: #{tpu_custom_call.1} parent=1 // pred_check_branch
      %109 = sbr.rel (0) target = $region53
    $region52: #{tpu_custom_call.1} parent=1 // pred_region
      %110 = dma.done [#allocation12], 16
    $region53: #{tpu_custom_call.1} parent=1 // pred_fallthru
      _
    // Predicated region
    $region54: #{tpu_custom_call.1} parent=1 // pred_check
      _
    $region55: #{tpu_custom_call.1} parent=1 // pred_check_branch
      %112 = sbr.rel (0) target = $region57
    $region56: #{tpu_custom_call.1} parent=1 // pred_region
      %113 = dma.done [#allocation12], 16
    $region57: #{tpu_custom_call.1} parent=1 // pred_fallthru
      _
    // Predicated region
    $region58: #{tpu_custom_call.1} parent=1 // pred_check
      _
    $region59: #{tpu_custom_call.1} parent=1 // pred_check_branch
      %115 = sbr.rel (0) target = $region61
    $region60: #{tpu_custom_call.1} parent=1 // pred_region
      %116 = dma.done [#allocation15], 16
    $region61: #{tpu_custom_call.1} parent=1 // pred_fallthru
      _
    // Predicated region
    $region62: #{tpu_custom_call.1} parent=1 // pred_check
      _
    $region63: #{tpu_custom_call.1} parent=1 // pred_check_branch
      %118 = sbr.rel (0) target = $region65
    $region64: #{tpu_custom_call.1} parent=1 // pred_region
      %119 = dma.done [#allocation15], 32
    $region65: #{tpu_custom_call.1} parent=1 // pred_fallthru
      _
    %120 = sfence
    %v121 = vld [vmem:[%s2] sm:$0x7]
    %v122 = vld [vmem:[#allocation4] sm:$0x3f]
    %s123 = sld [smem:[#allocation10]]
    %v124 = vstv %s123
    %v125 = vmul.f32 %v124, %v122
    %s126 = sld [smem:[#allocation10 + $0x12]]
    %v127 = vstv %s126
    %v128 = vmul.f32 %v127, %v122
    %s129 = sld [smem:[#allocation10 + $0x24]]
    %v130 = vstv %s129
    %v131 = vmul.f32 %v130, %v122
    %s132 = sld [smem:[#allocation10 + $0x36]]
    %v133 = vstv %s132
    %v134 = vmul.f32 %v133, %v122
    %s135 = sld [smem:[#allocation10 + $0x1]]
    %v136 = vstv %s135
    %v137 = vmul.f32 %v136, %v122
    %139 = vrot.lane.b32.xlu0 %v137, 127
    %v140 = vpop.permute.xlu0 %139
    %v141 = vrot.slane %v140, 2
    %vm142 = vcmask 1039360
    %v143 = vsel %vm142, %v140, %v141
    %v145 = vadd.f32 %v125, %v143
    %s146 = sld [smem:[#allocation10 + $0x13]]
    %v147 = vstv %s146
    %v148 = vmul.f32 %v147, %v122
    %150 = vrot.lane.b32.xlu0 %v148, 127
    %v151 = vpop.permute.xlu0 %150
    %v152 = vrot.slane %v151, 2
    %v153 = vsel %vm142, %v151, %v152
    %v155 = vadd.f32 %v128, %v153
    %s156 = sld [smem:[#allocation10 + $0x25]]
    %v157 = vstv %s156
    %v158 = vmul.f32 %v157, %v122
    %160 = vrot.lane.b32.xlu0 %v158, 127
    %v161 = vpop.permute.xlu0 %160
    %v162 = vrot.slane %v161, 2
    %v163 = vsel %vm142, %v161, %v162
    %v165 = vadd.f32 %v131, %v163
    %s166 = sld [smem:[#allocation10 + $0x37]]
    %v167 = vstv %s166
    %v168 = vmul.f32 %v167, %v122
    %170 = vrot.lane.b32.xlu0 %v168, 127
    %v171 = vpop.permute.xlu0 %170
    %v172 = vrot.slane %v171, 2
    %v173 = vsel %vm142, %v171, %v172
    %v175 = vadd.f32 %v134, %v173
    %s176 = sld [smem:[#allocation10 + $0x2]]
    %v177 = vstv %s176
    %v178 = vmul.f32 %v177, %v122
    %180 = vrot.lane.b32.xlu0 %v178, 126
    %v181 = vpop.permute.xlu0 %180
    %v182 = vrot.slane %v181, 2
    %vm183 = vcmask 1031168
    %v184 = vsel %vm183, %v181, %v182
    %v186 = vadd.f32 %v145, %v184
    %s187 = sld [smem:[#allocation10 + $0x14]]
    %v188 = vstv %s187
    %v189 = vmul.f32 %v188, %v122
    %191 = vrot.lane.b32.xlu0 %v189, 126
    %v192 = vpop.permute.xlu0 %191
    %v193 = vrot.slane %v192, 2
    %v194 = vsel %vm183, %v192, %v193
    %v196 = vadd.f32 %v155, %v194
    %s197 = sld [smem:[#allocation10 + $0x26]]
    %v198 = vstv %s197
    %v199 = vmul.f32 %v198, %v122
    %201 = vrot.lane.b32.xlu0 %v199, 126
    %v202 = vpop.permute.xlu0 %201
    %v203 = vrot.slane %v202, 2
    %v204 = vsel %vm183, %v202, %v203
    %v206 = vadd.f32 %v165, %v204
    %s207 = sld [smem:[#allocation10 + $0x38]]
    %v208 = vstv %s207
    %v209 = vmul.f32 %v208, %v122
    %211 = vrot.lane.b32.xlu0 %v209, 126
    %v212 = vpop.permute.xlu0 %211
    %v213 = vrot.slane %v212, 2
    %v214 = vsel %vm183, %v212, %v213
    %v216 = vadd.f32 %v175, %v214
    %s217 = sld [smem:[#allocation10 + $0x3]]
    %v218 = vstv %s217
    %v219 = vmul.f32 %v218, %v122
    %221 = vrot.lane.b32.xlu0 %v219, 110
    %v222 = vpop.permute.xlu0 %221
    %v223 = vrot.slane %v222, 2
    %vm224 = vcmask 900096
    %v225 = vsel %vm224, %v222, %v223
    %v227 = vadd.f32 %v186, %v225
    %s228 = sld [smem:[#allocation10 + $0x15]]
    %v229 = vstv %s228
    %v230 = vmul.f32 %v229, %v122
    %232 = vrot.lane.b32.xlu0 %v230, 110
    %v233 = vpop.permute.xlu0 %232
    %v234 = vrot.slane %v233, 2
    %v235 = vsel %vm224, %v233, %v234
    %v237 = vadd.f32 %v196, %v235
    %s238 = sld [smem:[#allocation10 + $0x27]]
    %v239 = vstv %s238
    %v240 = vmul.f32 %v239, %v122
    %242 = vrot.lane.b32.xlu0 %v240, 110
    %v243 = vpop.permute.xlu0 %242
    %v244 = vrot.slane %v243, 2
    %v245 = vsel %vm224, %v243, %v244
    %v247 = vadd.f32 %v206, %v245
    %s248 = sld [smem:[#allocation10 + $0x39]]
    %v249 = vstv %s248
    %v250 = vmul.f32 %v249, %v122
    %252 = vrot.lane.b32.xlu0 %v250, 110
    %v253 = vpop.permute.xlu0 %252
    %v254 = vrot.slane %v253, 2
    %v255 = vsel %vm224, %v253, %v254
    %v257 = vadd.f32 %v216, %v255
    %s258 = sld [smem:[#allocation10 + $0x4]]
    %v259 = vstv %s258
    %v260 = vmul.f32 %v259, %v122
    %262 = vrot.lane.b32.xlu0 %v260, 109
    %v263 = vpop.permute.xlu0 %262
    %v264 = vrot.slane %v263, 2
    %vm265 = vcmask 891904
    %v266 = vsel %vm265, %v263, %v264
    %v268 = vadd.f32 %v227, %v266
    %s269 = sld [smem:[#allocation10 + $0x16]]
    %v270 = vstv %s269
    %v271 = vmul.f32 %v270, %v122
    %273 = vrot.lane.b32.xlu0 %v271, 109
    %v274 = vpop.permute.xlu0 %273
    %v275 = vrot.slane %v274, 2
    %v276 = vsel %vm265, %v274, %v275
    %v278 = vadd.f32 %v237, %v276
    %s279 = sld [smem:[#allocation10 + $0x28]]
    %v280 = vstv %s279
    %v281 = vmul.f32 %v280, %v122
    %283 = vrot.lane.b32.xlu0 %v281, 109
    %v284 = vpop.permute.xlu0 %283
    %v285 = vrot.slane %v284, 2
    %v286 = vsel %vm265, %v284, %v285
    %v288 = vadd.f32 %v247, %v286
    %s289 = sld [smem:[#allocation10 + $0x3a]]
    %v290 = vstv %s289
    %v291 = vmul.f32 %v290, %v122
    %293 = vrot.lane.b32.xlu0 %v291, 109
    %v294 = vpop.permute.xlu0 %293
    %v295 = vrot.slane %v294, 2
    %v296 = vsel %vm265, %v294, %v295
    %v298 = vadd.f32 %v257, %v296
    %s299 = sld [smem:[#allocation10 + $0x5]]
    %v300 = vstv %s299
    %v301 = vmul.f32 %v300, %v122
    %303 = vrot.lane.b32.xlu0 %v301, 108
    %v304 = vpop.permute.xlu0 %303
    %v305 = vrot.slane %v304, 2
    %vm306 = vcmask 883712
    %v307 = vsel %vm306, %v304, %v305
    %v309 = vadd.f32 %v268, %v307
    %s310 = sld [smem:[#allocation10 + $0x17]]
    %v311 = vstv %s310
    %v312 = vmul.f32 %v311, %v122
    %314 = vrot.lane.b32.xlu0 %v312, 108
    %v315 = vpop.permute.xlu0 %314
    %v316 = vrot.slane %v315, 2
    %v317 = vsel %vm306, %v315, %v316
    %v319 = vadd.f32 %v278, %v317
    %s320 = sld [smem:[#allocation10 + $0x29]]
    %v321 = vstv %s320
    %v322 = vmul.f32 %v321, %v122
    %324 = vrot.lane.b32.xlu0 %v322, 108
    %v325 = vpop.permute.xlu0 %324
    %v326 = vrot.slane %v325, 2
    %v327 = vsel %vm306, %v325, %v326
    %v329 = vadd.f32 %v288, %v327
    %s330 = sld [smem:[#allocation10 + $0x3b]]
    %v331 = vstv %s330
    %v332 = vmul.f32 %v331, %v122
    %334 = vrot.lane.b32.xlu0 %v332, 108
    %v335 = vpop.permute.xlu0 %334
    %v336 = vrot.slane %v335, 2
    %v337 = vsel %vm306, %v335, %v336
    %v339 = vadd.f32 %v298, %v337
    %s340 = sld [smem:[#allocation10 + $0x6]]
    %v341 = vstv %s340
    %v342 = vmul.f32 %v341, %v122
    %344 = vrot.lane.b32.xlu0 %v342, 92
    %v345 = vpop.permute.xlu0 %344
    %v346 = vrot.slane %v345, 2
    %vm347 = vcmask 752640
    %v348 = vsel %vm347, %v345, %v346
    %v350 = vadd.f32 %v309, %v348
    %s351 = sld [smem:[#allocation10 + $0x18]]
    %v352 = vstv %s351
    %v353 = vmul.f32 %v352, %v122
    %355 = vrot.lane.b32.xlu0 %v353, 92
    %v356 = vpop.permute.xlu0 %355
    %v357 = vrot.slane %v356, 2
    %v358 = vsel %vm347, %v356, %v357
    %v360 = vadd.f32 %v319, %v358
    %s361 = sld [smem:[#allocation10 + $0x2a]]
    %v362 = vstv %s361
    %v363 = vmul.f32 %v362, %v122
    %365 = vrot.lane.b32.xlu0 %v363, 92
    %v366 = vpop.permute.xlu0 %365
    %v367 = vrot.slane %v366, 2
    %v368 = vsel %vm347, %v366, %v367
    %v370 = vadd.f32 %v329, %v368
    %s371 = sld [smem:[#allocation10 + $0x3c]]
    %v372 = vstv %s371
    %v373 = vmul.f32 %v372, %v122
    %375 = vrot.lane.b32.xlu0 %v373, 92
    %v376 = vpop.permute.xlu0 %375
    %v377 = vrot.slane %v376, 2
    %v378 = vsel %vm347, %v376, %v377
    %v380 = vadd.f32 %v339, %v378
    %s381 = sld [smem:[#allocation10 + $0x7]]
    %v382 = vstv %s381
    %v383 = vmul.f32 %v382, %v122
    %385 = vrot.lane.b32.xlu0 %v383, 91
    %v386 = vpop.permute.xlu0 %385
    %v387 = vrot.slane %v386, 2
    %vm388 = vcmask 744448
    %v389 = vsel %vm388, %v386, %v387
    %v391 = vadd.f32 %v350, %v389
    %s392 = sld [smem:[#allocation10 + $0x19]]
    %v393 = vstv %s392
    %v394 = vmul.f32 %v393, %v122
    %396 = vrot.lane.b32.xlu0 %v394, 91
    %v397 = vpop.permute.xlu0 %396
    %v398 = vrot.slane %v397, 2
    %v399 = vsel %vm388, %v397, %v398
    %v401 = vadd.f32 %v360, %v399
    %s402 = sld [smem:[#allocation10 + $0x2b]]
    %v403 = vstv %s402
    %v404 = vmul.f32 %v403, %v122
    %406 = vrot.lane.b32.xlu0 %v404, 91
    %v407 = vpop.permute.xlu0 %406
    %v408 = vrot.slane %v407, 2
    %v409 = vsel %vm388, %v407, %v408
    %v411 = vadd.f32 %v370, %v409
    %s412 = sld [smem:[#allocation10 + $0x3d]]
    %v413 = vstv %s412
    %v414 = vmul.f32 %v413, %v122
    %416 = vrot.lane.b32.xlu0 %v414, 91
    %v417 = vpop.permute.xlu0 %416
    %v418 = vrot.slane %v417, 2
    %v419 = vsel %vm388, %v417, %v418
    %v421 = vadd.f32 %v380, %v419
    %s422 = sld [smem:[#allocation10 + $0x8]]
    %v423 = vstv %s422
    %v424 = vmul.f32 %v423, %v122
    %426 = vrot.lane.b32.xlu0 %v424, 90
    %v427 = vpop.permute.xlu0 %426
    %v428 = vrot.slane %v427, 2
    %vm429 = vcmask 736256
    %v430 = vsel %vm429, %v427, %v428
    %v432 = vadd.f32 %v391, %v430
    %s433 = sld [smem:[#allocation10 + $0x1a]]
    %v434 = vstv %s433
    %v435 = vmul.f32 %v434, %v122
    %437 = vrot.lane.b32.xlu0 %v435, 90
    %v438 = vpop.permute.xlu0 %437
    %v439 = vrot.slane %v438, 2
    %v440 = vsel %vm429, %v438, %v439
    %v442 = vadd.f32 %v401, %v440
    %s443 = sld [smem:[#allocation10 + $0x2c]]
    %v444 = vstv %s443
    %v445 = vmul.f32 %v444, %v122
    %447 = vrot.lane.b32.xlu0 %v445, 90
    %v448 = vpop.permute.xlu0 %447
    %v449 = vrot.slane %v448, 2
    %v450 = vsel %vm429, %v448, %v449
    %v452 = vadd.f32 %v411, %v450
    %s453 = sld [smem:[#allocation10 + $0x3e]]
    %v454 = vstv %s453
    %v455 = vmul.f32 %v454, %v122
    %457 = vrot.lane.b32.xlu0 %v455, 90
    %v458 = vpop.permute.xlu0 %457
    %v459 = vrot.slane %v458, 2
    %v460 = vsel %vm429, %v458, %v459
    %v462 = vadd.f32 %v421, %v460
    %s463 = scalar_lea.vmem [#allocation4], 6
    %v464 = vld [vmem:[%s463] sm:$0x3f]
    %s465 = sld [smem:[#allocation10 + $0x9]]
    %v466 = vstv %s465
    %v467 = vmul.f32 %v466, %v464
    %v468 = vadd.f32 %v432, %v467
    %s469 = sld [smem:[#allocation10 + $0x1b]]
    %v470 = vstv %s469
    %v471 = vmul.f32 %v470, %v464
    %v472 = vadd.f32 %v442, %v471
    %s473 = sld [smem:[#allocation10 + $0x2d]]
    %v474 = vstv %s473
    %v475 = vmul.f32 %v474, %v464
    %v476 = vadd.f32 %v452, %v475
    %s477 = sld [smem:[#allocation10 + $0x3f]]
    %v478 = vstv %s477
    %v479 = vmul.f32 %v478, %v464
    %v480 = vadd.f32 %v462, %v479
    %s481 = sld [smem:[#allocation10 + $0xa]]
    %v482 = vstv %s481
    %v483 = vmul.f32 %v482, %v464
    %485 = vrot.lane.b32.xlu0 %v483, 127
    %v486 = vpop.permute.xlu0 %485
    %v487 = vrot.slane %v486, 2
    %v488 = vsel %vm142, %v486, %v487
    %v490 = vadd.f32 %v468, %v488
    %s491 = sld [smem:[#allocation10 + $0x1c]]
    %v492 = vstv %s491
    %v493 = vmul.f32 %v492, %v464
    %495 = vrot.lane.b32.xlu0 %v493, 127
    %v496 = vpop.permute.xlu0 %495
    %v497 = vrot.slane %v496, 2
    %v498 = vsel %vm142, %v496, %v497
    %v500 = vadd.f32 %v472, %v498
    %s501 = sld [smem:[#allocation10 + $0x2e]]
    %v502 = vstv %s501
    %v503 = vmul.f32 %v502, %v464
    %505 = vrot.lane.b32.xlu0 %v503, 127
    %v506 = vpop.permute.xlu0 %505
    %v507 = vrot.slane %v506, 2
    %v508 = vsel %vm142, %v506, %v507
    %v510 = vadd.f32 %v476, %v508
    %s511 = sld [smem:[#allocation10 + $0x40]]
    %v512 = vstv %s511
    %v513 = vmul.f32 %v512, %v464
    %515 = vrot.lane.b32.xlu0 %v513, 127
    %v516 = vpop.permute.xlu0 %515
    %v517 = vrot.slane %v516, 2
    %v518 = vsel %vm142, %v516, %v517
    %v520 = vadd.f32 %v480, %v518
    %s521 = sld [smem:[#allocation10 + $0xb]]
    %v522 = vstv %s521
    %v523 = vmul.f32 %v522, %v464
    %525 = vrot.lane.b32.xlu0 %v523, 126
    %v526 = vpop.permute.xlu0 %525
    %v527 = vrot.slane %v526, 2
    %v528 = vsel %vm183, %v526, %v527
    %v530 = vadd.f32 %v490, %v528
    %s531 = sld [smem:[#allocation10 + $0x1d]]
    %v532 = vstv %s531
    %v533 = vmul.f32 %v532, %v464
    %535 = vrot.lane.b32.xlu0 %v533, 126
    %v536 = vpop.permute.xlu0 %535
    %v537 = vrot.slane %v536, 2
    %v538 = vsel %vm183, %v536, %v537
    %v540 = vadd.f32 %v500, %v538
    %s541 = sld [smem:[#allocation10 + $0x2f]]
    %v542 = vstv %s541
    %v543 = vmul.f32 %v542, %v464
    %545 = vrot.lane.b32.xlu0 %v543, 126
    %v546 = vpop.permute.xlu0 %545
    %v547 = vrot.slane %v546, 2
    %v548 = vsel %vm183, %v546, %v547
    %v550 = vadd.f32 %v510, %v548
    %s551 = sld [smem:[#allocation10 + $0x41]]
    %v552 = vstv %s551
    %v553 = vmul.f32 %v552, %v464
    %555 = vrot.lane.b32.xlu0 %v553, 126
    %v556 = vpop.permute.xlu0 %555
    %v557 = vrot.slane %v556, 2
    %v558 = vsel %vm183, %v556, %v557
    %v560 = vadd.f32 %v520, %v558
    %s561 = sld [smem:[#allocation10 + $0xc]]
    %v562 = vstv %s561
    %v563 = vmul.f32 %v562, %v464
    %565 = vrot.lane.b32.xlu0 %v563, 110
    %v566 = vpop.permute.xlu0 %565
    %v567 = vrot.slane %v566, 2
    %v568 = vsel %vm224, %v566, %v567
    %v570 = vadd.f32 %v530, %v568
    %s571 = sld [smem:[#allocation10 + $0x1e]]
    %v572 = vstv %s571
    %v573 = vmul.f32 %v572, %v464
    %575 = vrot.lane.b32.xlu0 %v573, 110
    %v576 = vpop.permute.xlu0 %575
    %v577 = vrot.slane %v576, 2
    %v578 = vsel %vm224, %v576, %v577
    %v580 = vadd.f32 %v540, %v578
    %s581 = sld [smem:[#allocation10 + $0x30]]
    %v582 = vstv %s581
    %v583 = vmul.f32 %v582, %v464
    %585 = vrot.lane.b32.xlu0 %v583, 110
    %v586 = vpop.permute.xlu0 %585
    %v587 = vrot.slane %v586, 2
    %v588 = vsel %vm224, %v586, %v587
    %v590 = vadd.f32 %v550, %v588
    %s591 = sld [smem:[#allocation10 + $0x42]]
    %v592 = vstv %s591
    %v593 = vmul.f32 %v592, %v464
    %595 = vrot.lane.b32.xlu0 %v593, 110
    %v596 = vpop.permute.xlu0 %595
    %v597 = vrot.slane %v596, 2
    %v598 = vsel %vm224, %v596, %v597
    %v600 = vadd.f32 %v560, %v598
    %s601 = sld [smem:[#allocation10 + $0xd]]
    %v602 = vstv %s601
    %v603 = vmul.f32 %v602, %v464
    %605 = vrot.lane.b32.xlu0 %v603, 109
    %v606 = vpop.permute.xlu0 %605
    %v607 = vrot.slane %v606, 2
    %v608 = vsel %vm265, %v606, %v607
    %v610 = vadd.f32 %v570, %v608
    %s611 = sld [smem:[#allocation10 + $0x1f]]
    %v612 = vstv %s611
    %v613 = vmul.f32 %v612, %v464
    %615 = vrot.lane.b32.xlu0 %v613, 109
    %v616 = vpop.permute.xlu0 %615
    %v617 = vrot.slane %v616, 2
    %v618 = vsel %vm265, %v616, %v617
    %v620 = vadd.f32 %v580, %v618
    %s621 = sld [smem:[#allocation10 + $0x31]]
    %v622 = vstv %s621
    %v623 = vmul.f32 %v622, %v464
    %625 = vrot.lane.b32.xlu0 %v623, 109
    %v626 = vpop.permute.xlu0 %625
    %v627 = vrot.slane %v626, 2
    %v628 = vsel %vm265, %v626, %v627
    %v630 = vadd.f32 %v590, %v628
    %s631 = sld [smem:[#allocation10 + $0x43]]
    %v632 = vstv %s631
    %v633 = vmul.f32 %v632, %v464
    %635 = vrot.lane.b32.xlu0 %v633, 109
    %v636 = vpop.permute.xlu0 %635
    %v637 = vrot.slane %v636, 2
    %v638 = vsel %vm265, %v636, %v637
    %v640 = vadd.f32 %v600, %v638
    %s641 = sld [smem:[#allocation10 + $0xe]]
    %v642 = vstv %s641
    %v643 = vmul.f32 %v642, %v464
    %645 = vrot.lane.b32.xlu0 %v643, 108
    %v646 = vpop.permute.xlu0 %645
    %v647 = vrot.slane %v646, 2
    %v648 = vsel %vm306, %v646, %v647
    %v650 = vadd.f32 %v610, %v648
    %s651 = sld [smem:[#allocation10 + $0x20]]
    %v652 = vstv %s651
    %v653 = vmul.f32 %v652, %v464
    %655 = vrot.lane.b32.xlu0 %v653, 108
    %v656 = vpop.permute.xlu0 %655
    %v657 = vrot.slane %v656, 2
    %v658 = vsel %vm306, %v656, %v657
    %v660 = vadd.f32 %v620, %v658
    %s661 = sld [smem:[#allocation10 + $0x32]]
    %v662 = vstv %s661
    %v663 = vmul.f32 %v662, %v464
    %665 = vrot.lane.b32.xlu0 %v663, 108
    %v666 = vpop.permute.xlu0 %665
    %v667 = vrot.slane %v666, 2
    %v668 = vsel %vm306, %v666, %v667
    %v670 = vadd.f32 %v630, %v668
    %s671 = sld [smem:[#allocation10 + $0x44]]
    %v672 = vstv %s671
    %v673 = vmul.f32 %v672, %v464
    %675 = vrot.lane.b32.xlu0 %v673, 108
    %v676 = vpop.permute.xlu0 %675
    %v677 = vrot.slane %v676, 2
    %v678 = vsel %vm306, %v676, %v677
    %v680 = vadd.f32 %v640, %v678
    %s681 = sld [smem:[#allocation10 + $0xf]]
    %v682 = vstv %s681
    %v683 = vmul.f32 %v682, %v464
    %685 = vrot.lane.b32.xlu0 %v683, 92
    %v686 = vpop.permute.xlu0 %685
    %v687 = vrot.slane %v686, 2
    %v688 = vsel %vm347, %v686, %v687
    %v690 = vadd.f32 %v650, %v688
    %s691 = sld [smem:[#allocation10 + $0x21]]
    %v692 = vstv %s691
    %v693 = vmul.f32 %v692, %v464
    %695 = vrot.lane.b32.xlu0 %v693, 92
    %v696 = vpop.permute.xlu0 %695
    %v697 = vrot.slane %v696, 2
    %v698 = vsel %vm347, %v696, %v697
    %v700 = vadd.f32 %v660, %v698
    %s701 = sld [smem:[#allocation10 + $0x33]]
    %v702 = vstv %s701
    %v703 = vmul.f32 %v702, %v464
    %705 = vrot.lane.b32.xlu0 %v703, 92
    %v706 = vpop.permute.xlu0 %705
    %v707 = vrot.slane %v706, 2
    %v708 = vsel %vm347, %v706, %v707
    %v710 = vadd.f32 %v670, %v708
    %s711 = sld [smem:[#allocation10 + $0x45]]
    %v712 = vstv %s711
    %v713 = vmul.f32 %v712, %v464
    %715 = vrot.lane.b32.xlu0 %v713, 92
    %v716 = vpop.permute.xlu0 %715
    %v717 = vrot.slane %v716, 2
    %v718 = vsel %vm347, %v716, %v717
    %v720 = vadd.f32 %v680, %v718
    %s721 = sld [smem:[#allocation10 + $0x10]]
    %v722 = vstv %s721
    %v723 = vmul.f32 %v722, %v464
    %725 = vrot.lane.b32.xlu0 %v723, 91
    %v726 = vpop.permute.xlu0 %725
    %v727 = vrot.slane %v726, 2
    %v728 = vsel %vm388, %v726, %v727
    %v730 = vadd.f32 %v690, %v728
    %s731 = sld [smem:[#allocation10 + $0x22]]
    %v732 = vstv %s731
    %v733 = vmul.f32 %v732, %v464
    %735 = vrot.lane.b32.xlu0 %v733, 91
    %v736 = vpop.permute.xlu0 %735
    %v737 = vrot.slane %v736, 2
    %v738 = vsel %vm388, %v736, %v737
    %v740 = vadd.f32 %v700, %v738
    %s741 = sld [smem:[#allocation10 + $0x34]]
    %v742 = vstv %s741
    %v743 = vmul.f32 %v742, %v464
    %745 = vrot.lane.b32.xlu0 %v743, 91
    %v746 = vpop.permute.xlu0 %745
    %v747 = vrot.slane %v746, 2
    %v748 = vsel %vm388, %v746, %v747
    %v750 = vadd.f32 %v710, %v748
    %s751 = sld [smem:[#allocation10 + $0x46]]
    %v752 = vstv %s751
    %v753 = vmul.f32 %v752, %v464
    %755 = vrot.lane.b32.xlu0 %v753, 91
    %v756 = vpop.permute.xlu0 %755
    %v757 = vrot.slane %v756, 2
    %v758 = vsel %vm388, %v756, %v757
    %v760 = vadd.f32 %v720, %v758
    %s761 = sld [smem:[#allocation10 + $0x11]]
    %v762 = vstv %s761
    %v763 = vmul.f32 %v762, %v464
    %765 = vrot.lane.b32.xlu0 %v763, 90
    %v766 = vpop.permute.xlu0 %765
    %v767 = vrot.slane %v766, 2
    %v768 = vsel %vm429, %v766, %v767
    %v770 = vadd.f32 %v730, %v768
    %s771 = sld [smem:[#allocation10 + $0x23]]
    %v772 = vstv %s771
    %v773 = vmul.f32 %v772, %v464
    %775 = vrot.lane.b32.xlu0 %v773, 90
    %v776 = vpop.permute.xlu0 %775
    %v777 = vrot.slane %v776, 2
    %v778 = vsel %vm429, %v776, %v777
    %v780 = vadd.f32 %v740, %v778
    %s781 = sld [smem:[#allocation10 + $0x35]]
    %v782 = vstv %s781
    %v783 = vmul.f32 %v782, %v464
    %785 = vrot.lane.b32.xlu0 %v783, 90
    %v786 = vpop.permute.xlu0 %785
    %v787 = vrot.slane %v786, 2
    %v788 = vsel %vm429, %v786, %v787
    %v790 = vadd.f32 %v750, %v788
    %s791 = sld [smem:[#allocation10 + $0x47]]
    %v792 = vstv %s791
    %v793 = vmul.f32 %v792, %v464
    %795 = vrot.lane.b32.xlu0 %v793, 90
    %v796 = vpop.permute.xlu0 %795
    %v797 = vrot.slane %v796, 2
    %v798 = vsel %vm429, %v796, %v797
    %v800 = vadd.f32 %v760, %v798
    %s801 = sld [smem:[#allocation11]]
    %v802 = vstv %s801
    %v803 = vadd.f32 %v770, %v802
    %v804 = vmax.f32 %v803, 0.0
    %s805 = sld [smem:[#allocation11 + $0x1]]
    %v806 = vstv %s805
    %v807 = vadd.f32 %v780, %v806
    %v808 = vmax.f32 %v807, 0.0
    %s809 = sld [smem:[#allocation11 + $0x2]]
    %v810 = vstv %s809
    %v811 = vadd.f32 %v790, %v810
    %v812 = vmax.f32 %v811, 0.0
    %s813 = sld [smem:[#allocation11 + $0x3]]
    %v814 = vstv %s813
    %v815 = vadd.f32 %v800, %v814
    %v816 = vmax.f32 %v815, 0.0
    %vm817 = vcmask 148480
    %818 = vst.msk [vmem:[#allocation2] sm:$0x3] %vm817, 0.0
    %819 = vst.msk [vmem:[#allocation2 + $0x6] sm:$0x3] %vm817, 0.0
    %820 = vst.msk [vmem:[#allocation2 + $0xc] sm:$0x3] %vm817, 0.0
    %821 = vst.msk [vmem:[#allocation2 + $0x12] sm:$0x3] %vm817, 0.0
    %vm822 = vcmask 861880
    %823 = vst.msk [vmem:[#allocation2 + $0x4] sm:$0x3] %vm822, 0.0
    %824 = vst.msk [vmem:[#allocation2 + $0xa] sm:$0x3] %vm822, 0.0
    %825 = vst.msk [vmem:[#allocation2 + $0x10] sm:$0x3] %vm822, 0.0
    %826 = vst.msk [vmem:[#allocation2 + $0x16] sm:$0x3] %vm822, 0.0
    %s827 = sld [smem:[#allocation13]]
    %v828 = vstv %s827
    %v829 = vmul.f32 %v828, %v804
    %s830 = sld [smem:[#allocation13 + $0x1]]
    %v831 = vstv %s830
    %v832 = vmul.f32 %v831, %v808
    %v833 = vadd.f32 %v829, %v832
    %s834 = sld [smem:[#allocation13 + $0x2]]
    %v835 = vstv %s834
    %v836 = vmul.f32 %v835, %v812
    %v837 = vadd.f32 %v833, %v836
    %s838 = sld [smem:[#allocation13 + $0x3]]
    %v839 = vstv %s838
    %v840 = vmul.f32 %v839, %v816
    %v841 = vadd.f32 %v837, %v840
    %s842 = sld [smem:[#allocation14]]
    %v843 = vstv %s842
    %v844 = vadd.f32 %v841, %v843
    %v845 = vmax.f32 %v844, 0.0
    %v847 = vlaneseq
    %v848 = vshrl.u32 %v847, 7
    %v849 = vsub.s32 0, %v848
    %v850 = vrot.slane %v121, %v849
    %v851 = vlaneseq
    %v852 = vshrl.u32 %v851, 7
    %v853 = vsub.s32 1, %v852
    %v854 = vrot.slane %v121, %v853
    %v855 = vlaneseq
    %v856 = vshrl.u32 %v855, 7
    %v857 = vsub.s32 2, %v856
    %v858 = vrot.slane %v121, %v857
    %v859 = vcombine.low %v850, %v854
    %v861 = vunpack.c.l.s4 1983009808
    %v862 = vunpack.c.0.s8 %v861
    %v863 = vlaneseq
    %v864 = vshrl.u32 %v863, 7
    %v865 = vsub.s32 %v862, %v864
    %v866 = vrot.slane %v859, %v865
    %v868 = vunpack.c.l.s4 1983009808
    %v869 = vunpack.c.0.s8 %v868
    %v870 = vlaneseq
    %v871 = vshrl.u32 %v870, 7
    %v872 = vsub.s32 %v869, %v871
    %v873 = vrot.slane %v858, %v872
    %v874 = vcombine.low %v866, %v873
    %v876 = vmul.f32 %v845, %v874
    %878 = vrot.lane.b32.xlu0 %v876, 19
    %v879 = vpop.permute.xlu0 %878
    %v880 = vrot.slane %v879, 6
    %vm881 = vcmask 154624
    %v882 = vsel %vm881, %v880, %v879
    %vm884 = vcmask 1041560
    %vm885 = vcmask 1043458
    %vm886 = vmor %vm885, %vm884
    %vm887 = vcmask 709636
    %vm888 = vmor %vm887, %vm886
    %889 = vst.msk [vmem:[#allocation2] sm:$0x3f] %vm888, %v882
    %s890 = sld [smem:[#allocation13 + $0x4]]
    %v891 = vstv %s890
    %v892 = vmul.f32 %v891, %v804
    %s893 = sld [smem:[#allocation13 + $0x5]]
    %v894 = vstv %s893
    %v895 = vmul.f32 %v894, %v808
    %v896 = vadd.f32 %v892, %v895
    %s897 = sld [smem:[#allocation13 + $0x6]]
    %v898 = vstv %s897
    %v899 = vmul.f32 %v898, %v812
    %v900 = vadd.f32 %v896, %v899
    %s901 = sld [smem:[#allocation13 + $0x7]]
    %v902 = vstv %s901
    %v903 = vmul.f32 %v902, %v816
    %v904 = vadd.f32 %v900, %v903
    %s905 = sld [smem:[#allocation14 + $0x1]]
    %v906 = vstv %s905
    %v907 = vadd.f32 %v904, %v906
    %v908 = vmax.f32 %v907, 0.0
    %v909 = vmul.f32 %v908, %v874
    %911 = vrot.lane.b32.xlu0 %v909, 19
    %v912 = vpop.permute.xlu0 %911
    %v913 = vrot.slane %v912, 6
    %v914 = vsel %vm881, %v913, %v912
    %s916 = scalar_lea.vmem [#allocation2], 6
    %917 = vst.msk [vmem:[%s916] sm:$0x3f] %vm888, %v914
    %s918 = sld [smem:[#allocation13 + $0x8]]
    %v919 = vstv %s918
    %v920 = vmul.f32 %v919, %v804
    %s921 = sld [smem:[#allocation13 + $0x9]]
    %v922 = vstv %s921
    %v923 = vmul.f32 %v922, %v808
    %v924 = vadd.f32 %v920, %v923
    %s925 = sld [smem:[#allocation13 + $0xa]]
    %v926 = vstv %s925
    %v927 = vmul.f32 %v926, %v812
    %v928 = vadd.f32 %v924, %v927
    %s929 = sld [smem:[#allocation13 + $0xb]]
    %v930 = vstv %s929
    %v931 = vmul.f32 %v930, %v816
    %v932 = vadd.f32 %v928, %v931
    %s933 = sld [smem:[#allocation14 + $0x2]]
    %v934 = vstv %s933
    %v935 = vadd.f32 %v932, %v934
    %v936 = vmax.f32 %v935, 0.0
    %v937 = vmul.f32 %v936, %v874
    %939 = vrot.lane.b32.xlu0 %v937, 19
    %v940 = vpop.permute.xlu0 %939
    %v941 = vrot.slane %v940, 6
    %v942 = vsel %vm881, %v941, %v940
    %s944 = scalar_lea.vmem [#allocation2], 12
    %945 = vst.msk [vmem:[%s944] sm:$0x3f] %vm888, %v942
    %s946 = sld [smem:[#allocation13 + $0xc]]
    %v947 = vstv %s946
    %v948 = vmul.f32 %v947, %v804
    %s949 = sld [smem:[#allocation13 + $0xd]]
    %v950 = vstv %s949
    %v951 = vmul.f32 %v950, %v808
    %v952 = vadd.f32 %v948, %v951
    %s953 = sld [smem:[#allocation13 + $0xe]]
    %v954 = vstv %s953
    %v955 = vmul.f32 %v954, %v812
    %v956 = vadd.f32 %v952, %v955
    %s957 = sld [smem:[#allocation13 + $0xf]]
    %v958 = vstv %s957
    %v959 = vmul.f32 %v958, %v816
    %v960 = vadd.f32 %v956, %v959
    %s961 = sld [smem:[#allocation14 + $0x3]]
    %v962 = vstv %s961
    %v963 = vadd.f32 %v960, %v962
    %v964 = vmax.f32 %v963, 0.0
    %v965 = vmul.f32 %v964, %v874
    %967 = vrot.lane.b32.xlu0 %v965, 19
    %v968 = vpop.permute.xlu0 %967
    %v969 = vrot.slane %v968, 6
    %v970 = vsel %vm881, %v969, %v968
    %s972 = scalar_lea.vmem [#allocation2], 18
    %973 = vst.msk [vmem:[%s972] sm:$0x3f] %vm888, %v970
    %v974 = vld [vmem:[#allocation2] sm:$0x3f]
    %s975 = sld [smem:[#allocation16]]
    %v976 = vstv %s975
    %v977 = vmul.f32 %v976, %v974
    %s978 = sld [smem:[#allocation16 + $0x24]]
    %v979 = vstv %s978
    %v980 = vmul.f32 %v979, %v974
    %s981 = sld [smem:[#allocation16 + $0x48]]
    %v982 = vstv %s981
    %v983 = vmul.f32 %v982, %v974
    %s984 = sld [smem:[#allocation16 + $0x6c]]
    %v985 = vstv %s984
    %v986 = vmul.f32 %v985, %v974
    %s987 = sld [smem:[#allocation16 + $0x1]]
    %v988 = vstv %s987
    %v989 = vmul.f32 %v988, %v974
    %991 = vrot.lane.b32.xlu0 %v989, 127
    %v992 = vpop.permute.xlu0 %991
    %v993 = vrot.slane %v992, 2
    %v994 = vsel %vm142, %v992, %v993
    %v996 = vadd.f32 %v977, %v994
    %s997 = sld [smem:[#allocation16 + $0x25]]
    %v998 = vstv %s997
    %v999 = vmul.f32 %v998, %v974
    %1001 = vrot.lane.b32.xlu0 %v999, 127
    %v1002 = vpop.permute.xlu0 %1001
    %v1003 = vrot.slane %v1002, 2
    %v1004 = vsel %vm142, %v1002, %v1003
    %v1006 = vadd.f32 %v980, %v1004
    %s1007 = sld [smem:[#allocation16 + $0x49]]
    %v1008 = vstv %s1007
    %v1009 = vmul.f32 %v1008, %v974
    %1011 = vrot.lane.b32.xlu0 %v1009, 127
    %v1012 = vpop.permute.xlu0 %1011
    %v1013 = vrot.slane %v1012, 2
    %v1014 = vsel %vm142, %v1012, %v1013
    %v1016 = vadd.f32 %v983, %v1014
    %s1017 = sld [smem:[#allocation16 + $0x6d]]
    %v1018 = vstv %s1017
    %v1019 = vmul.f32 %v1018, %v974
    %1021 = vrot.lane.b32.xlu0 %v1019, 127
    %v1022 = vpop.permute.xlu0 %1021
    %v1023 = vrot.slane %v1022, 2
    %v1024 = vsel %vm142, %v1022, %v1023
    %v1026 = vadd.f32 %v986, %v1024
    %s1027 = sld [smem:[#allocation16 + $0x2]]
    %v1028 = vstv %s1027
    %v1029 = vmul.f32 %v1028, %v974
    %1031 = vrot.lane.b32.xlu0 %v1029, 126
    %v1032 = vpop.permute.xlu0 %1031
    %v1033 = vrot.slane %v1032, 2
    %v1034 = vsel %vm183, %v1032, %v1033
    %v1036 = vadd.f32 %v996, %v1034
    %s1037 = sld [smem:[#allocation16 + $0x26]]
    %v1038 = vstv %s1037
    %v1039 = vmul.f32 %v1038, %v974
    %1041 = vrot.lane.b32.xlu0 %v1039, 126
    %v1042 = vpop.permute.xlu0 %1041
    %v1043 = vrot.slane %v1042, 2
    %v1044 = vsel %vm183, %v1042, %v1043
    %v1046 = vadd.f32 %v1006, %v1044
    %s1047 = sld [smem:[#allocation16 + $0x4a]]
    %v1048 = vstv %s1047
    %v1049 = vmul.f32 %v1048, %v974
    %1051 = vrot.lane.b32.xlu0 %v1049, 126
    %v1052 = vpop.permute.xlu0 %1051
    %v1053 = vrot.slane %v1052, 2
    %v1054 = vsel %vm183, %v1052, %v1053
    %v1056 = vadd.f32 %v1016, %v1054
    %s1057 = sld [smem:[#allocation16 + $0x6e]]
    %v1058 = vstv %s1057
    %v1059 = vmul.f32 %v1058, %v974
    %1061 = vrot.lane.b32.xlu0 %v1059, 126
    %v1062 = vpop.permute.xlu0 %1061
    %v1063 = vrot.slane %v1062, 2
    %v1064 = vsel %vm183, %v1062, %v1063
    %v1066 = vadd.f32 %v1026, %v1064
    %s1067 = sld [smem:[#allocation16 + $0x3]]
    %v1068 = vstv %s1067
    %v1069 = vmul.f32 %v1068, %v974
    %1071 = vrot.lane.b32.xlu0 %v1069, 110
    %v1072 = vpop.permute.xlu0 %1071
    %v1073 = vrot.slane %v1072, 2
    %v1074 = vsel %vm224, %v1072, %v1073
    %v1076 = vadd.f32 %v1036, %v1074
    %s1077 = sld [smem:[#allocation16 + $0x27]]
    %v1078 = vstv %s1077
    %v1079 = vmul.f32 %v1078, %v974
    %1081 = vrot.lane.b32.xlu0 %v1079, 110
    %v1082 = vpop.permute.xlu0 %1081
    %v1083 = vrot.slane %v1082, 2
    %v1084 = vsel %vm224, %v1082, %v1083
    %v1086 = vadd.f32 %v1046, %v1084
    %s1087 = sld [smem:[#allocation16 + $0x4b]]
    %v1088 = vstv %s1087
    %v1089 = vmul.f32 %v1088, %v974
    %1091 = vrot.lane.b32.xlu0 %v1089, 110
    %v1092 = vpop.permute.xlu0 %1091
    %v1093 = vrot.slane %v1092, 2
    %v1094 = vsel %vm224, %v1092, %v1093
    %v1096 = vadd.f32 %v1056, %v1094
    %s1097 = sld [smem:[#allocation16 + $0x6f]]
    %v1098 = vstv %s1097
    %v1099 = vmul.f32 %v1098, %v974
    %1101 = vrot.lane.b32.xlu0 %v1099, 110
    %v1102 = vpop.permute.xlu0 %1101
    %v1103 = vrot.slane %v1102, 2
    %v1104 = vsel %vm224, %v1102, %v1103
    %v1106 = vadd.f32 %v1066, %v1104
    %s1107 = sld [smem:[#allocation16 + $0x4]]
    %v1108 = vstv %s1107
    %v1109 = vmul.f32 %v1108, %v974
    %1111 = vrot.lane.b32.xlu0 %v1109, 109
    %v1112 = vpop.permute.xlu0 %1111
    %v1113 = vrot.slane %v1112, 2
    %v1114 = vsel %vm265, %v1112, %v1113
    %v1116 = vadd.f32 %v1076, %v1114
    %s1117 = sld [smem:[#allocation16 + $0x28]]
    %v1118 = vstv %s1117
    %v1119 = vmul.f32 %v1118, %v974
    %1121 = vrot.lane.b32.xlu0 %v1119, 109
    %v1122 = vpop.permute.xlu0 %1121
    %v1123 = vrot.slane %v1122, 2
    %v1124 = vsel %vm265, %v1122, %v1123
    %v1126 = vadd.f32 %v1086, %v1124
    %s1127 = sld [smem:[#allocation16 + $0x4c]]
    %v1128 = vstv %s1127
    %v1129 = vmul.f32 %v1128, %v974
    %1131 = vrot.lane.b32.xlu0 %v1129, 109
    %v1132 = vpop.permute.xlu0 %1131
    %v1133 = vrot.slane %v1132, 2
    %v1134 = vsel %vm265, %v1132, %v1133
    %v1136 = vadd.f32 %v1096, %v1134
    %s1137 = sld [smem:[#allocation16 + $0x70]]
    %v1138 = vstv %s1137
    %v1139 = vmul.f32 %v1138, %v974
    %1141 = vrot.lane.b32.xlu0 %v1139, 109
    %v1142 = vpop.permute.xlu0 %1141
    %v1143 = vrot.slane %v1142, 2
    %v1144 = vsel %vm265, %v1142, %v1143
    %v1146 = vadd.f32 %v1106, %v1144
    %s1147 = sld [smem:[#allocation16 + $0x5]]
    %v1148 = vstv %s1147
    %v1149 = vmul.f32 %v1148, %v974
    %1151 = vrot.lane.b32.xlu0 %v1149, 108
    %v1152 = vpop.permute.xlu0 %1151
    %v1153 = vrot.slane %v1152, 2
    %v1154 = vsel %vm306, %v1152, %v1153
    %v1156 = vadd.f32 %v1116, %v1154
    %s1157 = sld [smem:[#allocation16 + $0x29]]
    %v1158 = vstv %s1157
    %v1159 = vmul.f32 %v1158, %v974
    %1161 = vrot.lane.b32.xlu0 %v1159, 108
    %v1162 = vpop.permute.xlu0 %1161
    %v1163 = vrot.slane %v1162, 2
    %v1164 = vsel %vm306, %v1162, %v1163
    %v1166 = vadd.f32 %v1126, %v1164
    %s1167 = sld [smem:[#allocation16 + $0x4d]]
    %v1168 = vstv %s1167
    %v1169 = vmul.f32 %v1168, %v974
    %1171 = vrot.lane.b32.xlu0 %v1169, 108
    %v1172 = vpop.permute.xlu0 %1171
    %v1173 = vrot.slane %v1172, 2
    %v1174 = vsel %vm306, %v1172, %v1173
    %v1176 = vadd.f32 %v1136, %v1174
    %s1177 = sld [smem:[#allocation16 + $0x71]]
    %v1178 = vstv %s1177
    %v1179 = vmul.f32 %v1178, %v974
    %1181 = vrot.lane.b32.xlu0 %v1179, 108
    %v1182 = vpop.permute.xlu0 %1181
    %v1183 = vrot.slane %v1182, 2
    %v1184 = vsel %vm306, %v1182, %v1183
    %v1186 = vadd.f32 %v1146, %v1184
    %s1187 = sld [smem:[#allocation16 + $0x6]]
    %v1188 = vstv %s1187
    %v1189 = vmul.f32 %v1188, %v974
    %1191 = vrot.lane.b32.xlu0 %v1189, 92
    %v1192 = vpop.permute.xlu0 %1191
    %v1193 = vrot.slane %v1192, 2
    %v1194 = vsel %vm347, %v1192, %v1193
    %v1196 = vadd.f32 %v1156, %v1194
    %s1197 = sld [smem:[#allocation16 + $0x2a]]
    %v1198 = vstv %s1197
    %v1199 = vmul.f32 %v1198, %v974
    %1201 = vrot.lane.b32.xlu0 %v1199, 92
    %v1202 = vpop.permute.xlu0 %1201
    %v1203 = vrot.slane %v1202, 2
    %v1204 = vsel %vm347, %v1202, %v1203
    %v1206 = vadd.f32 %v1166, %v1204
    %s1207 = sld [smem:[#allocation16 + $0x4e]]
    %v1208 = vstv %s1207
    %v1209 = vmul.f32 %v1208, %v974
    %1211 = vrot.lane.b32.xlu0 %v1209, 92
    %v1212 = vpop.permute.xlu0 %1211
    %v1213 = vrot.slane %v1212, 2
    %v1214 = vsel %vm347, %v1212, %v1213
    %v1216 = vadd.f32 %v1176, %v1214
    %s1217 = sld [smem:[#allocation16 + $0x72]]
    %v1218 = vstv %s1217
    %v1219 = vmul.f32 %v1218, %v974
    %1221 = vrot.lane.b32.xlu0 %v1219, 92
    %v1222 = vpop.permute.xlu0 %1221
    %v1223 = vrot.slane %v1222, 2
    %v1224 = vsel %vm347, %v1222, %v1223
    %v1226 = vadd.f32 %v1186, %v1224
    %s1227 = sld [smem:[#allocation16 + $0x7]]
    %v1228 = vstv %s1227
    %v1229 = vmul.f32 %v1228, %v974
    %1231 = vrot.lane.b32.xlu0 %v1229, 91
    %v1232 = vpop.permute.xlu0 %1231
    %v1233 = vrot.slane %v1232, 2
    %v1234 = vsel %vm388, %v1232, %v1233
    %v1236 = vadd.f32 %v1196, %v1234
    %s1237 = sld [smem:[#allocation16 + $0x2b]]
    %v1238 = vstv %s1237
    %v1239 = vmul.f32 %v1238, %v974
    %1241 = vrot.lane.b32.xlu0 %v1239, 91
    %v1242 = vpop.permute.xlu0 %1241
    %v1243 = vrot.slane %v1242, 2
    %v1244 = vsel %vm388, %v1242, %v1243
    %v1246 = vadd.f32 %v1206, %v1244
    %s1247 = sld [smem:[#allocation16 + $0x4f]]
    %v1248 = vstv %s1247
    %v1249 = vmul.f32 %v1248, %v974
    %1251 = vrot.lane.b32.xlu0 %v1249, 91
    %v1252 = vpop.permute.xlu0 %1251
    %v1253 = vrot.slane %v1252, 2
    %v1254 = vsel %vm388, %v1252, %v1253
    %v1256 = vadd.f32 %v1216, %v1254
    %s1257 = sld [smem:[#allocation16 + $0x73]]
    %v1258 = vstv %s1257
    %v1259 = vmul.f32 %v1258, %v974
    %1261 = vrot.lane.b32.xlu0 %v1259, 91
    %v1262 = vpop.permute.xlu0 %1261
    %v1263 = vrot.slane %v1262, 2
    %v1264 = vsel %vm388, %v1262, %v1263
    %v1266 = vadd.f32 %v1226, %v1264
    %s1267 = sld [smem:[#allocation16 + $0x8]]
    %v1268 = vstv %s1267
    %v1269 = vmul.f32 %v1268, %v974
    %1271 = vrot.lane.b32.xlu0 %v1269, 90
    %v1272 = vpop.permute.xlu0 %1271
    %v1273 = vrot.slane %v1272, 2
    %v1274 = vsel %vm429, %v1272, %v1273
    %v1276 = vadd.f32 %v1236, %v1274
    %s1277 = sld [smem:[#allocation16 + $0x2c]]
    %v1278 = vstv %s1277
    %v1279 = vmul.f32 %v1278, %v974
    %1281 = vrot.lane.b32.xlu0 %v1279, 90
    %v1282 = vpop.permute.xlu0 %1281
    %v1283 = vrot.slane %v1282, 2
    %v1284 = vsel %vm429, %v1282, %v1283
    %v1286 = vadd.f32 %v1246, %v1284
    %s1287 = sld [smem:[#allocation16 + $0x50]]
    %v1288 = vstv %s1287
    %v1289 = vmul.f32 %v1288, %v974
    %1291 = vrot.lane.b32.xlu0 %v1289, 90
    %v1292 = vpop.permute.xlu0 %1291
    %v1293 = vrot.slane %v1292, 2
    %v1294 = vsel %vm429, %v1292, %v1293
    %v1296 = vadd.f32 %v1256, %v1294
    %s1297 = sld [smem:[#allocation16 + $0x74]]
    %v1298 = vstv %s1297
    %v1299 = vmul.f32 %v1298, %v974
    %1301 = vrot.lane.b32.xlu0 %v1299, 90
    %v1302 = vpop.permute.xlu0 %1301
    %v1303 = vrot.slane %v1302, 2
    %v1304 = vsel %vm429, %v1302, %v1303
    %v1306 = vadd.f32 %v1266, %v1304
    %v1307 = vld [vmem:[%s916] sm:$0x3f]
    %s1308 = sld [smem:[#allocation16 + $0x9]]
    %v1309 = vstv %s1308
    %v1310 = vmul.f32 %v1309, %v1307
    %v1311 = vadd.f32 %v1276, %v1310
    %s1312 = sld [smem:[#allocation16 + $0x2d]]
    %v1313 = vstv %s1312
    %v1314 = vmul.f32 %v1313, %v1307
    %v1315 = vadd.f32 %v1286, %v1314
    %s1316 = sld [smem:[#allocation16 + $0x51]]
    %v1317 = vstv %s1316
    %v1318 = vmul.f32 %v1317, %v1307
    %v1319 = vadd.f32 %v1296, %v1318
    %s1320 = sld [smem:[#allocation16 + $0x75]]
    %v1321 = vstv %s1320
    %v1322 = vmul.f32 %v1321, %v1307
    %v1323 = vadd.f32 %v1306, %v1322
    %s1324 = sld [smem:[#allocation16 + $0xa]]
    %v1325 = vstv %s1324
    %v1326 = vmul.f32 %v1325, %v1307
    %1328 = vrot.lane.b32.xlu0 %v1326, 127
    %v1329 = vpop.permute.xlu0 %1328
    %v1330 = vrot.slane %v1329, 2
    %v1331 = vsel %vm142, %v1329, %v1330
    %v1333 = vadd.f32 %v1311, %v1331
    %s1334 = sld [smem:[#allocation16 + $0x2e]]
    %v1335 = vstv %s1334
    %v1336 = vmul.f32 %v1335, %v1307
    %1338 = vrot.lane.b32.xlu0 %v1336, 127
    %v1339 = vpop.permute.xlu0 %1338
    %v1340 = vrot.slane %v1339, 2
    %v1341 = vsel %vm142, %v1339, %v1340
    %v1343 = vadd.f32 %v1315, %v1341
    %s1344 = sld [smem:[#allocation16 + $0x52]]
    %v1345 = vstv %s1344
    %v1346 = vmul.f32 %v1345, %v1307
    %1348 = vrot.lane.b32.xlu0 %v1346, 127
    %v1349 = vpop.permute.xlu0 %1348
    %v1350 = vrot.slane %v1349, 2
    %v1351 = vsel %vm142, %v1349, %v1350
    %v1353 = vadd.f32 %v1319, %v1351
    %s1354 = sld [smem:[#allocation16 + $0x76]]
    %v1355 = vstv %s1354
    %v1356 = vmul.f32 %v1355, %v1307
    %1358 = vrot.lane.b32.xlu0 %v1356, 127
    %v1359 = vpop.permute.xlu0 %1358
    %v1360 = vrot.slane %v1359, 2
    %v1361 = vsel %vm142, %v1359, %v1360
    %v1363 = vadd.f32 %v1323, %v1361
    %s1364 = sld [smem:[#allocation16 + $0xb]]
    %v1365 = vstv %s1364
    %v1366 = vmul.f32 %v1365, %v1307
    %1368 = vrot.lane.b32.xlu0 %v1366, 126
    %v1369 = vpop.permute.xlu0 %1368
    %v1370 = vrot.slane %v1369, 2
    %v1371 = vsel %vm183, %v1369, %v1370
    %v1373 = vadd.f32 %v1333, %v1371
    %s1374 = sld [smem:[#allocation16 + $0x2f]]
    %v1375 = vstv %s1374
    %v1376 = vmul.f32 %v1375, %v1307
    %1378 = vrot.lane.b32.xlu0 %v1376, 126
    %v1379 = vpop.permute.xlu0 %1378
    %v1380 = vrot.slane %v1379, 2
    %v1381 = vsel %vm183, %v1379, %v1380
    %v1383 = vadd.f32 %v1343, %v1381
    %s1384 = sld [smem:[#allocation16 + $0x53]]
    %v1385 = vstv %s1384
    %v1386 = vmul.f32 %v1385, %v1307
    %1388 = vrot.lane.b32.xlu0 %v1386, 126
    %v1389 = vpop.permute.xlu0 %1388
    %v1390 = vrot.slane %v1389, 2
    %v1391 = vsel %vm183, %v1389, %v1390
    %v1393 = vadd.f32 %v1353, %v1391
    %s1394 = sld [smem:[#allocation16 + $0x77]]
    %v1395 = vstv %s1394
    %v1396 = vmul.f32 %v1395, %v1307
    %1398 = vrot.lane.b32.xlu0 %v1396, 126
    %v1399 = vpop.permute.xlu0 %1398
    %v1400 = vrot.slane %v1399, 2
    %v1401 = vsel %vm183, %v1399, %v1400
    %v1403 = vadd.f32 %v1363, %v1401
    %s1404 = sld [smem:[#allocation16 + $0xc]]
    %v1405 = vstv %s1404
    %v1406 = vmul.f32 %v1405, %v1307
    %1408 = vrot.lane.b32.xlu0 %v1406, 110
    %v1409 = vpop.permute.xlu0 %1408
    %v1410 = vrot.slane %v1409, 2
    %v1411 = vsel %vm224, %v1409, %v1410
    %v1413 = vadd.f32 %v1373, %v1411
    %s1414 = sld [smem:[#allocation16 + $0x30]]
    %v1415 = vstv %s1414
    %v1416 = vmul.f32 %v1415, %v1307
    %1418 = vrot.lane.b32.xlu0 %v1416, 110
    %v1419 = vpop.permute.xlu0 %1418
    %v1420 = vrot.slane %v1419, 2
    %v1421 = vsel %vm224, %v1419, %v1420
    %v1423 = vadd.f32 %v1383, %v1421
    %s1424 = sld [smem:[#allocation16 + $0x54]]
    %v1425 = vstv %s1424
    %v1426 = vmul.f32 %v1425, %v1307
    %1428 = vrot.lane.b32.xlu0 %v1426, 110
    %v1429 = vpop.permute.xlu0 %1428
    %v1430 = vrot.slane %v1429, 2
    %v1431 = vsel %vm224, %v1429, %v1430
    %v1433 = vadd.f32 %v1393, %v1431
    %s1434 = sld [smem:[#allocation16 + $0x78]]
    %v1435 = vstv %s1434
    %v1436 = vmul.f32 %v1435, %v1307
    %1438 = vrot.lane.b32.xlu0 %v1436, 110
    %v1439 = vpop.permute.xlu0 %1438
    %v1440 = vrot.slane %v1439, 2
    %v1441 = vsel %vm224, %v1439, %v1440
    %v1443 = vadd.f32 %v1403, %v1441
    %s1444 = sld [smem:[#allocation16 + $0xd]]
    %v1445 = vstv %s1444
    %v1446 = vmul.f32 %v1445, %v1307
    %1448 = vrot.lane.b32.xlu0 %v1446, 109
    %v1449 = vpop.permute.xlu0 %1448
    %v1450 = vrot.slane %v1449, 2
    %v1451 = vsel %vm265, %v1449, %v1450
    %v1453 = vadd.f32 %v1413, %v1451
    %s1454 = sld [smem:[#allocation16 + $0x31]]
    %v1455 = vstv %s1454
    %v1456 = vmul.f32 %v1455, %v1307
    %1458 = vrot.lane.b32.xlu0 %v1456, 109
    %v1459 = vpop.permute.xlu0 %1458
    %v1460 = vrot.slane %v1459, 2
    %v1461 = vsel %vm265, %v1459, %v1460
    %v1463 = vadd.f32 %v1423, %v1461
    %s1464 = sld [smem:[#allocation16 + $0x55]]
    %v1465 = vstv %s1464
    %v1466 = vmul.f32 %v1465, %v1307
    %1468 = vrot.lane.b32.xlu0 %v1466, 109
    %v1469 = vpop.permute.xlu0 %1468
    %v1470 = vrot.slane %v1469, 2
    %v1471 = vsel %vm265, %v1469, %v1470
    %v1473 = vadd.f32 %v1433, %v1471
    %s1474 = sld [smem:[#allocation16 + $0x79]]
    %v1475 = vstv %s1474
    %v1476 = vmul.f32 %v1475, %v1307
    %1478 = vrot.lane.b32.xlu0 %v1476, 109
    %v1479 = vpop.permute.xlu0 %1478
    %v1480 = vrot.slane %v1479, 2
    %v1481 = vsel %vm265, %v1479, %v1480
    %v1483 = vadd.f32 %v1443, %v1481
    %s1484 = sld [smem:[#allocation16 + $0xe]]
    %v1485 = vstv %s1484
    %v1486 = vmul.f32 %v1485, %v1307
    %1488 = vrot.lane.b32.xlu0 %v1486, 108
    %v1489 = vpop.permute.xlu0 %1488
    %v1490 = vrot.slane %v1489, 2
    %v1491 = vsel %vm306, %v1489, %v1490
    %v1493 = vadd.f32 %v1453, %v1491
    %s1494 = sld [smem:[#allocation16 + $0x32]]
    %v1495 = vstv %s1494
    %v1496 = vmul.f32 %v1495, %v1307
    %1498 = vrot.lane.b32.xlu0 %v1496, 108
    %v1499 = vpop.permute.xlu0 %1498
    %v1500 = vrot.slane %v1499, 2
    %v1501 = vsel %vm306, %v1499, %v1500
    %v1503 = vadd.f32 %v1463, %v1501
    %s1504 = sld [smem:[#allocation16 + $0x56]]
    %v1505 = vstv %s1504
    %v1506 = vmul.f32 %v1505, %v1307
    %1508 = vrot.lane.b32.xlu0 %v1506, 108
    %v1509 = vpop.permute.xlu0 %1508
    %v1510 = vrot.slane %v1509, 2
    %v1511 = vsel %vm306, %v1509, %v1510
    %v1513 = vadd.f32 %v1473, %v1511
    %s1514 = sld [smem:[#allocation16 + $0x7a]]
    %v1515 = vstv %s1514
    %v1516 = vmul.f32 %v1515, %v1307
    %1518 = vrot.lane.b32.xlu0 %v1516, 108
    %v1519 = vpop.permute.xlu0 %1518
    %v1520 = vrot.slane %v1519, 2
    %v1521 = vsel %vm306, %v1519, %v1520
    %v1523 = vadd.f32 %v1483, %v1521
    %s1524 = sld [smem:[#allocation16 + $0xf]]
    %v1525 = vstv %s1524
    %v1526 = vmul.f32 %v1525, %v1307
    %1528 = vrot.lane.b32.xlu0 %v1526, 92
    %v1529 = vpop.permute.xlu0 %1528
    %v1530 = vrot.slane %v1529, 2
    %v1531 = vsel %vm347, %v1529, %v1530
    %v1533 = vadd.f32 %v1493, %v1531
    %s1534 = sld [smem:[#allocation16 + $0x33]]
    %v1535 = vstv %s1534
    %v1536 = vmul.f32 %v1535, %v1307
    %1538 = vrot.lane.b32.xlu0 %v1536, 92
    %v1539 = vpop.permute.xlu0 %1538
    %v1540 = vrot.slane %v1539, 2
    %v1541 = vsel %vm347, %v1539, %v1540
    %v1543 = vadd.f32 %v1503, %v1541
    %s1544 = sld [smem:[#allocation16 + $0x57]]
    %v1545 = vstv %s1544
    %v1546 = vmul.f32 %v1545, %v1307
    %1548 = vrot.lane.b32.xlu0 %v1546, 92
    %v1549 = vpop.permute.xlu0 %1548
    %v1550 = vrot.slane %v1549, 2
    %v1551 = vsel %vm347, %v1549, %v1550
    %v1553 = vadd.f32 %v1513, %v1551
    %s1554 = sld [smem:[#allocation16 + $0x7b]]
    %v1555 = vstv %s1554
    %v1556 = vmul.f32 %v1555, %v1307
    %1558 = vrot.lane.b32.xlu0 %v1556, 92
    %v1559 = vpop.permute.xlu0 %1558
    %v1560 = vrot.slane %v1559, 2
    %v1561 = vsel %vm347, %v1559, %v1560
    %v1563 = vadd.f32 %v1523, %v1561
    %s1564 = sld [smem:[#allocation16 + $0x10]]
    %v1565 = vstv %s1564
    %v1566 = vmul.f32 %v1565, %v1307
    %1568 = vrot.lane.b32.xlu0 %v1566, 91
    %v1569 = vpop.permute.xlu0 %1568
    %v1570 = vrot.slane %v1569, 2
    %v1571 = vsel %vm388, %v1569, %v1570
    %v1573 = vadd.f32 %v1533, %v1571
    %s1574 = sld [smem:[#allocation16 + $0x34]]
    %v1575 = vstv %s1574
    %v1576 = vmul.f32 %v1575, %v1307
    %1578 = vrot.lane.b32.xlu0 %v1576, 91
    %v1579 = vpop.permute.xlu0 %1578
    %v1580 = vrot.slane %v1579, 2
    %v1581 = vsel %vm388, %v1579, %v1580
    %v1583 = vadd.f32 %v1543, %v1581
    %s1584 = sld [smem:[#allocation16 + $0x58]]
    %v1585 = vstv %s1584
    %v1586 = vmul.f32 %v1585, %v1307
    %1588 = vrot.lane.b32.xlu0 %v1586, 91
    %v1589 = vpop.permute.xlu0 %1588
    %v1590 = vrot.slane %v1589, 2
    %v1591 = vsel %vm388, %v1589, %v1590
    %v1593 = vadd.f32 %v1553, %v1591
    %s1594 = sld [smem:[#allocation16 + $0x7c]]
    %v1595 = vstv %s1594
    %v1596 = vmul.f32 %v1595, %v1307
    %1598 = vrot.lane.b32.xlu0 %v1596, 91
    %v1599 = vpop.permute.xlu0 %1598
    %v1600 = vrot.slane %v1599, 2
    %v1601 = vsel %vm388, %v1599, %v1600
    %v1603 = vadd.f32 %v1563, %v1601
    %s1604 = sld [smem:[#allocation16 + $0x11]]
    %v1605 = vstv %s1604
    %v1606 = vmul.f32 %v1605, %v1307
    %1608 = vrot.lane.b32.xlu0 %v1606, 90
    %v1609 = vpop.permute.xlu0 %1608
    %v1610 = vrot.slane %v1609, 2
    %v1611 = vsel %vm429, %v1609, %v1610
    %v1613 = vadd.f32 %v1573, %v1611
    %s1614 = sld [smem:[#allocation16 + $0x35]]
    %v1615 = vstv %s1614
    %v1616 = vmul.f32 %v1615, %v1307
    %1618 = vrot.lane.b32.xlu0 %v1616, 90
    %v1619 = vpop.permute.xlu0 %1618
    %v1620 = vrot.slane %v1619, 2
    %v1621 = vsel %vm429, %v1619, %v1620
    %v1623 = vadd.f32 %v1583, %v1621
    %s1624 = sld [smem:[#allocation16 + $0x59]]
    %v1625 = vstv %s1624
    %v1626 = vmul.f32 %v1625, %v1307
    %1628 = vrot.lane.b32.xlu0 %v1626, 90
    %v1629 = vpop.permute.xlu0 %1628
    %v1630 = vrot.slane %v1629, 2
    %v1631 = vsel %vm429, %v1629, %v1630
    %v1633 = vadd.f32 %v1593, %v1631
    %s1634 = sld [smem:[#allocation16 + $0x7d]]
    %v1635 = vstv %s1634
    %v1636 = vmul.f32 %v1635, %v1307
    %1638 = vrot.lane.b32.xlu0 %v1636, 90
    %v1639 = vpop.permute.xlu0 %1638
    %v1640 = vrot.slane %v1639, 2
    %v1641 = vsel %vm429, %v1639, %v1640
    %v1643 = vadd.f32 %v1603, %v1641
    %v1644 = vld [vmem:[%s944] sm:$0x3f]
    %s1645 = sld [smem:[#allocation16 + $0x12]]
    %v1646 = vstv %s1645
    %v1647 = vmul.f32 %v1646, %v1644
    %v1648 = vadd.f32 %v1613, %v1647
    %s1649 = sld [smem:[#allocation16 + $0x36]]
    %v1650 = vstv %s1649
    %v1651 = vmul.f32 %v1650, %v1644
    %v1652 = vadd.f32 %v1623, %v1651
    %s1653 = sld [smem:[#allocation16 + $0x5a]]
    %v1654 = vstv %s1653
    %v1655 = vmul.f32 %v1654, %v1644
    %v1656 = vadd.f32 %v1633, %v1655
    %s1657 = sld [smem:[#allocation16 + $0x7e]]
    %v1658 = vstv %s1657
    %v1659 = vmul.f32 %v1658, %v1644
    %v1660 = vadd.f32 %v1643, %v1659
    %s1661 = sld [smem:[#allocation16 + $0x13]]
    %v1662 = vstv %s1661
    %v1663 = vmul.f32 %v1662, %v1644
    %1665 = vrot.lane.b32.xlu0 %v1663, 127
    %v1666 = vpop.permute.xlu0 %1665
    %v1667 = vrot.slane %v1666, 2
    %v1668 = vsel %vm142, %v1666, %v1667
    %v1670 = vadd.f32 %v1648, %v1668
    %s1671 = sld [smem:[#allocation16 + $0x37]]
    %v1672 = vstv %s1671
    %v1673 = vmul.f32 %v1672, %v1644
    %1675 = vrot.lane.b32.xlu0 %v1673, 127
    %v1676 = vpop.permute.xlu0 %1675
    %v1677 = vrot.slane %v1676, 2
    %v1678 = vsel %vm142, %v1676, %v1677
    %v1680 = vadd.f32 %v1652, %v1678
    %s1681 = sld [smem:[#allocation16 + $0x5b]]
    %v1682 = vstv %s1681
    %v1683 = vmul.f32 %v1682, %v1644
    %1685 = vrot.lane.b32.xlu0 %v1683, 127
    %v1686 = vpop.permute.xlu0 %1685
    %v1687 = vrot.slane %v1686, 2
    %v1688 = vsel %vm142, %v1686, %v1687
    %v1690 = vadd.f32 %v1656, %v1688
    %s1691 = sld [smem:[#allocation16 + $0x7f]]
    %v1692 = vstv %s1691
    %v1693 = vmul.f32 %v1692, %v1644
    %1695 = vrot.lane.b32.xlu0 %v1693, 127
    %v1696 = vpop.permute.xlu0 %1695
    %v1697 = vrot.slane %v1696, 2
    %v1698 = vsel %vm142, %v1696, %v1697
    %v1700 = vadd.f32 %v1660, %v1698
    %s1701 = sld [smem:[#allocation16 + $0x14]]
    %v1702 = vstv %s1701
    %v1703 = vmul.f32 %v1702, %v1644
    %1705 = vrot.lane.b32.xlu0 %v1703, 126
    %v1706 = vpop.permute.xlu0 %1705
    %v1707 = vrot.slane %v1706, 2
    %v1708 = vsel %vm183, %v1706, %v1707
    %v1710 = vadd.f32 %v1670, %v1708
    %s1711 = sld [smem:[#allocation16 + $0x38]]
    %v1712 = vstv %s1711
    %v1713 = vmul.f32 %v1712, %v1644
    %1715 = vrot.lane.b32.xlu0 %v1713, 126
    %v1716 = vpop.permute.xlu0 %1715
    %v1717 = vrot.slane %v1716, 2
    %v1718 = vsel %vm183, %v1716, %v1717
    %v1720 = vadd.f32 %v1680, %v1718
    %s1721 = sld [smem:[#allocation16 + $0x5c]]
    %v1722 = vstv %s1721
    %v1723 = vmul.f32 %v1722, %v1644
    %1725 = vrot.lane.b32.xlu0 %v1723, 126
    %v1726 = vpop.permute.xlu0 %1725
    %v1727 = vrot.slane %v1726, 2
    %v1728 = vsel %vm183, %v1726, %v1727
    %v1730 = vadd.f32 %v1690, %v1728
    %s1731 = sld [smem:[#allocation16 + $0x80]]
    %v1732 = vstv %s1731
    %v1733 = vmul.f32 %v1732, %v1644
    %1735 = vrot.lane.b32.xlu0 %v1733, 126
    %v1736 = vpop.permute.xlu0 %1735
    %v1737 = vrot.slane %v1736, 2
    %v1738 = vsel %vm183, %v1736, %v1737
    %v1740 = vadd.f32 %v1700, %v1738
    %s1741 = sld [smem:[#allocation16 + $0x15]]
    %v1742 = vstv %s1741
    %v1743 = vmul.f32 %v1742, %v1644
    %1745 = vrot.lane.b32.xlu0 %v1743, 110
    %v1746 = vpop.permute.xlu0 %1745
    %v1747 = vrot.slane %v1746, 2
    %v1748 = vsel %vm224, %v1746, %v1747
    %v1750 = vadd.f32 %v1710, %v1748
    %s1751 = sld [smem:[#allocation16 + $0x39]]
    %v1752 = vstv %s1751
    %v1753 = vmul.f32 %v1752, %v1644
    %1755 = vrot.lane.b32.xlu0 %v1753, 110
    %v1756 = vpop.permute.xlu0 %1755
    %v1757 = vrot.slane %v1756, 2
    %v1758 = vsel %vm224, %v1756, %v1757
    %v1760 = vadd.f32 %v1720, %v1758
    %s1761 = sld [smem:[#allocation16 + $0x5d]]
    %v1762 = vstv %s1761
    %v1763 = vmul.f32 %v1762, %v1644
    %1765 = vrot.lane.b32.xlu0 %v1763, 110
    %v1766 = vpop.permute.xlu0 %1765
    %v1767 = vrot.slane %v1766, 2
    %v1768 = vsel %vm224, %v1766, %v1767
    %v1770 = vadd.f32 %v1730, %v1768
    %s1771 = sld [smem:[#allocation16 + $0x81]]
    %v1772 = vstv %s1771
    %v1773 = vmul.f32 %v1772, %v1644
    %1775 = vrot.lane.b32.xlu0 %v1773, 110
    %v1776 = vpop.permute.xlu0 %1775
    %v1777 = vrot.slane %v1776, 2
    %v1778 = vsel %vm224, %v1776, %v1777
    %v1780 = vadd.f32 %v1740, %v1778
    %s1781 = sld [smem:[#allocation16 + $0x16]]
    %v1782 = vstv %s1781
    %v1783 = vmul.f32 %v1782, %v1644
    %1785 = vrot.lane.b32.xlu0 %v1783, 109
    %v1786 = vpop.permute.xlu0 %1785
    %v1787 = vrot.slane %v1786, 2
    %v1788 = vsel %vm265, %v1786, %v1787
    %v1790 = vadd.f32 %v1750, %v1788
    %s1791 = sld [smem:[#allocation16 + $0x3a]]
    %v1792 = vstv %s1791
    %v1793 = vmul.f32 %v1792, %v1644
    %1795 = vrot.lane.b32.xlu0 %v1793, 109
    %v1796 = vpop.permute.xlu0 %1795
    %v1797 = vrot.slane %v1796, 2
    %v1798 = vsel %vm265, %v1796, %v1797
    %v1800 = vadd.f32 %v1760, %v1798
    %s1801 = sld [smem:[#allocation16 + $0x5e]]
    %v1802 = vstv %s1801
    %v1803 = vmul.f32 %v1802, %v1644
    %1805 = vrot.lane.b32.xlu0 %v1803, 109
    %v1806 = vpop.permute.xlu0 %1805
    %v1807 = vrot.slane %v1806, 2
    %v1808 = vsel %vm265, %v1806, %v1807
    %v1810 = vadd.f32 %v1770, %v1808
    %s1811 = sld [smem:[#allocation16 + $0x82]]
    %v1812 = vstv %s1811
    %v1813 = vmul.f32 %v1812, %v1644
    %1815 = vrot.lane.b32.xlu0 %v1813, 109
    %v1816 = vpop.permute.xlu0 %1815
    %v1817 = vrot.slane %v1816, 2
    %v1818 = vsel %vm265, %v1816, %v1817
    %v1820 = vadd.f32 %v1780, %v1818
    %s1821 = sld [smem:[#allocation16 + $0x17]]
    %v1822 = vstv %s1821
    %v1823 = vmul.f32 %v1822, %v1644
    %1825 = vrot.lane.b32.xlu0 %v1823, 108
    %v1826 = vpop.permute.xlu0 %1825
    %v1827 = vrot.slane %v1826, 2
    %v1828 = vsel %vm306, %v1826, %v1827
    %v1830 = vadd.f32 %v1790, %v1828
    %s1831 = sld [smem:[#allocation16 + $0x3b]]
    %v1832 = vstv %s1831
    %v1833 = vmul.f32 %v1832, %v1644
    %1835 = vrot.lane.b32.xlu0 %v1833, 108
    %v1836 = vpop.permute.xlu0 %1835
    %v1837 = vrot.slane %v1836, 2
    %v1838 = vsel %vm306, %v1836, %v1837
    %v1840 = vadd.f32 %v1800, %v1838
    %s1841 = sld [smem:[#allocation16 + $0x5f]]
    %v1842 = vstv %s1841
    %v1843 = vmul.f32 %v1842, %v1644
    %1845 = vrot.lane.b32.xlu0 %v1843, 108
    %v1846 = vpop.permute.xlu0 %1845
    %v1847 = vrot.slane %v1846, 2
    %v1848 = vsel %vm306, %v1846, %v1847
    %v1850 = vadd.f32 %v1810, %v1848
    %s1851 = sld [smem:[#allocation16 + $0x83]]
    %v1852 = vstv %s1851
    %v1853 = vmul.f32 %v1852, %v1644
    %1855 = vrot.lane.b32.xlu0 %v1853, 108
    %v1856 = vpop.permute.xlu0 %1855
    %v1857 = vrot.slane %v1856, 2
    %v1858 = vsel %vm306, %v1856, %v1857
    %v1860 = vadd.f32 %v1820, %v1858
    %s1861 = sld [smem:[#allocation16 + $0x18]]
    %v1862 = vstv %s1861
    %v1863 = vmul.f32 %v1862, %v1644
    %1865 = vrot.lane.b32.xlu0 %v1863, 92
    %v1866 = vpop.permute.xlu0 %1865
    %v1867 = vrot.slane %v1866, 2
    %v1868 = vsel %vm347, %v1866, %v1867
    %v1870 = vadd.f32 %v1830, %v1868
    %s1871 = sld [smem:[#allocation16 + $0x3c]]
    %v1872 = vstv %s1871
    %v1873 = vmul.f32 %v1872, %v1644
    %1875 = vrot.lane.b32.xlu0 %v1873, 92
    %v1876 = vpop.permute.xlu0 %1875
    %v1877 = vrot.slane %v1876, 2
    %v1878 = vsel %vm347, %v1876, %v1877
    %v1880 = vadd.f32 %v1840, %v1878
    %s1881 = sld [smem:[#allocation16 + $0x60]]
    %v1882 = vstv %s1881
    %v1883 = vmul.f32 %v1882, %v1644
    %1885 = vrot.lane.b32.xlu0 %v1883, 92
    %v1886 = vpop.permute.xlu0 %1885
    %v1887 = vrot.slane %v1886, 2
    %v1888 = vsel %vm347, %v1886, %v1887
    %v1890 = vadd.f32 %v1850, %v1888
    %s1891 = sld [smem:[#allocation16 + $0x84]]
    %v1892 = vstv %s1891
    %v1893 = vmul.f32 %v1892, %v1644
    %1895 = vrot.lane.b32.xlu0 %v1893, 92
    %v1896 = vpop.permute.xlu0 %1895
    %v1897 = vrot.slane %v1896, 2
    %v1898 = vsel %vm347, %v1896, %v1897
    %v1900 = vadd.f32 %v1860, %v1898
    %s1901 = sld [smem:[#allocation16 + $0x19]]
    %v1902 = vstv %s1901
    %v1903 = vmul.f32 %v1902, %v1644
    %1905 = vrot.lane.b32.xlu0 %v1903, 91
    %v1906 = vpop.permute.xlu0 %1905
    %v1907 = vrot.slane %v1906, 2
    %v1908 = vsel %vm388, %v1906, %v1907
    %v1910 = vadd.f32 %v1870, %v1908
    %s1911 = sld [smem:[#allocation16 + $0x3d]]
    %v1912 = vstv %s1911
    %v1913 = vmul.f32 %v1912, %v1644
    %1915 = vrot.lane.b32.xlu0 %v1913, 91
    %v1916 = vpop.permute.xlu0 %1915
    %v1917 = vrot.slane %v1916, 2
    %v1918 = vsel %vm388, %v1916, %v1917
    %v1920 = vadd.f32 %v1880, %v1918
    %s1921 = sld [smem:[#allocation16 + $0x61]]
    %v1922 = vstv %s1921
    %v1923 = vmul.f32 %v1922, %v1644
    %1925 = vrot.lane.b32.xlu0 %v1923, 91
    %v1926 = vpop.permute.xlu0 %1925
    %v1927 = vrot.slane %v1926, 2
    %v1928 = vsel %vm388, %v1926, %v1927
    %v1930 = vadd.f32 %v1890, %v1928
    %s1931 = sld [smem:[#allocation16 + $0x85]]
    %v1932 = vstv %s1931
    %v1933 = vmul.f32 %v1932, %v1644
    %1935 = vrot.lane.b32.xlu0 %v1933, 91
    %v1936 = vpop.permute.xlu0 %1935
    %v1937 = vrot.slane %v1936, 2
    %v1938 = vsel %vm388, %v1936, %v1937
    %v1940 = vadd.f32 %v1900, %v1938
    %s1941 = sld [smem:[#allocation16 + $0x1a]]
    %v1942 = vstv %s1941
    %v1943 = vmul.f32 %v1942, %v1644
    %1945 = vrot.lane.b32.xlu0 %v1943, 90
    %v1946 = vpop.permute.xlu0 %1945
    %v1947 = vrot.slane %v1946, 2
    %v1948 = vsel %vm429, %v1946, %v1947
    %v1950 = vadd.f32 %v1910, %v1948
    %s1951 = sld [smem:[#allocation16 + $0x3e]]
    %v1952 = vstv %s1951
    %v1953 = vmul.f32 %v1952, %v1644
    %1955 = vrot.lane.b32.xlu0 %v1953, 90
    %v1956 = vpop.permute.xlu0 %1955
    %v1957 = vrot.slane %v1956, 2
    %v1958 = vsel %vm429, %v1956, %v1957
    %v1960 = vadd.f32 %v1920, %v1958
    %s1961 = sld [smem:[#allocation16 + $0x62]]
    %v1962 = vstv %s1961
    %v1963 = vmul.f32 %v1962, %v1644
    %1965 = vrot.lane.b32.xlu0 %v1963, 90
    %v1966 = vpop.permute.xlu0 %1965
    %v1967 = vrot.slane %v1966, 2
    %v1968 = vsel %vm429, %v1966, %v1967
    %v1970 = vadd.f32 %v1930, %v1968
    %s1971 = sld [smem:[#allocation16 + $0x86]]
    %v1972 = vstv %s1971
    %v1973 = vmul.f32 %v1972, %v1644
    %1975 = vrot.lane.b32.xlu0 %v1973, 90
    %v1976 = vpop.permute.xlu0 %1975
    %v1977 = vrot.slane %v1976, 2
    %v1978 = vsel %vm429, %v1976, %v1977
    %v1980 = vadd.f32 %v1940, %v1978
    %v1981 = vld [vmem:[%s972] sm:$0x3f]
    %s1982 = sld [smem:[#allocation16 + $0x1b]]
    %v1983 = vstv %s1982
    %v1984 = vmul.f32 %v1983, %v1981
    %v1985 = vadd.f32 %v1950, %v1984
    %s1986 = sld [smem:[#allocation16 + $0x3f]]
    %v1987 = vstv %s1986
    %v1988 = vmul.f32 %v1987, %v1981
    %v1989 = vadd.f32 %v1960, %v1988
    %s1990 = sld [smem:[#allocation16 + $0x63]]
    %v1991 = vstv %s1990
    %v1992 = vmul.f32 %v1991, %v1981
    %v1993 = vadd.f32 %v1970, %v1992
    %s1994 = sld [smem:[#allocation16 + $0x87]]
    %v1995 = vstv %s1994
    %v1996 = vmul.f32 %v1995, %v1981
    %v1997 = vadd.f32 %v1980, %v1996
    %s1998 = sld [smem:[#allocation16 + $0x1c]]
    %v1999 = vstv %s1998
    %v2000 = vmul.f32 %v1999, %v1981
    %2002 = vrot.lane.b32.xlu0 %v2000, 127
    %v2003 = vpop.permute.xlu0 %2002
    %v2004 = vrot.slane %v2003, 2
    %v2005 = vsel %vm142, %v2003, %v2004
    %v2007 = vadd.f32 %v1985, %v2005
    %s2008 = sld [smem:[#allocation16 + $0x40]]
    %v2009 = vstv %s2008
    %v2010 = vmul.f32 %v2009, %v1981
    %2012 = vrot.lane.b32.xlu0 %v2010, 127
    %v2013 = vpop.permute.xlu0 %2012
    %v2014 = vrot.slane %v2013, 2
    %v2015 = vsel %vm142, %v2013, %v2014
    %v2017 = vadd.f32 %v1989, %v2015
    %s2018 = sld [smem:[#allocation16 + $0x64]]
    %v2019 = vstv %s2018
    %v2020 = vmul.f32 %v2019, %v1981
    %2022 = vrot.lane.b32.xlu0 %v2020, 127
    %v2023 = vpop.permute.xlu0 %2022
    %v2024 = vrot.slane %v2023, 2
    %v2025 = vsel %vm142, %v2023, %v2024
    %v2027 = vadd.f32 %v1993, %v2025
    %s2028 = sld [smem:[#allocation16 + $0x88]]
    %v2029 = vstv %s2028
    %v2030 = vmul.f32 %v2029, %v1981
    %2032 = vrot.lane.b32.xlu0 %v2030, 127
    %v2033 = vpop.permute.xlu0 %2032
    %v2034 = vrot.slane %v2033, 2
    %v2035 = vsel %vm142, %v2033, %v2034
    %v2037 = vadd.f32 %v1997, %v2035
    %s2038 = sld [smem:[#allocation16 + $0x1d]]
    %v2039 = vstv %s2038
    %v2040 = vmul.f32 %v2039, %v1981
    %2042 = vrot.lane.b32.xlu0 %v2040, 126
    %v2043 = vpop.permute.xlu0 %2042
    %v2044 = vrot.slane %v2043, 2
    %v2045 = vsel %vm183, %v2043, %v2044
    %v2047 = vadd.f32 %v2007, %v2045
    %s2048 = sld [smem:[#allocation16 + $0x41]]
    %v2049 = vstv %s2048
    %v2050 = vmul.f32 %v2049, %v1981
    %2052 = vrot.lane.b32.xlu0 %v2050, 126
    %v2053 = vpop.permute.xlu0 %2052
    %v2054 = vrot.slane %v2053, 2
    %v2055 = vsel %vm183, %v2053, %v2054
    %v2057 = vadd.f32 %v2017, %v2055
    %s2058 = sld [smem:[#allocation16 + $0x65]]
    %v2059 = vstv %s2058
    %v2060 = vmul.f32 %v2059, %v1981
    %2062 = vrot.lane.b32.xlu0 %v2060, 126
    %v2063 = vpop.permute.xlu0 %2062
    %v2064 = vrot.slane %v2063, 2
    %v2065 = vsel %vm183, %v2063, %v2064
    %v2067 = vadd.f32 %v2027, %v2065
    %s2068 = sld [smem:[#allocation16 + $0x89]]
    %v2069 = vstv %s2068
    %v2070 = vmul.f32 %v2069, %v1981
    %2072 = vrot.lane.b32.xlu0 %v2070, 126
    %v2073 = vpop.permute.xlu0 %2072
    %v2074 = vrot.slane %v2073, 2
    %v2075 = vsel %vm183, %v2073, %v2074
    %v2077 = vadd.f32 %v2037, %v2075
    %s2078 = sld [smem:[#allocation16 + $0x1e]]
    %v2079 = vstv %s2078
    %v2080 = vmul.f32 %v2079, %v1981
    %2082 = vrot.lane.b32.xlu0 %v2080, 110
    %v2083 = vpop.permute.xlu0 %2082
    %v2084 = vrot.slane %v2083, 2
    %v2085 = vsel %vm224, %v2083, %v2084
    %v2087 = vadd.f32 %v2047, %v2085
    %s2088 = sld [smem:[#allocation16 + $0x42]]
    %v2089 = vstv %s2088
    %v2090 = vmul.f32 %v2089, %v1981
    %2092 = vrot.lane.b32.xlu0 %v2090, 110
    %v2093 = vpop.permute.xlu0 %2092
    %v2094 = vrot.slane %v2093, 2
    %v2095 = vsel %vm224, %v2093, %v2094
    %v2097 = vadd.f32 %v2057, %v2095
    %s2098 = sld [smem:[#allocation16 + $0x66]]
    %v2099 = vstv %s2098
    %v2100 = vmul.f32 %v2099, %v1981
    %2102 = vrot.lane.b32.xlu0 %v2100, 110
    %v2103 = vpop.permute.xlu0 %2102
    %v2104 = vrot.slane %v2103, 2
    %v2105 = vsel %vm224, %v2103, %v2104
    %v2107 = vadd.f32 %v2067, %v2105
    %s2108 = sld [smem:[#allocation16 + $0x8a]]
    %v2109 = vstv %s2108
    %v2110 = vmul.f32 %v2109, %v1981
    %2112 = vrot.lane.b32.xlu0 %v2110, 110
    %v2113 = vpop.permute.xlu0 %2112
    %v2114 = vrot.slane %v2113, 2
    %v2115 = vsel %vm224, %v2113, %v2114
    %v2117 = vadd.f32 %v2077, %v2115
    %s2118 = sld [smem:[#allocation16 + $0x1f]]
    %v2119 = vstv %s2118
    %v2120 = vmul.f32 %v2119, %v1981
    %2122 = vrot.lane.b32.xlu0 %v2120, 109
    %v2123 = vpop.permute.xlu0 %2122
    %v2124 = vrot.slane %v2123, 2
    %v2125 = vsel %vm265, %v2123, %v2124
    %v2127 = vadd.f32 %v2087, %v2125
    %s2128 = sld [smem:[#allocation16 + $0x43]]
    %v2129 = vstv %s2128
    %v2130 = vmul.f32 %v2129, %v1981
    %2132 = vrot.lane.b32.xlu0 %v2130, 109
    %v2133 = vpop.permute.xlu0 %2132
    %v2134 = vrot.slane %v2133, 2
    %v2135 = vsel %vm265, %v2133, %v2134
    %v2137 = vadd.f32 %v2097, %v2135
    %s2138 = sld [smem:[#allocation16 + $0x67]]
    %v2139 = vstv %s2138
    %v2140 = vmul.f32 %v2139, %v1981
    %2142 = vrot.lane.b32.xlu0 %v2140, 109
    %v2143 = vpop.permute.xlu0 %2142
    %v2144 = vrot.slane %v2143, 2
    %v2145 = vsel %vm265, %v2143, %v2144
    %v2147 = vadd.f32 %v2107, %v2145
    %s2148 = sld [smem:[#allocation16 + $0x8b]]
    %v2149 = vstv %s2148
    %v2150 = vmul.f32 %v2149, %v1981
    %2152 = vrot.lane.b32.xlu0 %v2150, 109
    %v2153 = vpop.permute.xlu0 %2152
    %v2154 = vrot.slane %v2153, 2
    %v2155 = vsel %vm265, %v2153, %v2154
    %v2157 = vadd.f32 %v2117, %v2155
    %s2158 = sld [smem:[#allocation16 + $0x20]]
    %v2159 = vstv %s2158
    %v2160 = vmul.f32 %v2159, %v1981
    %2162 = vrot.lane.b32.xlu0 %v2160, 108
    %v2163 = vpop.permute.xlu0 %2162
    %v2164 = vrot.slane %v2163, 2
    %v2165 = vsel %vm306, %v2163, %v2164
    %v2167 = vadd.f32 %v2127, %v2165
    %s2168 = sld [smem:[#allocation16 + $0x44]]
    %v2169 = vstv %s2168
    %v2170 = vmul.f32 %v2169, %v1981
    %2172 = vrot.lane.b32.xlu0 %v2170, 108
    %v2173 = vpop.permute.xlu0 %2172
    %v2174 = vrot.slane %v2173, 2
    %v2175 = vsel %vm306, %v2173, %v2174
    %v2177 = vadd.f32 %v2137, %v2175
    %s2178 = sld [smem:[#allocation16 + $0x68]]
    %v2179 = vstv %s2178
    %v2180 = vmul.f32 %v2179, %v1981
    %2182 = vrot.lane.b32.xlu0 %v2180, 108
    %v2183 = vpop.permute.xlu0 %2182
    %v2184 = vrot.slane %v2183, 2
    %v2185 = vsel %vm306, %v2183, %v2184
    %v2187 = vadd.f32 %v2147, %v2185
    %s2188 = sld [smem:[#allocation16 + $0x8c]]
    %v2189 = vstv %s2188
    %v2190 = vmul.f32 %v2189, %v1981
    %2192 = vrot.lane.b32.xlu0 %v2190, 108
    %v2193 = vpop.permute.xlu0 %2192
    %v2194 = vrot.slane %v2193, 2
    %v2195 = vsel %vm306, %v2193, %v2194
    %v2197 = vadd.f32 %v2157, %v2195
    %s2198 = sld [smem:[#allocation16 + $0x21]]
    %v2199 = vstv %s2198
    %v2200 = vmul.f32 %v2199, %v1981
    %2202 = vrot.lane.b32.xlu0 %v2200, 92
    %v2203 = vpop.permute.xlu0 %2202
    %v2204 = vrot.slane %v2203, 2
    %v2205 = vsel %vm347, %v2203, %v2204
    %v2207 = vadd.f32 %v2167, %v2205
    %s2208 = sld [smem:[#allocation16 + $0x45]]
    %v2209 = vstv %s2208
    %v2210 = vmul.f32 %v2209, %v1981
    %2212 = vrot.lane.b32.xlu0 %v2210, 92
    %v2213 = vpop.permute.xlu0 %2212
    %v2214 = vrot.slane %v2213, 2
    %v2215 = vsel %vm347, %v2213, %v2214
    %v2217 = vadd.f32 %v2177, %v2215
    %s2218 = sld [smem:[#allocation16 + $0x69]]
    %v2219 = vstv %s2218
    %v2220 = vmul.f32 %v2219, %v1981
    %2222 = vrot.lane.b32.xlu0 %v2220, 92
    %v2223 = vpop.permute.xlu0 %2222
    %v2224 = vrot.slane %v2223, 2
    %v2225 = vsel %vm347, %v2223, %v2224
    %v2227 = vadd.f32 %v2187, %v2225
    %s2228 = sld [smem:[#allocation16 + $0x8d]]
    %v2229 = vstv %s2228
    %v2230 = vmul.f32 %v2229, %v1981
    %2232 = vrot.lane.b32.xlu0 %v2230, 92
    %v2233 = vpop.permute.xlu0 %2232
    %v2234 = vrot.slane %v2233, 2
    %v2235 = vsel %vm347, %v2233, %v2234
    %v2237 = vadd.f32 %v2197, %v2235
    %s2238 = sld [smem:[#allocation16 + $0x22]]
    %v2239 = vstv %s2238
    %v2240 = vmul.f32 %v2239, %v1981
    %2242 = vrot.lane.b32.xlu0 %v2240, 91
    %v2243 = vpop.permute.xlu0 %2242
    %v2244 = vrot.slane %v2243, 2
    %v2245 = vsel %vm388, %v2243, %v2244
    %v2247 = vadd.f32 %v2207, %v2245
    %s2248 = sld [smem:[#allocation16 + $0x46]]
    %v2249 = vstv %s2248
    %v2250 = vmul.f32 %v2249, %v1981
    %2252 = vrot.lane.b32.xlu0 %v2250, 91
    %v2253 = vpop.permute.xlu0 %2252
    %v2254 = vrot.slane %v2253, 2
    %v2255 = vsel %vm388, %v2253, %v2254
    %v2257 = vadd.f32 %v2217, %v2255
    %s2258 = sld [smem:[#allocation16 + $0x6a]]
    %v2259 = vstv %s2258
    %v2260 = vmul.f32 %v2259, %v1981
    %2262 = vrot.lane.b32.xlu0 %v2260, 91
    %v2263 = vpop.permute.xlu0 %2262
    %v2264 = vrot.slane %v2263, 2
    %v2265 = vsel %vm388, %v2263, %v2264
    %v2267 = vadd.f32 %v2227, %v2265
    %s2268 = sld [smem:[#allocation16 + $0x8e]]
    %v2269 = vstv %s2268
    %v2270 = vmul.f32 %v2269, %v1981
    %2272 = vrot.lane.b32.xlu0 %v2270, 91
    %v2273 = vpop.permute.xlu0 %2272
    %v2274 = vrot.slane %v2273, 2
    %v2275 = vsel %vm388, %v2273, %v2274
    %v2277 = vadd.f32 %v2237, %v2275
    %s2278 = sld [smem:[#allocation16 + $0x23]]
    %v2279 = vstv %s2278
    %v2280 = vmul.f32 %v2279, %v1981
    %2282 = vrot.lane.b32.xlu0 %v2280, 90
    %v2283 = vpop.permute.xlu0 %2282
    %v2284 = vrot.slane %v2283, 2
    %v2285 = vsel %vm429, %v2283, %v2284
    %v2287 = vadd.f32 %v2247, %v2285
    %s2288 = sld [smem:[#allocation16 + $0x47]]
    %v2289 = vstv %s2288
    %v2290 = vmul.f32 %v2289, %v1981
    %2292 = vrot.lane.b32.xlu0 %v2290, 90
    %v2293 = vpop.permute.xlu0 %2292
    %v2294 = vrot.slane %v2293, 2
    %v2295 = vsel %vm429, %v2293, %v2294
    %v2297 = vadd.f32 %v2257, %v2295
    %s2298 = sld [smem:[#allocation16 + $0x6b]]
    %v2299 = vstv %s2298
    %v2300 = vmul.f32 %v2299, %v1981
    %2302 = vrot.lane.b32.xlu0 %v2300, 90
    %v2303 = vpop.permute.xlu0 %2302
    %v2304 = vrot.slane %v2303, 2
    %v2305 = vsel %vm429, %v2303, %v2304
    %v2307 = vadd.f32 %v2267, %v2305
    %s2308 = sld [smem:[#allocation16 + $0x8f]]
    %v2309 = vstv %s2308
    %v2310 = vmul.f32 %v2309, %v1981
    %2312 = vrot.lane.b32.xlu0 %v2310, 90
    %v2313 = vpop.permute.xlu0 %2312
    %v2314 = vrot.slane %v2313, 2
    %v2315 = vsel %vm429, %v2313, %v2314
    %v2317 = vadd.f32 %v2277, %v2315
    %s2318 = sld [smem:[#allocation3]]
    %v2319 = vld [vmem:[#allocation8] sm:$0x7]
    %v2321 = vlaneseq
    %v2322 = vshrl.u32 %v2321, 7
    %v2323 = vsub.s32 0, %v2322
    %v2324 = vrot.slane %v2319, %v2323
    %v2325 = vlaneseq
    %v2326 = vshrl.u32 %v2325, 7
    %v2327 = vsub.s32 1, %v2326
    %v2328 = vrot.slane %v2319, %v2327
    %v2329 = vlaneseq
    %v2330 = vshrl.u32 %v2329, 7
    %v2331 = vsub.s32 2, %v2330
    %v2332 = vrot.slane %v2319, %v2331
    %v2333 = vcombine.low %v2324, %v2328
    %v2335 = vunpack.c.l.s4 1983009808
    %v2336 = vunpack.c.0.s8 %v2335
    %v2337 = vlaneseq
    %v2338 = vshrl.u32 %v2337, 7
    %v2339 = vsub.s32 %v2336, %v2338
    %v2340 = vrot.slane %v2333, %v2339
    %v2342 = vunpack.c.l.s4 1983009808
    %v2343 = vunpack.c.0.s8 %v2342
    %v2344 = vlaneseq
    %v2345 = vshrl.u32 %v2344, 7
    %v2346 = vsub.s32 %v2343, %v2345
    %v2347 = vrot.slane %v2332, %v2346
    %v2348 = vcombine.low %v2340, %v2347
    %v2350 = vadd.f32 %v2287, %v2348
    %vm2351 = vcmask 1041408
    %vm2352 = vmor %vm885, %vm2351
    %vm2353 = vcmask 553988
    %vm2354 = vmor %vm2353, %vm2352
    %2355 = vst.msk [vmem:[#allocation17] sm:$0x3f] %vm2354, %v2350
    %s2356 = scalar_lea.vmem [#allocation8], 3
    %v2357 = vld [vmem:[%s2356] sm:$0x7]
    %v2359 = vlaneseq
    %v2360 = vshrl.u32 %v2359, 7
    %v2361 = vsub.s32 0, %v2360
    %v2362 = vrot.slane %v2357, %v2361
    %v2363 = vlaneseq
    %v2364 = vshrl.u32 %v2363, 7
    %v2365 = vsub.s32 1, %v2364
    %v2366 = vrot.slane %v2357, %v2365
    %v2367 = vlaneseq
    %v2368 = vshrl.u32 %v2367, 7
    %v2369 = vsub.s32 2, %v2368
    %v2370 = vrot.slane %v2357, %v2369
    %v2371 = vcombine.low %v2362, %v2366
    %v2373 = vunpack.c.l.s4 1983009808
    %v2374 = vunpack.c.0.s8 %v2373
    %v2375 = vlaneseq
    %v2376 = vshrl.u32 %v2375, 7
    %v2377 = vsub.s32 %v2374, %v2376
    %v2378 = vrot.slane %v2371, %v2377
    %v2380 = vunpack.c.l.s4 1983009808
    %v2381 = vunpack.c.0.s8 %v2380
    %v2382 = vlaneseq
    %v2383 = vshrl.u32 %v2382, 7
    %v2384 = vsub.s32 %v2381, %v2383
    %v2385 = vrot.slane %v2370, %v2384
    %v2386 = vcombine.low %v2378, %v2385
    %v2388 = vadd.f32 %v2297, %v2386
    %s2389 = scalar_lea.vmem [#allocation17], 6
    %2390 = vst.msk [vmem:[%s2389] sm:$0x3f] %vm2354, %v2388
    %s2391 = scalar_lea.vmem [#allocation8], 6
    %v2392 = vld [vmem:[%s2391] sm:$0x7]
    %v2394 = vlaneseq
    %v2395 = vshrl.u32 %v2394, 7
    %v2396 = vsub.s32 0, %v2395
    %v2397 = vrot.slane %v2392, %v2396
    %v2398 = vlaneseq
    %v2399 = vshrl.u32 %v2398, 7
    %v2400 = vsub.s32 1, %v2399
    %v2401 = vrot.slane %v2392, %v2400
    %v2402 = vlaneseq
    %v2403 = vshrl.u32 %v2402, 7
    %v2404 = vsub.s32 2, %v2403
    %v2405 = vrot.slane %v2392, %v2404
    %v2406 = vcombine.low %v2397, %v2401
    %v2408 = vunpack.c.l.s4 1983009808
    %v2409 = vunpack.c.0.s8 %v2408
    %v2410 = vlaneseq
    %v2411 = vshrl.u32 %v2410, 7
    %v2412 = vsub.s32 %v2409, %v2411
    %v2413 = vrot.slane %v2406, %v2412
    %v2415 = vunpack.c.l.s4 1983009808
    %v2416 = vunpack.c.0.s8 %v2415
    %v2417 = vlaneseq
    %v2418 = vshrl.u32 %v2417, 7
    %v2419 = vsub.s32 %v2416, %v2418
    %v2420 = vrot.slane %v2405, %v2419
    %v2421 = vcombine.low %v2413, %v2420
    %v2423 = vadd.f32 %v2307, %v2421
    %v2424 = vtanh.pop %v2423
    %v2425 = vstv %s2318
    %v2426 = vmul.f32 %v2425, %v2424
    %s2427 = scalar_lea.vmem [#allocation17], 12
    %2428 = vst.msk [vmem:[%s2427] sm:$0x3f] %vm2354, %v2426
    %s2429 = scalar_lea.vmem [#allocation8], 9
    %v2430 = vld [vmem:[%s2429] sm:$0x7]
    %v2432 = vlaneseq
    %v2433 = vshrl.u32 %v2432, 7
    %v2434 = vsub.s32 0, %v2433
    %v2435 = vrot.slane %v2430, %v2434
    %v2436 = vlaneseq
    %v2437 = vshrl.u32 %v2436, 7
    %v2438 = vsub.s32 1, %v2437
    %v2439 = vrot.slane %v2430, %v2438
    %v2440 = vlaneseq
    %v2441 = vshrl.u32 %v2440, 7
    %v2442 = vsub.s32 2, %v2441
    %v2443 = vrot.slane %v2430, %v2442
    %v2444 = vcombine.low %v2435, %v2439
    %v2446 = vunpack.c.l.s4 1983009808
    %v2447 = vunpack.c.0.s8 %v2446
    %v2448 = vlaneseq
    %v2449 = vshrl.u32 %v2448, 7
    %v2450 = vsub.s32 %v2447, %v2449
    %v2451 = vrot.slane %v2444, %v2450
    %v2453 = vunpack.c.l.s4 1983009808
    %v2454 = vunpack.c.0.s8 %v2453
    %v2455 = vlaneseq
    %v2456 = vshrl.u32 %v2455, 7
    %v2457 = vsub.s32 %v2454, %v2456
    %v2458 = vrot.slane %v2443, %v2457
    %v2459 = vcombine.low %v2451, %v2458
    %v2461 = vadd.f32 %v2317, %v2459
    %v2462 = vtanh.pop %v2461
    %v2463 = vmul.f32 %v2425, %v2462
    %s2464 = scalar_lea.vmem [#allocation17], 18
    %2465 = vst.msk [vmem:[%s2464] sm:$0x3f] %vm2354, %v2463
    // Predicated region
    $region66: #{tpu_custom_call.1} parent=1 // pred_check
      _
    $region67: #{tpu_custom_call.1} parent=1 // pred_check_branch
      %2467 = sbr.rel (0) target = $region69
    $region68: #{tpu_custom_call.1} parent=1 // pred_region
      %s2469 = ssub.s32 384, 384
      %2470 = vsyncadd [#allocation6], %s2469
      %s2471 = sshll.u32 [#allocation17], 4
      %s2472 = int_to_ptr.vmem [resolvable:$true] %s2471
      %2477 = dma.vmem_to_hbm [thread:$0]  %s2472, 384, %s9, [#allocation6], 96, 96, 6
    $region69: #{tpu_custom_call.1} parent=1 // pred_fallthru
      _
    // Predicated region
    $region70: #{tpu_custom_call.1} parent=1 // pred_check
      _
    $region71: #{tpu_custom_call.1} parent=1 // pred_check_branch
      %2479 = sbr.rel (0) target = $region73
    $region72: #{tpu_custom_call.1} parent=1 // pred_region
      %2480 = dma.done [#allocation6], 384
    $region73: #{tpu_custom_call.1} parent=1 // pred_fallthru
      _
    %2481 = vsyncpa [#allocation5], 1
    %2482 = vsyncpa [#allocation9], 1
    %2483 = vsyncpa [#allocation6], 1
    %2484 = vsyncpa [#allocation7], 1
    %2485 = vsyncpa [#allocation12], 1
    %2486 = vsyncpa [#allocation15], 1

</llo_original>
